<compile_context>
chip_gen: v7x
topology: tpu7x:2x2x1
jax: 0.10.0
libtpu: 0.0.40
codegen_flags: <defaults>
</compile_context>

<pallas_src>
import jax
import jax.numpy as jnp
from jax.experimental import pallas as pl
from jax.experimental.pallas import tpu as pltpu

_BN_EPS = 1e-5
_VMEM = pl.BlockSpec(memory_space=pltpu.MemorySpace.VMEM)
_CPARAMS = pltpu.CompilerParams(vmem_limit_bytes=16 * 1024 * 1024)


# ---------------------------------------------------------------------------
# Pallas kernels
# ---------------------------------------------------------------------------
def _conv_bn_relu_kernel(p_ref, w_ref, gb_ref, o_ref):
    """Conv-as-matmul (bf16 operands, f32 acc) + training-mode BN + ReLU.

    p_ref : (K, M)  bf16  im2col patches^T, M = N*OH*OW (lane-dense minor axis)
    w_ref : (Co, K) bf16  reshaped conv weight
    gb_ref: (Co, 2) f32   packed BN gamma (col 0) / beta (col 1)
    o_ref : (Co, M) bf16
    """
    y = jnp.dot(w_ref[...], p_ref[...], preferred_element_type=jnp.float32)
    # Conv bias omitted: a per-channel constant is cancelled exactly by the
    # training-mode BN mean subtraction below.
    mean = jnp.mean(y, axis=1, keepdims=True)                    # lane reduce
    var = jnp.mean(jnp.square(y - mean), axis=1, keepdims=True)  # biased var
    y = (y - mean) * jax.lax.rsqrt(var + _BN_EPS)
    y = y * gb_ref[:, 0:1] + gb_ref[:, 1:2]
    o_ref[...] = jnp.maximum(y, 0.0).astype(o_ref.dtype)


def _conv_bn_relu_head_kernel(p_ref, w_ref, gb_ref, wa_ref, ba_ref, o_ref):
    """Fused layer-3 conv + BN + ReLU + Linear(1344, A) + softmax(. / T).

    p_ref : (K3, M3)  bf16  M3 = N*OH3*OW3, columns ordered (n, oh, ow)
    w_ref : (Co, K3)  bf16  reshaped conv weight
    gb_ref: (Co, 2)   f32   packed BN gamma / beta
    wa_ref: (A, Co, S) f32  action weight (pre-divided by T), torch flatten order
    ba_ref: (1, A)    f32   action bias   (pre-divided by T)
    o_ref : (N, A)    f32   softmax probabilities
    """
    batch = o_ref.shape[0]
    spatial = wa_ref.shape[2]

    y = jnp.dot(w_ref[...], p_ref[...], preferred_element_type=jnp.float32)
    mean = jnp.mean(y, axis=1, keepdims=True)
    var = jnp.mean(jnp.square(y - mean), axis=1, keepdims=True)
    y = (y - mean) * jax.lax.rsqrt(var + _BN_EPS)
    y = y * gb_ref[:, 0:1] + gb_ref[:, 1:2]
    y = jnp.maximum(y, 0.0)                       # (Co, N*S) f32, cols (n,oh,ow)

    wa = wa_ref[...]                              # (A, Co, S)
    # TODO(synk): replace the unrolled per-sample reduction with a matmul-based
    # head before batch grows (the (A, Co, S) broadcast scales linearly in N).
    for n in range(batch):                        # static; batch is tiny
        yn = y[:, n * spatial:(n + 1) * spatial]  # (Co, S)
        prod = wa * yn[None, :, :]                # (A, Co, S)
        col = jnp.sum(jnp.sum(prod, axis=2), axis=1, keepdims=True)   # (A, 1)
        logits = jnp.transpose(col) + ba_ref[...]                     # (1, A)
        # Softmax over actions; exact reciprocal so probs sum to 1 (f32).
        z = logits - jnp.max(logits, axis=1, keepdims=True)
        e = jnp.exp(z)
        inv = pl.reciprocal(jnp.sum(e, axis=1, keepdims=True), approx=False)
        o_ref[n:n + 1, :] = e * inv


# ---------------------------------------------------------------------------
# Wrappers (layout glue: padding + im2col emitting (K, M) in bf16)
# ---------------------------------------------------------------------------
def _im2col_T(x_cnhw, kh, kw, stride, padding):
    """(C, N, H, W) -> patches^T of shape (C*KH*KW, N*OH*OW).

    Row order (c, i, j) matches w.reshape(Co, Ci*KH*KW); column order (n, oh, ow).
    XLA fuses the pad/slice/stack/reshape chain into one small fusion.
    """
    c, n, h, w = x_cnhw.shape
    xp = jnp.pad(x_cnhw, ((0, 0), (0, 0), (padding, padding), (padding, padding)))
    hp, wp = h + 2 * padding, w + 2 * padding
    oh = (hp - kh) // stride + 1
    ow = (wp - kw) // stride + 1
    taps = []
    for i in range(kh):
        for j in range(kw):
            taps.append(xp[:, :, i:i + stride * oh:stride, j:j + stride * ow:stride])
    p = jnp.stack(taps, axis=1)                   # (C, KH*KW, N, OH, OW)
    return p.reshape(c * kh * kw, n * oh * ow), oh, ow


def _conv_bn_relu(x_cnhw, w, gamma, beta, *, stride, padding):
    """x_cnhw: (C, N, H, W) bf16; w: (Co, Ci, KH, KW). Returns (Co, N, OH, OW) bf16."""
    co = w.shape[0]
    n = x_cnhw.shape[1]
    p, oh, ow = _im2col_T(x_cnhw, w.shape[2], w.shape[3], stride, padding)
    k, m = p.shape
    wr = w.reshape(co, k).astype(jnp.bfloat16)
    gb = jnp.stack([gamma, beta], axis=1).astype(jnp.float32)     # (Co, 2)
    out = pl.pallas_call(
        _conv_bn_relu_kernel,
        out_shape=jax.ShapeDtypeStruct((co, m), jnp.bfloat16),
        in_specs=[_VMEM] * 3,
        out_specs=_VMEM,
        compiler_params=_CPARAMS,
    )(p.astype(jnp.bfloat16), wr, gb)
    return out.reshape(co, n, oh, ow)


def _conv_bn_relu_head(x_cnhw, w, gamma, beta, w_act, b_act, *, stride, padding,
                       temperature):
    """Fused final conv stage + action head.  Returns softmax probs (N, A)."""
    co = w.shape[0]
    n = x_cnhw.shape[1]
    p, oh, ow = _im2col_T(x_cnhw, w.shape[2], w.shape[3], stride, padding)
    k, _ = p.shape
    wr = w.reshape(co, k).astype(jnp.bfloat16)
    gb = jnp.stack([gamma, beta], axis=1).astype(jnp.float32)
    a = w_act.shape[0]
    inv_t = jnp.float32(1.0 / temperature)
    # Fold 1/T and torch's NCHW flatten order (c, oh, ow) into the head weights.
    wa = (w_act * inv_t).reshape(a, co, oh * ow).astype(jnp.float32)
    ba = (b_act * inv_t).reshape(1, a).astype(jnp.float32)
    return pl.pallas_call(
        _conv_bn_relu_head_kernel,
        out_shape=jax.ShapeDtypeStruct((n, a), jnp.float32),
        in_specs=[_VMEM] * 5,
        out_specs=_VMEM,
        compiler_params=_CPARAMS,
    )(p.astype(jnp.bfloat16), wr, gb, wa, ba)


def drone_policy_forward(x_nchw, params, temperature=1.0):
    """Full Drone_Policy.forward.  x_nchw: (N, C, H, W) float32 -> (N, A) probs."""
    # NCHW -> (C, N, H, W): channels lead so conv matmuls output (Co, M) with
    # M = N*OH*OW lane-dense.  bf16 activations feed the MXU; compute stays f32.
    x = jnp.transpose(x_nchw, (1, 0, 2, 3)).astype(jnp.bfloat16)
    x = _conv_bn_relu(x, params["w1"], params["g1"], params["be1"],
                      stride=2, padding=1)
    x = _conv_bn_relu(x, params["w2"], params["g2"], params["be2"],
                      stride=2, padding=1)
    return _conv_bn_relu_head(x, params["w3"], params["g3"], params["be3"],
                              params["w_act"], params["b_act"],
                              stride=2, padding=0, temperature=temperature)


# ---------------------------------------------------------------------------
# Pure-JAX reference (bias-including, training-mode BN) for validation.
# conv_dtype selects the conv/matmul input precision:
#   * float32  -> exact f32 reference (deviation == documented bf16-operand effect)
#   * bfloat16 -> matched precision (same rounding points as the kernels)
# ---------------------------------------------------------------------------
def _reference_forward(x, params, temperature=1.0, conv_dtype=jnp.float32):
    def block(x, w, b, g, be, stride, padding):
        y = jax.lax.conv_general_dilated(
            x.astype(conv_dtype), w.astype(conv_dtype),
            window_strides=(stride, stride),
            padding=((padding, padding), (padding, padding)),
            dimension_numbers=("NCHW", "OIHW", "NCHW"),
            preferred_element_type=jnp.float32)
        y = y + b.reshape(1, -1, 1, 1)
        mean = jnp.mean(y, axis=(0, 2, 3), keepdims=True)
        var = jnp.mean(jnp.square(y - mean), axis=(0, 2, 3), keepdims=True)
        y = (y - mean) / jnp.sqrt(var + _BN_EPS)
        y = y * g.reshape(1, -1, 1, 1) + be.reshape(1, -1, 1, 1)
        return jnp.maximum(y, 0.0)

    y = block(x, params["w1"], params["b1"], params["g1"], params["be1"], 2, 1)
    y = block(y, params["w2"], params["b2"], params["g2"], params["be2"], 2, 1)
    y = block(y, params["w3"], params["b3"], params["g3"], params["be3"], 2, 0)
    flat = y.reshape(y.shape[0], -1)
    logits = flat @ params["w_act"].T + params["b_act"]
    return jax.nn.softmax(logits / temperature, axis=-1)


# ---------------------------------------------------------------------------
# Deterministic parameter init (synthetic; shapes follow the torch module)
# ---------------------------------------------------------------------------
def init_params(key, input_channels, num_actions):
    ks = jax.random.split(key, 8)
    scale = 0.05

    def conv(k, co, ci, kh, kw):
        return scale * jax.random.normal(k, (co, ci, kh, kw), jnp.float32)

    # Conv biases b1/b2/b3 kept for parity with the torch module but not fed to
    # the kernels (exactly cancelled by training-mode BatchNorm).
    return {
        "w1": conv(ks[0], 16, input_channels, 4, 4),
        "b1": scale * jax.random.normal(ks[1], (16,), jnp.float32),
        "g1": jnp.ones((16,), jnp.float32),
        "be1": jnp.zeros((16,), jnp.float32),
        "w2": conv(ks[2], 16, 16, 4, 4),
        "b2": scale * jax.random.normal(ks[3], (16,), jnp.float32),
        "g2": jnp.ones((16,), jnp.float32),
        "be2": jnp.zeros((16,), jnp.float32),
        "w3": conv(ks[4], 16, 16, 3, 3),
        "b3": scale * jax.random.normal(ks[5], (16,), jnp.float32),
        "g3": jnp.ones((16,), jnp.float32),
        "be3": jnp.zeros((16,), jnp.float32),
        "w_act": scale * jax.random.normal(ks[6], (num_actions, 1344), jnp.float32),
        "b_act": scale * jax.random.normal(ks[7], (num_actions,), jnp.float32),
    }


if __name__ == "__main__":
    INPUT_CHANNELS = 4
    NUM_ACTIONS = 8
    BATCH = 2
    H, W = 100, 60  # yields 16 * 12 * 7 = 1344 flattened features

    key = jax.random.PRNGKey(0)
    k_x, k_p = jax.random.split(key)
    x = jax.random.normal(k_x, (BATCH, INPUT_CHANNELS, H, W), jnp.float32)
    params = init_params(k_p, INPUT_CHANNELS, NUM_ACTIONS)

    fwd = jax.jit(lambda xx, pp: drone_policy_forward(xx, pp, temperature=1.0))
    probs = jax.block_until_ready(fwd(x, params))

    ref_matched = jax.block_until_ready(
        _reference_forward(x, params, 1.0, conv_dtype=jnp.bfloat16))
    ref_f32 = jax.block_until_ready(
        _reference_forward(x, params, 1.0, conv_dtype=jnp.float32))

    assert probs.shape == (BATCH, NUM_ACTIONS)
    assert bool(jnp.all(jnp.isfinite(probs)))
    # Exact reciprocal in the softmax -> rows sum to 1 at f32 precision.
    assert bool(jnp.allclose(jnp.sum(probs, axis=-1), 1.0, atol=1e-5))
    # Matched-precision reference (bf16 conv operands, f32 everything else).
    assert bool(jnp.allclose(probs, ref_matched, atol=1e-3))
    # Pure-f32 reference: remaining deviation is the documented bf16-operand effect.
    assert bool(jnp.allclose(probs, ref_f32, atol=3e-2))
    print("KERNEL_OK")
</pallas_src>

<mosaic_0001>
module attributes {stable_mosaic.version = 11 : i64} {
  func.func @_conv_bn_relu_kernel(%arg0: memref<64x3000xbf16, #tpu.memory_space<vmem>>, %arg1: memref<16x64xbf16, #tpu.memory_space<vmem>>, %arg2: memref<16x2xf32, #tpu.memory_space<vmem>>, %arg3: memref<16x3000xbf16, #tpu.memory_space<vmem>>) attributes {dimension_semantics = [], scalar_prefetch = 0 : i64, scratch_operands = 0 : i64, tpu.core_type = #tpu.core_type<tc>} {
    %c0 = arith.constant 0 : index
    %c0_0 = arith.constant 0 : index
    %0 = vector.load %arg1[%c0, %c0_0] : memref<16x64xbf16, #tpu.memory_space<vmem>>, vector<16x64xbf16>
    %c0_1 = arith.constant 0 : index
    %c0_2 = arith.constant 0 : index
    %1 = vector.load %arg0[%c0_1, %c0_2] : memref<64x3000xbf16, #tpu.memory_space<vmem>>, vector<64x3000xbf16>
    %cst = arith.constant dense<0.000000e+00> : vector<16x3000xf32>
    %2 = tpu.matmul %0, %1, %cst {dimension_numbers = #tpu.dot_dimension_numbers<[1], [0], [0], [1], [0, 0, 1, 1], [], []>} : vector<16x64xbf16>, vector<64x3000xbf16>, vector<16x3000xf32> -> vector<16x3000xf32>
    %cst_3 = arith.constant dense<0.000000e+00> : vector<16xf32>
    %3 = vector.multi_reduction <add>, %2, %cst_3 [1] : vector<16x3000xf32> to vector<16xf32>
    %4 = vector.shape_cast %3 : vector<16xf32> to vector<16x1xf32>
    %cst_4 = arith.constant 3.000000e+03 : f32
    %5 = vector.broadcast %cst_4 : f32 to vector<16x1xf32>
    %6 = arith.divf %4, %5 : vector<16x1xf32>
    %7 = vector.broadcast %6 : vector<16x1xf32> to vector<16x3000xf32>
    %8 = arith.subf %2, %7 : vector<16x3000xf32>
    %9 = arith.mulf %8, %8 : vector<16x3000xf32>
    %cst_5 = arith.constant dense<0.000000e+00> : vector<16xf32>
    %10 = vector.multi_reduction <add>, %9, %cst_5 [1] : vector<16x3000xf32> to vector<16xf32>
    %11 = vector.shape_cast %10 : vector<16xf32> to vector<16x1xf32>
    %cst_6 = arith.constant 3.000000e+03 : f32
    %12 = vector.broadcast %cst_6 : f32 to vector<16x1xf32>
    %13 = arith.divf %11, %12 : vector<16x1xf32>
    %14 = vector.broadcast %6 : vector<16x1xf32> to vector<16x3000xf32>
    %15 = arith.subf %2, %14 : vector<16x3000xf32>
    %cst_7 = arith.constant 9.99999974E-6 : f32
    %16 = vector.broadcast %cst_7 : f32 to vector<16x1xf32>
    %17 = arith.addf %13, %16 : vector<16x1xf32>
    %18 = math.rsqrt %17 : vector<16x1xf32>
    %19 = vector.broadcast %18 : vector<16x1xf32> to vector<16x3000xf32>
    %20 = arith.mulf %15, %19 : vector<16x3000xf32>
    %c0_8 = arith.constant 0 : index
    %c0_9 = arith.constant 0 : index
    %21 = vector.load %arg2[%c0_8, %c0_9] : memref<16x2xf32, #tpu.memory_space<vmem>>, vector<16x1xf32>
    %22 = vector.broadcast %21 : vector<16x1xf32> to vector<16x3000xf32>
    %23 = arith.mulf %20, %22 : vector<16x3000xf32>
    %c0_10 = arith.constant 0 : index
    %c1 = arith.constant 1 : index
    %24 = vector.load %arg2[%c0_10, %c1] : memref<16x2xf32, #tpu.memory_space<vmem>>, vector<16x1xf32>
    %25 = vector.broadcast %24 : vector<16x1xf32> to vector<16x3000xf32>
    %26 = arith.addf %23, %25 : vector<16x3000xf32>
    %cst_11 = arith.constant 0.000000e+00 : f32
    %27 = vector.broadcast %cst_11 : f32 to vector<16x3000xf32>
    %28 = arith.maximumf %26, %27 : vector<16x3000xf32>
    %29 = arith.truncf %28 : vector<16x3000xf32> to vector<16x3000xbf16>
    %c0_12 = arith.constant 0 : index
    %c0_13 = arith.constant 0 : index
    %30 = vector.load %arg3[%c0_12, %c0_13] : memref<16x3000xbf16, #tpu.memory_space<vmem>>, vector<16x3000xbf16>
    tpu.vector_store %arg3[%c0_12, %c0_13], %29 {strides = array<i32>} : memref<16x3000xbf16, #tpu.memory_space<vmem>>, vector<16x3000xbf16>,
    return
  }
}

module attributes {stable_mosaic.version = 11 : i64} {
  func.func @_conv_bn_relu_kernel(%arg0: memref<256x750xbf16, #tpu.memory_space<vmem>>, %arg1: memref<16x256xbf16, #tpu.memory_space<vmem>>, %arg2: memref<16x2xf32, #tpu.memory_space<vmem>>, %arg3: memref<16x750xbf16, #tpu.memory_space<vmem>>) attributes {dimension_semantics = [], scalar_prefetch = 0 : i64, scratch_operands = 0 : i64, tpu.core_type = #tpu.core_type<tc>} {
    %c0 = arith.constant 0 : index
    %c0_0 = arith.constant 0 : index
    %0 = vector.load %arg1[%c0, %c0_0] : memref<16x256xbf16, #tpu.memory_space<vmem>>, vector<16x256xbf16>
    %c0_1 = arith.constant 0 : index
    %c0_2 = arith.constant 0 : index
    %1 = vector.load %arg0[%c0_1, %c0_2] : memref<256x750xbf16, #tpu.memory_space<vmem>>, vector<256x750xbf16>
    %cst = arith.constant dense<0.000000e+00> : vector<16x750xf32>
    %2 = tpu.matmul %0, %1, %cst {dimension_numbers = #tpu.dot_dimension_numbers<[1], [0], [0], [1], [0, 0, 1, 1], [], []>} : vector<16x256xbf16>, vector<256x750xbf16>, vector<16x750xf32> -> vector<16x750xf32>
    %cst_3 = arith.constant dense<0.000000e+00> : vector<16xf32>
    %3 = vector.multi_reduction <add>, %2, %cst_3 [1] : vector<16x750xf32> to vector<16xf32>
    %4 = vector.shape_cast %3 : vector<16xf32> to vector<16x1xf32>
    %cst_4 = arith.constant 7.500000e+02 : f32
    %5 = vector.broadcast %cst_4 : f32 to vector<16x1xf32>
    %6 = arith.divf %4, %5 : vector<16x1xf32>
    %7 = vector.broadcast %6 : vector<16x1xf32> to vector<16x750xf32>
    %8 = arith.subf %2, %7 : vector<16x750xf32>
    %9 = arith.mulf %8, %8 : vector<16x750xf32>
    %cst_5 = arith.constant dense<0.000000e+00> : vector<16xf32>
    %10 = vector.multi_reduction <add>, %9, %cst_5 [1] : vector<16x750xf32> to vector<16xf32>
    %11 = vector.shape_cast %10 : vector<16xf32> to vector<16x1xf32>
    %cst_6 = arith.constant 7.500000e+02 : f32
    %12 = vector.broadcast %cst_6 : f32 to vector<16x1xf32>
    %13 = arith.divf %11, %12 : vector<16x1xf32>
    %14 = vector.broadcast %6 : vector<16x1xf32> to vector<16x750xf32>
    %15 = arith.subf %2, %14 : vector<16x750xf32>
    %cst_7 = arith.constant 9.99999974E-6 : f32
    %16 = vector.broadcast %cst_7 : f32 to vector<16x1xf32>
    %17 = arith.addf %13, %16 : vector<16x1xf32>
    %18 = math.rsqrt %17 : vector<16x1xf32>
    %19 = vector.broadcast %18 : vector<16x1xf32> to vector<16x750xf32>
    %20 = arith.mulf %15, %19 : vector<16x750xf32>
    %c0_8 = arith.constant 0 : index
    %c0_9 = arith.constant 0 : index
    %21 = vector.load %arg2[%c0_8, %c0_9] : memref<16x2xf32, #tpu.memory_space<vmem>>, vector<16x1xf32>
    %22 = vector.broadcast %21 : vector<16x1xf32> to vector<16x750xf32>
    %23 = arith.mulf %20, %22 : vector<16x750xf32>
    %c0_10 = arith.constant 0 : index
    %c1 = arith.constant 1 : index
    %24 = vector.load %arg2[%c0_10, %c1] : memref<16x2xf32, #tpu.memory_space<vmem>>, vector<16x1xf32>
    %25 = vector.broadcast %24 : vector<16x1xf32> to vector<16x750xf32>
    %26 = arith.addf %23, %25 : vector<16x750xf32>
    %cst_11 = arith.constant 0.000000e+00 : f32
    %27 = vector.broadcast %cst_11 : f32 to vector<16x750xf32>
    %28 = arith.maximumf %26, %27 : vector<16x750xf32>
    %29 = arith.truncf %28 : vector<16x750xf32> to vector<16x750xbf16>
    %c0_12 = arith.constant 0 : index
    %c0_13 = arith.constant 0 : index
    %30 = vector.load %arg3[%c0_12, %c0_13] : memref<16x750xbf16, #tpu.memory_space<vmem>>, vector<16x750xbf16>
    tpu.vector_store %arg3[%c0_12, %c0_13], %29 {strides = array<i32>} : memref<16x750xbf16, #tpu.memory_space<vmem>>, vector<16x750xbf16>,
    return
  }
}

module attributes {stable_mosaic.version = 11 : i64} {
  func.func @_conv_bn_relu_head_kernel(%arg0: memref<144x168xbf16, #tpu.memory_space<vmem>>, %arg1: memref<16x144xbf16, #tpu.memory_space<vmem>>, %arg2: memref<16x2xf32, #tpu.memory_space<vmem>>, %arg3: memref<8x16x84xf32, #tpu.memory_space<vmem>>, %arg4: memref<1x8xf32, #tpu.memory_space<vmem>>, %arg5: memref<2x8xf32, #tpu.memory_space<vmem>>) attributes {dimension_semantics = [], scalar_prefetch = 0 : i64, scratch_operands = 0 : i64, tpu.core_type = #tpu.core_type<tc>} {
    %c0 = arith.constant 0 : index
    %c0_0 = arith.constant 0 : index
    %0 = vector.load %arg1[%c0, %c0_0] : memref<16x144xbf16, #tpu.memory_space<vmem>>, vector<16x144xbf16>
    %c0_1 = arith.constant 0 : index
    %c0_2 = arith.constant 0 : index
    %1 = vector.load %arg0[%c0_1, %c0_2] : memref<144x168xbf16, #tpu.memory_space<vmem>>, vector<144x168xbf16>
    %cst = arith.constant dense<0.000000e+00> : vector<16x168xf32>
    %2 = tpu.matmul %0, %1, %cst {dimension_numbers = #tpu.dot_dimension_numbers<[1], [0], [0], [1], [0, 0, 1, 1], [], []>} : vector<16x144xbf16>, vector<144x168xbf16>, vector<16x168xf32> -> vector<16x168xf32>
    %cst_3 = arith.constant dense<0.000000e+00> : vector<16xf32>
    %3 = vector.multi_reduction <add>, %2, %cst_3 [1] : vector<16x168xf32> to vector<16xf32>
    %4 = vector.shape_cast %3 : vector<16xf32> to vector<16x1xf32>
    %cst_4 = arith.constant 1.680000e+02 : f32
    %5 = vector.broadcast %cst_4 : f32 to vector<16x1xf32>
    %6 = arith.divf %4, %5 : vector<16x1xf32>
    %7 = vector.broadcast %6 : vector<16x1xf32> to vector<16x168xf32>
    %8 = arith.subf %2, %7 : vector<16x168xf32>
    %9 = arith.mulf %8, %8 : vector<16x168xf32>
    %cst_5 = arith.constant dense<0.000000e+00> : vector<16xf32>
    %10 = vector.multi_reduction <add>, %9, %cst_5 [1] : vector<16x168xf32> to vector<16xf32>
    %11 = vector.shape_cast %10 : vector<16xf32> to vector<16x1xf32>
    %cst_6 = arith.constant 1.680000e+02 : f32
    %12 = vector.broadcast %cst_6 : f32 to vector<16x1xf32>
    %13 = arith.divf %11, %12 : vector<16x1xf32>
    %14 = vector.broadcast %6 : vector<16x1xf32> to vector<16x168xf32>
    %15 = arith.subf %2, %14 : vector<16x168xf32>
    %cst_7 = arith.constant 9.99999974E-6 : f32
    %16 = vector.broadcast %cst_7 : f32 to vector<16x1xf32>
    %17 = arith.addf %13, %16 : vector<16x1xf32>
    %18 = math.rsqrt %17 : vector<16x1xf32>
    %19 = vector.broadcast %18 : vector<16x1xf32> to vector<16x168xf32>
    %20 = arith.mulf %15, %19 : vector<16x168xf32>
    %c0_8 = arith.constant 0 : index
    %c0_9 = arith.constant 0 : index
    %21 = vector.load %arg2[%c0_8, %c0_9] : memref<16x2xf32, #tpu.memory_space<vmem>>, vector<16x1xf32>
    %22 = vector.broadcast %21 : vector<16x1xf32> to vector<16x168xf32>
    %23 = arith.mulf %20, %22 : vector<16x168xf32>
    %c0_10 = arith.constant 0 : index
    %c1 = arith.constant 1 : index
    %24 = vector.load %arg2[%c0_10, %c1] : memref<16x2xf32, #tpu.memory_space<vmem>>, vector<16x1xf32>
    %25 = vector.broadcast %24 : vector<16x1xf32> to vector<16x168xf32>
    %26 = arith.addf %23, %25 : vector<16x168xf32>
    %cst_11 = arith.constant 0.000000e+00 : f32
    %27 = vector.broadcast %cst_11 : f32 to vector<16x168xf32>
    %28 = arith.maximumf %26, %27 : vector<16x168xf32>
    %c0_12 = arith.constant 0 : index
    %c0_13 = arith.constant 0 : index
    %c0_14 = arith.constant 0 : index
    %29 = vector.load %arg3[%c0_12, %c0_13, %c0_14] : memref<8x16x84xf32, #tpu.memory_space<vmem>>, vector<8x16x84xf32>
    %30 = vector.extract_strided_slice %28 {offsets = [0, 0], sizes = [16, 84], strides = [1, 1]} : vector<16x168xf32> to vector<16x84xf32>
    %31 = vector.shape_cast %30 : vector<16x84xf32> to vector<1x16x84xf32>
    %32 = vector.broadcast %31 : vector<1x16x84xf32> to vector<8x16x84xf32>
    %33 = arith.mulf %29, %32 : vector<8x16x84xf32>
    %cst_15 = arith.constant dense<0.000000e+00> : vector<8x16xf32>
    %34 = vector.multi_reduction <add>, %33, %cst_15 [2] : vector<8x16x84xf32> to vector<8x16xf32>
    %cst_16 = arith.constant dense<0.000000e+00> : vector<8xf32>
    %35 = vector.multi_reduction <add>, %34, %cst_16 [1] : vector<8x16xf32> to vector<8xf32>
    %36 = vector.shape_cast %35 : vector<8xf32> to vector<8x1xf32>
    %37 = tpu.transpose %36, [1, 0] : vector<8x1xf32> -> vector<1x8xf32>
    %c0_17 = arith.constant 0 : index
    %c0_18 = arith.constant 0 : index
    %38 = vector.load %arg4[%c0_17, %c0_18] : memref<1x8xf32, #tpu.memory_space<vmem>>, vector<1x8xf32>
    %39 = arith.addf %37, %38 : vector<1x8xf32>
    %cst_19 = arith.constant dense<0xFF800000> : vector<1xf32>
    %40 = vector.multi_reduction <maximumf>, %39, %cst_19 [1] : vector<1x8xf32> to vector<1xf32>
    %41 = vector.shape_cast %40 : vector<1xf32> to vector<1x1xf32>
    %42 = vector.broadcast %41 : vector<1x1xf32> to vector<1x8xf32>
    %43 = arith.subf %39, %42 : vector<1x8xf32>
    %44 = math.exp %43 : vector<1x8xf32>
    %cst_20 = arith.constant dense<0.000000e+00> : vector<1xf32>
    %45 = vector.multi_reduction <add>, %44, %cst_20 [1] : vector<1x8xf32> to vector<1xf32>
    %46 = vector.shape_cast %45 : vector<1xf32> to vector<1x1xf32>
    %47 = tpu.reciprocal %46 : vector<1x1xf32> -> vector<1x1xf32>
    %48 = vector.broadcast %47 : vector<1x1xf32> to vector<1x8xf32>
    %49 = arith.mulf %44, %48 : vector<1x8xf32>
    %c0_21 = arith.constant 0 : index
    %c0_22 = arith.constant 0 : index
    %50 = vector.load %arg5[%c0_21, %c0_22] : memref<2x8xf32, #tpu.memory_space<vmem>>, vector<1x8xf32>
    tpu.vector_store %arg5[%c0_21, %c0_22], %49 {strides = array<i32>} : memref<2x8xf32, #tpu.memory_space<vmem>>, vector<1x8xf32>,
    %51 = vector.extract_strided_slice %28 {offsets = [0, 84], sizes = [16, 84], strides = [1, 1]} : vector<16x168xf32> to vector<16x84xf32>
    %52 = vector.shape_cast %51 : vector<16x84xf32> to vector<1x16x84xf32>
    %53 = vector.broadcast %52 : vector<1x16x84xf32> to vector<8x16x84xf32>
    %54 = arith.mulf %29, %53 : vector<8x16x84xf32>
    %cst_23 = arith.constant dense<0.000000e+00> : vector<8x16xf32>
    %55 = vector.multi_reduction <add>, %54, %cst_23 [2] : vector<8x16x84xf32> to vector<8x16xf32>
    %cst_24 = arith.constant dense<0.000000e+00> : vector<8xf32>
    %56 = vector.multi_reduction <add>, %55, %cst_24 [1] : vector<8x16xf32> to vector<8xf32>
    %57 = vector.shape_cast %56 : vector<8xf32> to vector<8x1xf32>
    %58 = tpu.transpose %57, [1, 0] : vector<8x1xf32> -> vector<1x8xf32>
    %c0_25 = arith.constant 0 : index
    %c0_26 = arith.constant 0 : index
    %59 = vector.load %arg4[%c0_25, %c0_26] : memref<1x8xf32, #tpu.memory_space<vmem>>, vector<1x8xf32>
    %60 = arith.addf %58, %59 : vector<1x8xf32>
    %cst_27 = arith.constant dense<0xFF800000> : vector<1xf32>
    %61 = vector.multi_reduction <maximumf>, %60, %cst_27 [1] : vector<1x8xf32> to vector<1xf32>
    %62 = vector.shape_cast %61 : vector<1xf32> to vector<1x1xf32>
    %63 = vector.broadcast %62 : vector<1x1xf32> to vector<1x8xf32>
    %64 = arith.subf %60, %63 : vector<1x8xf32>
    %65 = math.exp %64 : vector<1x8xf32>
    %cst_28 = arith.constant dense<0.000000e+00> : vector<1xf32>
    %66 = vector.multi_reduction <add>, %65, %cst_28 [1] : vector<1x8xf32> to vector<1xf32>
    %67 = vector.shape_cast %66 : vector<1xf32> to vector<1x1xf32>
    %68 = tpu.reciprocal %67 : vector<1x1xf32> -> vector<1x1xf32>
    %69 = vector.broadcast %68 : vector<1x1xf32> to vector<1x8xf32>
    %70 = arith.mulf %65, %69 : vector<1x8xf32>
    %c1_29 = arith.constant 1 : index
    %c0_30 = arith.constant 0 : index
    %71 = vector.load %arg5[%c1_29, %c0_30] : memref<2x8xf32, #tpu.memory_space<vmem>>, vector<1x8xf32>
    tpu.vector_store %arg5[%c1_29, %c0_30], %70 {strides = array<i32>} : memref<2x8xf32, #tpu.memory_space<vmem>>, vector<1x8xf32>,
    return
  }
}

</mosaic_0001>

<llo_original>
// kernel: _lambda_.3
$region0: #{_lambda_.3}
  #allocation0 [shape = 'u32[]', space=smem, size = 0x4, offset = 0x4, fixed_abs, tag = 'smem constant byte address 0x4 - core index']
  #allocation1 [shape = 'u32[144,128]{1,0:T(1,128)}', space=vmem, size = 0x12000, scoped, tag = 'internal scratch']
  %s0 = inlined_call_operand.vmem [shape: bf16[64,3000], index: 0, kind: input, shape index: {}]
  %s1 = inlined_call_operand.vmem [shape: bf16[16,64], index: 1, kind: input, shape index: {}]
  %s2 = inlined_call_operand.vmem [shape: f32[16,2], index: 2, kind: input, shape index: {}]
  %s3 = inlined_call_operand.vmem [shape: bf16[16,3000], index: 3, kind: output, shape index: {}]
  %s4 = sld [smem:[#allocation0]]
  $region22: #{_lambda_.3} parent=0
    _
  %s6 = ssub.s32 1, %s4
  %s7 = scalar_select 0, %s6, %s4
  // Predicated region
  $region2: #{_lambda_.3} parent=0 // pred_check
    _
  $region3: #{_lambda_.3} parent=0 // pred_check_branch
    %9 = sbr.rel (0) target = $region5
  $region4: #{_lambda_.3} parent=0 // pred_region
    _
  $region5: #{_lambda_.3} parent=0 // pred_fallthru
    _
  // Predicated region
  $region6: #{_lambda_.3} parent=0 // pred_check
    _
  $region7: #{_lambda_.3} parent=0 // pred_check_branch
    %11 = sbr.rel (0) target = $region9
  $region8: #{_lambda_.3} parent=0 // pred_region
    _
  $region9: #{_lambda_.3} parent=0 // pred_fallthru
    _
  // Predicated region
  $region10: #{_lambda_.3} parent=0 // pred_check
    _
  $region11: #{_lambda_.3} parent=0 // pred_check_branch
    %13 = sbr.rel (0) target = $region13
  $region12: #{_lambda_.3} parent=0 // pred_region
    _
  $region13: #{_lambda_.3} parent=0 // pred_fallthru
    _
  %v15 = vld [vmem:[%s1] sm:$0xf]
  %v16 = vld [vmem:[%s1 + $0x4] sm:$0xf]
  %v17 = vld [vmem:[%s0] sm:$0xff]
  %v18 = vld [vmem:[%s0 + $0x8] sm:$0xff]
  %v19 = vld [vmem:[%s0 + $0x10] sm:$0xff]
  %v20 = vld [vmem:[%s0 + $0x18] sm:$0xff]
  %v21 = vld [vmem:[%s0 + $0x20] sm:$0xff]
  %v22 = vld [vmem:[%s0 + $0x28] sm:$0xff]
  %v23 = vld [vmem:[%s0 + $0x30] sm:$0xff]
  %v24 = vld [vmem:[%s0 + $0x38] sm:$0xff]
  %v25 = vld [vmem:[%s0 + $0x40] sm:$0xff]
  %v26 = vld [vmem:[%s0 + $0x48] sm:$0xff]
  %v27 = vld [vmem:[%s0 + $0x50] sm:$0xff]
  %v28 = vld [vmem:[%s0 + $0x58] sm:$0xff]
  %v29 = vld [vmem:[%s0 + $0x60] sm:$0xff]
  %v30 = vld [vmem:[%s0 + $0x68] sm:$0xff]
  %v31 = vld [vmem:[%s0 + $0x70] sm:$0xff]
  %v32 = vld [vmem:[%s0 + $0x78] sm:$0xff]
  %v33 = vld [vmem:[%s0 + $0x80] sm:$0xff]
  %v34 = vld [vmem:[%s0 + $0x88] sm:$0xff]
  %v35 = vld [vmem:[%s0 + $0x90] sm:$0xff]
  %v36 = vld [vmem:[%s0 + $0x98] sm:$0xff]
  %v37 = vld [vmem:[%s0 + $0xa0] sm:$0xff]
  %v38 = vld [vmem:[%s0 + $0xa8] sm:$0xff]
  %v39 = vld [vmem:[%s0 + $0xb0] sm:$0xff]
  %v40 = vld [vmem:[%s0 + $0xb8] sm:$0xff]
  %v41 = vld [vmem:[%s0 + $0xc0] sm:$0xff]
  %v42 = vld [vmem:[%s0 + $0xc8] sm:$0xff]
  %v43 = vld [vmem:[%s0 + $0xd0] sm:$0xff]
  %v44 = vld [vmem:[%s0 + $0xd8] sm:$0xff]
  %v45 = vld [vmem:[%s0 + $0xe0] sm:$0xff]
  %v46 = vld [vmem:[%s0 + $0xe8] sm:$0xff]
  %v47 = vld [vmem:[%s0 + $0xf0] sm:$0xff]
  %v48 = vld [vmem:[%s0 + $0xf8] sm:$0xff]
  %v49 = vld [vmem:[%s0 + $0x100] sm:$0xff]
  %v50 = vld [vmem:[%s0 + $0x108] sm:$0xff]
  %v51 = vld [vmem:[%s0 + $0x110] sm:$0xff]
  %v52 = vld [vmem:[%s0 + $0x118] sm:$0xff]
  %v53 = vld [vmem:[%s0 + $0x120] sm:$0xff]
  %v54 = vld [vmem:[%s0 + $0x128] sm:$0xff]
  %v55 = vld [vmem:[%s0 + $0x130] sm:$0xff]
  %v56 = vld [vmem:[%s0 + $0x138] sm:$0xff]
  %v57 = vld [vmem:[%s0 + $0x140] sm:$0xff]
  %v58 = vld [vmem:[%s0 + $0x148] sm:$0xff]
  %v59 = vld [vmem:[%s0 + $0x150] sm:$0xff]
  %v60 = vld [vmem:[%s0 + $0x158] sm:$0xff]
  %v61 = vld [vmem:[%s0 + $0x160] sm:$0xff]
  %v62 = vld [vmem:[%s0 + $0x168] sm:$0xff]
  %v63 = vld [vmem:[%s0 + $0x170] sm:$0xff]
  %v64 = vld [vmem:[%s0 + $0x178] sm:$0xff]
  %v65 = vld [vmem:[%s0 + $0x180] sm:$0xff]
  %v66 = vld [vmem:[%s0 + $0x188] sm:$0xff]
  %v67 = vld [vmem:[%s0 + $0x190] sm:$0xff]
  %v68 = vld [vmem:[%s0 + $0x198] sm:$0xff]
  %v69 = vld [vmem:[%s0 + $0x1a0] sm:$0xff]
  %v70 = vld [vmem:[%s0 + $0x1a8] sm:$0xff]
  %v71 = vld [vmem:[%s0 + $0x1b0] sm:$0xff]
  %v72 = vld [vmem:[%s0 + $0x1b8] sm:$0xff]
  %v73 = vld [vmem:[%s0 + $0x1c0] sm:$0xff]
  %v74 = vld [vmem:[%s0 + $0x1c8] sm:$0xff]
  %v75 = vld [vmem:[%s0 + $0x1d0] sm:$0xff]
  %v76 = vld [vmem:[%s0 + $0x1d8] sm:$0xff]
  %v77 = vld [vmem:[%s0 + $0x1e0] sm:$0xff]
  %v78 = vld [vmem:[%s0 + $0x1e8] sm:$0xff]
  %v79 = vld [vmem:[%s0 + $0x1f0] sm:$0xff]
  %v80 = vld [vmem:[%s0 + $0x1f8] sm:$0xff]
  %v81 = vld [vmem:[%s0 + $0x200] sm:$0xff]
  %v82 = vld [vmem:[%s0 + $0x208] sm:$0xff]
  %v83 = vld [vmem:[%s0 + $0x210] sm:$0xff]
  %v84 = vld [vmem:[%s0 + $0x218] sm:$0xff]
  %v85 = vld [vmem:[%s0 + $0x220] sm:$0xff]
  %v86 = vld [vmem:[%s0 + $0x228] sm:$0xff]
  %v87 = vld [vmem:[%s0 + $0x230] sm:$0xff]
  %v88 = vld [vmem:[%s0 + $0x238] sm:$0xff]
  %v89 = vld [vmem:[%s0 + $0x240] sm:$0xff]
  %v90 = vld [vmem:[%s0 + $0x248] sm:$0xff]
  %v91 = vld [vmem:[%s0 + $0x250] sm:$0xff]
  %v92 = vld [vmem:[%s0 + $0x258] sm:$0xff]
  %v93 = vld [vmem:[%s0 + $0x260] sm:$0xff]
  %v94 = vld [vmem:[%s0 + $0x268] sm:$0xff]
  %v95 = vld [vmem:[%s0 + $0x270] sm:$0xff]
  %v96 = vld [vmem:[%s0 + $0x278] sm:$0xff]
  %v97 = vld [vmem:[%s0 + $0x280] sm:$0xff]
  %v98 = vld [vmem:[%s0 + $0x288] sm:$0xff]
  %v99 = vld [vmem:[%s0 + $0x290] sm:$0xff]
  %v100 = vld [vmem:[%s0 + $0x298] sm:$0xff]
  %v101 = vld [vmem:[%s0 + $0x2a0] sm:$0xff]
  %v102 = vld [vmem:[%s0 + $0x2a8] sm:$0xff]
  %v103 = vld [vmem:[%s0 + $0x2b0] sm:$0xff]
  %v104 = vld [vmem:[%s0 + $0x2b8] sm:$0xff]
  %v105 = vld [vmem:[%s0 + $0x2c0] sm:$0xff]
  %v106 = vld [vmem:[%s0 + $0x2c8] sm:$0xff]
  %v107 = vld [vmem:[%s0 + $0x2d0] sm:$0xff]
  %v108 = vld [vmem:[%s0 + $0x2d8] sm:$0xff]
  %v109 = vld [vmem:[%s0 + $0x2e0] sm:$0xff]
  %v110 = vld [vmem:[%s0 + $0x2e8] sm:$0xff]
  %v111 = vld [vmem:[%s0 + $0x2f0] sm:$0xff]
  %v112 = vld [vmem:[%s0 + $0x2f8] sm:$0xff]
  %v115 = vunpack.c.l.b16 %v15
  %v116 = vunpack.c.l.b16 %v16
  %v117 = vpack.c.b16 %v116, %v115
  %v214 = vunpack.c.l.b16 %v17
  %v215 = vunpack.c.h.b16 %v17
  %v216 = vunpack.c.l.b16 %v18
  %v217 = vunpack.c.h.b16 %v18
  %v218 = vunpack.c.l.b16 %v19
  %v219 = vunpack.c.h.b16 %v19
  %v220 = vunpack.c.l.b16 %v20
  %v221 = vunpack.c.h.b16 %v20
  %v222 = vunpack.c.l.b16 %v21
  %v223 = vunpack.c.h.b16 %v21
  %v224 = vunpack.c.l.b16 %v22
  %v225 = vunpack.c.h.b16 %v22
  %v226 = vunpack.c.l.b16 %v23
  %v227 = vunpack.c.h.b16 %v23
  %v228 = vunpack.c.l.b16 %v24
  %v229 = vunpack.c.h.b16 %v24
  %v230 = vunpack.c.l.b16 %v25
  %v231 = vunpack.c.h.b16 %v25
  %v232 = vunpack.c.l.b16 %v26
  %v233 = vunpack.c.h.b16 %v26
  %v234 = vunpack.c.l.b16 %v27
  %v235 = vunpack.c.h.b16 %v27
  %v236 = vunpack.c.l.b16 %v28
  %v237 = vunpack.c.h.b16 %v28
  %v238 = vunpack.c.l.b16 %v29
  %v239 = vunpack.c.h.b16 %v29
  %v240 = vunpack.c.l.b16 %v30
  %v241 = vunpack.c.h.b16 %v30
  %v242 = vunpack.c.l.b16 %v31
  %v243 = vunpack.c.h.b16 %v31
  %v244 = vunpack.c.l.b16 %v32
  %v245 = vunpack.c.h.b16 %v32
  %v246 = vunpack.c.l.b16 %v33
  %v247 = vunpack.c.h.b16 %v33
  %v248 = vunpack.c.l.b16 %v34
  %v249 = vunpack.c.h.b16 %v34
  %v250 = vunpack.c.l.b16 %v35
  %v251 = vunpack.c.h.b16 %v35
  %v252 = vunpack.c.l.b16 %v36
  %v253 = vunpack.c.h.b16 %v36
  %v254 = vunpack.c.l.b16 %v37
  %v255 = vunpack.c.h.b16 %v37
  %v256 = vunpack.c.l.b16 %v38
  %v257 = vunpack.c.h.b16 %v38
  %v258 = vunpack.c.l.b16 %v39
  %v259 = vunpack.c.h.b16 %v39
  %v260 = vunpack.c.l.b16 %v40
  %v261 = vunpack.c.h.b16 %v40
  %v262 = vunpack.c.l.b16 %v41
  %v263 = vunpack.c.h.b16 %v41
  %v264 = vunpack.c.l.b16 %v42
  %v265 = vunpack.c.h.b16 %v42
  %v266 = vunpack.c.l.b16 %v43
  %v267 = vunpack.c.h.b16 %v43
  %v268 = vunpack.c.l.b16 %v44
  %v269 = vunpack.c.h.b16 %v44
  %v270 = vunpack.c.l.b16 %v45
  %v271 = vunpack.c.h.b16 %v45
  %v272 = vunpack.c.l.b16 %v46
  %v273 = vunpack.c.h.b16 %v46
  %v274 = vunpack.c.l.b16 %v47
  %v275 = vunpack.c.h.b16 %v47
  %v276 = vunpack.c.l.b16 %v48
  %v277 = vunpack.c.h.b16 %v48
  %v278 = vunpack.c.l.b16 %v49
  %v279 = vunpack.c.h.b16 %v49
  %v280 = vunpack.c.l.b16 %v50
  %v281 = vunpack.c.h.b16 %v50
  %v282 = vunpack.c.l.b16 %v51
  %v283 = vunpack.c.h.b16 %v51
  %v284 = vunpack.c.l.b16 %v52
  %v285 = vunpack.c.h.b16 %v52
  %v286 = vunpack.c.l.b16 %v53
  %v287 = vunpack.c.h.b16 %v53
  %v288 = vunpack.c.l.b16 %v54
  %v289 = vunpack.c.h.b16 %v54
  %v290 = vunpack.c.l.b16 %v55
  %v291 = vunpack.c.h.b16 %v55
  %v292 = vunpack.c.l.b16 %v56
  %v293 = vunpack.c.h.b16 %v56
  %v294 = vunpack.c.l.b16 %v57
  %v295 = vunpack.c.h.b16 %v57
  %v296 = vunpack.c.l.b16 %v58
  %v297 = vunpack.c.h.b16 %v58
  %v298 = vunpack.c.l.b16 %v59
  %v299 = vunpack.c.h.b16 %v59
  %v300 = vunpack.c.l.b16 %v60
  %v301 = vunpack.c.h.b16 %v60
  %v302 = vunpack.c.l.b16 %v61
  %v303 = vunpack.c.h.b16 %v61
  %v304 = vunpack.c.l.b16 %v62
  %v305 = vunpack.c.h.b16 %v62
  %v306 = vunpack.c.l.b16 %v63
  %v307 = vunpack.c.h.b16 %v63
  %v308 = vunpack.c.l.b16 %v64
  %v309 = vunpack.c.h.b16 %v64
  %v310 = vunpack.c.l.b16 %v65
  %v311 = vunpack.c.h.b16 %v65
  %v312 = vunpack.c.l.b16 %v66
  %v313 = vunpack.c.h.b16 %v66
  %v314 = vunpack.c.l.b16 %v67
  %v315 = vunpack.c.h.b16 %v67
  %v316 = vunpack.c.l.b16 %v68
  %v317 = vunpack.c.h.b16 %v68
  %v318 = vunpack.c.l.b16 %v69
  %v319 = vunpack.c.h.b16 %v69
  %v320 = vunpack.c.l.b16 %v70
  %v321 = vunpack.c.h.b16 %v70
  %v322 = vunpack.c.l.b16 %v71
  %v323 = vunpack.c.h.b16 %v71
  %v324 = vunpack.c.l.b16 %v72
  %v325 = vunpack.c.h.b16 %v72
  %v326 = vunpack.c.l.b16 %v73
  %v327 = vunpack.c.h.b16 %v73
  %v328 = vunpack.c.l.b16 %v74
  %v329 = vunpack.c.h.b16 %v74
  %v330 = vunpack.c.l.b16 %v75
  %v331 = vunpack.c.h.b16 %v75
  %v332 = vunpack.c.l.b16 %v76
  %v333 = vunpack.c.h.b16 %v76
  %v334 = vunpack.c.l.b16 %v77
  %v335 = vunpack.c.h.b16 %v77
  %v336 = vunpack.c.l.b16 %v78
  %v337 = vunpack.c.h.b16 %v78
  %v338 = vunpack.c.l.b16 %v79
  %v339 = vunpack.c.h.b16 %v79
  %v340 = vunpack.c.l.b16 %v80
  %v341 = vunpack.c.h.b16 %v80
  %v342 = vunpack.c.l.b16 %v81
  %v343 = vunpack.c.h.b16 %v81
  %v344 = vunpack.c.l.b16 %v82
  %v345 = vunpack.c.h.b16 %v82
  %v346 = vunpack.c.l.b16 %v83
  %v347 = vunpack.c.h.b16 %v83
  %v348 = vunpack.c.l.b16 %v84
  %v349 = vunpack.c.h.b16 %v84
  %v350 = vunpack.c.l.b16 %v85
  %v351 = vunpack.c.h.b16 %v85
  %v352 = vunpack.c.l.b16 %v86
  %v353 = vunpack.c.h.b16 %v86
  %v354 = vunpack.c.l.b16 %v87
  %v355 = vunpack.c.h.b16 %v87
  %v356 = vunpack.c.l.b16 %v88
  %v357 = vunpack.c.h.b16 %v88
  %v358 = vunpack.c.l.b16 %v89
  %v359 = vunpack.c.h.b16 %v89
  %v360 = vunpack.c.l.b16 %v90
  %v361 = vunpack.c.h.b16 %v90
  %v362 = vunpack.c.l.b16 %v91
  %v363 = vunpack.c.h.b16 %v91
  %v364 = vunpack.c.l.b16 %v92
  %v365 = vunpack.c.h.b16 %v92
  %v366 = vunpack.c.l.b16 %v93
  %v367 = vunpack.c.h.b16 %v93
  %v368 = vunpack.c.l.b16 %v94
  %v369 = vunpack.c.h.b16 %v94
  %v370 = vunpack.c.l.b16 %v95
  %v371 = vunpack.c.h.b16 %v95
  %v372 = vunpack.c.l.b16 %v96
  %v373 = vunpack.c.h.b16 %v96
  %v374 = vunpack.c.l.b16 %v97
  %v375 = vunpack.c.h.b16 %v97
  %v376 = vunpack.c.l.b16 %v98
  %v377 = vunpack.c.h.b16 %v98
  %v378 = vunpack.c.l.b16 %v99
  %v379 = vunpack.c.h.b16 %v99
  %v380 = vunpack.c.l.b16 %v100
  %v381 = vunpack.c.h.b16 %v100
  %v382 = vunpack.c.l.b16 %v101
  %v383 = vunpack.c.h.b16 %v101
  %v384 = vunpack.c.l.b16 %v102
  %v385 = vunpack.c.h.b16 %v102
  %v386 = vunpack.c.l.b16 %v103
  %v387 = vunpack.c.h.b16 %v103
  %v388 = vunpack.c.l.b16 %v104
  %v389 = vunpack.c.h.b16 %v104
  %v390 = vunpack.c.l.b16 %v105
  %v391 = vunpack.c.h.b16 %v105
  %v392 = vunpack.c.l.b16 %v106
  %v393 = vunpack.c.h.b16 %v106
  %v394 = vunpack.c.l.b16 %v107
  %v395 = vunpack.c.h.b16 %v107
  %v396 = vunpack.c.l.b16 %v108
  %v397 = vunpack.c.h.b16 %v108
  %v398 = vunpack.c.l.b16 %v109
  %v399 = vunpack.c.h.b16 %v109
  %v400 = vunpack.c.l.b16 %v110
  %v401 = vunpack.c.h.b16 %v110
  %v402 = vunpack.c.l.b16 %v111
  %v403 = vunpack.c.h.b16 %v111
  %v404 = vunpack.c.l.b16 %v112
  %v405 = vunpack.c.h.b16 %v112
  %v406 = vpack.c.b16 %v238, %v214
  %v407 = vpack.c.b16 %v239, %v215
  %v408 = vpack.c.b16 %v240, %v216
  %v409 = vpack.c.b16 %v241, %v217
  %v410 = vpack.c.b16 %v242, %v218
  %v411 = vpack.c.b16 %v243, %v219
  %v412 = vpack.c.b16 %v244, %v220
  %v413 = vpack.c.b16 %v245, %v221
  %v414 = vpack.c.b16 %v246, %v222
  %v415 = vpack.c.b16 %v247, %v223
  %v416 = vpack.c.b16 %v248, %v224
  %v417 = vpack.c.b16 %v249, %v225
  %v418 = vpack.c.b16 %v250, %v226
  %v419 = vpack.c.b16 %v251, %v227
  %v420 = vpack.c.b16 %v252, %v228
  %v421 = vpack.c.b16 %v253, %v229
  %v422 = vpack.c.b16 %v254, %v230
  %v423 = vpack.c.b16 %v255, %v231
  %v424 = vpack.c.b16 %v256, %v232
  %v425 = vpack.c.b16 %v257, %v233
  %v426 = vpack.c.b16 %v258, %v234
  %v427 = vpack.c.b16 %v259, %v235
  %v428 = vpack.c.b16 %v260, %v236
  %v429 = vpack.c.b16 %v261, %v237
  %v430 = vpack.c.b16 %v286, %v262
  %v431 = vpack.c.b16 %v287, %v263
  %v432 = vpack.c.b16 %v288, %v264
  %v433 = vpack.c.b16 %v289, %v265
  %v434 = vpack.c.b16 %v290, %v266
  %v435 = vpack.c.b16 %v291, %v267
  %v436 = vpack.c.b16 %v292, %v268
  %v437 = vpack.c.b16 %v293, %v269
  %v438 = vpack.c.b16 %v294, %v270
  %v439 = vpack.c.b16 %v295, %v271
  %v440 = vpack.c.b16 %v296, %v272
  %v441 = vpack.c.b16 %v297, %v273
  %v442 = vpack.c.b16 %v298, %v274
  %v443 = vpack.c.b16 %v299, %v275
  %v444 = vpack.c.b16 %v300, %v276
  %v445 = vpack.c.b16 %v301, %v277
  %v446 = vpack.c.b16 %v302, %v278
  %v447 = vpack.c.b16 %v303, %v279
  %v448 = vpack.c.b16 %v304, %v280
  %v449 = vpack.c.b16 %v305, %v281
  %v450 = vpack.c.b16 %v306, %v282
  %v451 = vpack.c.b16 %v307, %v283
  %v452 = vpack.c.b16 %v308, %v284
  %v453 = vpack.c.b16 %v309, %v285
  %v454 = vpack.c.b16 %v334, %v310
  %v455 = vpack.c.b16 %v335, %v311
  %v456 = vpack.c.b16 %v336, %v312
  %v457 = vpack.c.b16 %v337, %v313
  %v458 = vpack.c.b16 %v338, %v314
  %v459 = vpack.c.b16 %v339, %v315
  %v460 = vpack.c.b16 %v340, %v316
  %v461 = vpack.c.b16 %v341, %v317
  %v462 = vpack.c.b16 %v342, %v318
  %v463 = vpack.c.b16 %v343, %v319
  %v464 = vpack.c.b16 %v344, %v320
  %v465 = vpack.c.b16 %v345, %v321
  %v466 = vpack.c.b16 %v346, %v322
  %v467 = vpack.c.b16 %v347, %v323
  %v468 = vpack.c.b16 %v348, %v324
  %v469 = vpack.c.b16 %v349, %v325
  %v470 = vpack.c.b16 %v350, %v326
  %v471 = vpack.c.b16 %v351, %v327
  %v472 = vpack.c.b16 %v352, %v328
  %v473 = vpack.c.b16 %v353, %v329
  %v474 = vpack.c.b16 %v354, %v330
  %v475 = vpack.c.b16 %v355, %v331
  %v476 = vpack.c.b16 %v356, %v332
  %v477 = vpack.c.b16 %v357, %v333
  %v478 = vpack.c.b16 %v382, %v358
  %v479 = vpack.c.b16 %v383, %v359
  %v480 = vpack.c.b16 %v384, %v360
  %v481 = vpack.c.b16 %v385, %v361
  %v482 = vpack.c.b16 %v386, %v362
  %v483 = vpack.c.b16 %v387, %v363
  %v484 = vpack.c.b16 %v388, %v364
  %v485 = vpack.c.b16 %v389, %v365
  %v486 = vpack.c.b16 %v390, %v366
  %v487 = vpack.c.b16 %v391, %v367
  %v488 = vpack.c.b16 %v392, %v368
  %v489 = vpack.c.b16 %v393, %v369
  %v490 = vpack.c.b16 %v394, %v370
  %v491 = vpack.c.b16 %v395, %v371
  %v492 = vpack.c.b16 %v396, %v372
  %v493 = vpack.c.b16 %v397, %v373
  %v494 = vpack.c.b16 %v398, %v374
  %v495 = vpack.c.b16 %v399, %v375
  %v496 = vpack.c.b16 %v400, %v376
  %v497 = vpack.c.b16 %v401, %v377
  %v498 = vpack.c.b16 %v402, %v378
  %v499 = vpack.c.b16 %v403, %v379
  %v500 = vpack.c.b16 %v404, %v380
  %v501 = vpack.c.b16 %v405, %v381
  %vm598 = vcmask 523264
  %v600 = vsel %vm598, %v117, 0
  %602 = vmatprep.subr.bf16.mxu0 %v407
  %603 = vmatpush1.bf16.msra.mxu0 %v406
  %604 = vmatprep.subr.bf16.mxu0 %v431
  %605 = vmatpush1.bf16.msra.mxu0 %v430
  %606 = vmatprep.subr.bf16.mxu0 %v455
  %607 = vmatpush1.bf16.msra.mxu0 %v454
  %608 = vmatprep.subr.bf16.mxu0 %v479
  %609 = vmatpush1.bf16.msra.mxu0 %v478
  %610 = vmatprep.subr.bf16.mxu0 0
  %611 = vmatpush1.bf16.msra.mxu0 0
  %612 = vmatprep.subr.bf16.mxu0 0
  %613 = vmatpush1.bf16.msra.mxu0 0
  %614 = vmatprep.subr.bf16.mxu0 0
  %615 = vmatpush1.bf16.msra.mxu0 0
  %616 = vmatprep.subr.bf16.mxu0 0
  %617 = vmatpush1.bf16.msra.mxu0 0
  %618 = vmatprep.subr.bf16.mxu0 0
  %619 = vmatpush1.bf16.msra.mxu0 0
  %620 = vmatprep.subr.bf16.mxu0 0
  %621 = vmatpush1.bf16.msra.mxu0 0
  %622 = vmatprep.subr.bf16.mxu0 0
  %623 = vmatpush1.bf16.msra.mxu0 0
  %624 = vmatprep.subr.bf16.mxu0 0
  %625 = vmatpush1.bf16.msra.mxu0 0
  %626 = vmatprep.subr.bf16.mxu0 0
  %627 = vmatpush1.bf16.msra.mxu0 0
  %628 = vmatprep.subr.bf16.mxu0 0
  %629 = vmatpush1.bf16.msra.mxu0 0
  %630 = vmatprep.subr.bf16.mxu0 0
  %631 = vmatpush1.bf16.msra.mxu0 0
  %632 = vmatprep.subr.bf16.mxu0 0
  %633 = vmatpush1.bf16.msra.mxu0 0
  %634 = vmatprep.mubr.bf16.mxu0 0
  %635 = vmatmul.mubr.bf16.gmra.mrb[0].mxu0 %v600
  %v636 = vpop.f32.mrb[0].mxu0
  %v637 = vadd.f32 0.0, %v636
  %v638 = vpop.f32.mrb[0].mxu0
  %v639 = vadd.f32 0.0, %v638
  %v640 = vpop.f32.mrb[0].mxu0
  %v641 = vadd.f32 0.0, %v640
  %v642 = vpop.f32.mrb[0].mxu0
  %v643 = vadd.f32 0.0, %v642
  %644 = vdwg.mxu0
  %645 = vmatprep.subr.bf16.mxu0 %v409
  %646 = vmatpush1.bf16.msra.mxu0 %v408
  %647 = vmatprep.subr.bf16.mxu0 %v433
  %648 = vmatpush1.bf16.msra.mxu0 %v432
  %649 = vmatprep.subr.bf16.mxu0 %v457
  %650 = vmatpush1.bf16.msra.mxu0 %v456
  %651 = vmatprep.subr.bf16.mxu0 %v481
  %652 = vmatpush1.bf16.msra.mxu0 %v480
  %653 = vmatprep.subr.bf16.mxu0 0
  %654 = vmatpush1.bf16.msra.mxu0 0
  %655 = vmatprep.subr.bf16.mxu0 0
  %656 = vmatpush1.bf16.msra.mxu0 0
  %657 = vmatprep.subr.bf16.mxu0 0
  %658 = vmatpush1.bf16.msra.mxu0 0
  %659 = vmatprep.subr.bf16.mxu0 0
  %660 = vmatpush1.bf16.msra.mxu0 0
  %661 = vmatprep.subr.bf16.mxu0 0
  %662 = vmatpush1.bf16.msra.mxu0 0
  %663 = vmatprep.subr.bf16.mxu0 0
  %664 = vmatpush1.bf16.msra.mxu0 0
  %665 = vmatprep.subr.bf16.mxu0 0
  %666 = vmatpush1.bf16.msra.mxu0 0
  %667 = vmatprep.subr.bf16.mxu0 0
  %668 = vmatpush1.bf16.msra.mxu0 0
  %669 = vmatprep.subr.bf16.mxu0 0
  %670 = vmatpush1.bf16.msra.mxu0 0
  %671 = vmatprep.subr.bf16.mxu0 0
  %672 = vmatpush1.bf16.msra.mxu0 0
  %673 = vmatprep.subr.bf16.mxu0 0
  %674 = vmatpush1.bf16.msra.mxu0 0
  %675 = vmatprep.subr.bf16.mxu0 0
  %676 = vmatpush1.bf16.msra.mxu0 0
  %677 = vmatprep.mubr.bf16.mxu0 0
  %678 = vmatmul.mubr.bf16.gmra.mrb[0].mxu0 %v600
  %v679 = vpop.f32.mrb[0].mxu0
  %v680 = vadd.f32 0.0, %v679
  %v681 = vpop.f32.mrb[0].mxu0
  %v682 = vadd.f32 0.0, %v681
  %v683 = vpop.f32.mrb[0].mxu0
  %v684 = vadd.f32 0.0, %v683
  %v685 = vpop.f32.mrb[0].mxu0
  %v686 = vadd.f32 0.0, %v685
  %687 = vdwg.mxu0
  %688 = vmatprep.subr.bf16.mxu0 %v411
  %689 = vmatpush1.bf16.msra.mxu0 %v410
  %690 = vmatprep.subr.bf16.mxu0 %v435
  %691 = vmatpush1.bf16.msra.mxu0 %v434
  %692 = vmatprep.subr.bf16.mxu0 %v459
  %693 = vmatpush1.bf16.msra.mxu0 %v458
  %694 = vmatprep.subr.bf16.mxu0 %v483
  %695 = vmatpush1.bf16.msra.mxu0 %v482
  %696 = vmatprep.subr.bf16.mxu0 0
  %697 = vmatpush1.bf16.msra.mxu0 0
  %698 = vmatprep.subr.bf16.mxu0 0
  %699 = vmatpush1.bf16.msra.mxu0 0
  %700 = vmatprep.subr.bf16.mxu0 0
  %701 = vmatpush1.bf16.msra.mxu0 0
  %702 = vmatprep.subr.bf16.mxu0 0
  %703 = vmatpush1.bf16.msra.mxu0 0
  %704 = vmatprep.subr.bf16.mxu0 0
  %705 = vmatpush1.bf16.msra.mxu0 0
  %706 = vmatprep.subr.bf16.mxu0 0
  %707 = vmatpush1.bf16.msra.mxu0 0
  %708 = vmatprep.subr.bf16.mxu0 0
  %709 = vmatpush1.bf16.msra.mxu0 0
  %710 = vmatprep.subr.bf16.mxu0 0
  %711 = vmatpush1.bf16.msra.mxu0 0
  %712 = vmatprep.subr.bf16.mxu0 0
  %713 = vmatpush1.bf16.msra.mxu0 0
  %714 = vmatprep.subr.bf16.mxu0 0
  %715 = vmatpush1.bf16.msra.mxu0 0
  %716 = vmatprep.subr.bf16.mxu0 0
  %717 = vmatpush1.bf16.msra.mxu0 0
  %718 = vmatprep.subr.bf16.mxu0 0
  %719 = vmatpush1.bf16.msra.mxu0 0
  %720 = vmatprep.mubr.bf16.mxu0 0
  %721 = vmatmul.mubr.bf16.gmra.mrb[0].mxu0 %v600
  %v722 = vpop.f32.mrb[0].mxu0
  %v723 = vadd.f32 0.0, %v722
  %v724 = vpop.f32.mrb[0].mxu0
  %v725 = vadd.f32 0.0, %v724
  %v726 = vpop.f32.mrb[0].mxu0
  %v727 = vadd.f32 0.0, %v726
  %v728 = vpop.f32.mrb[0].mxu0
  %v729 = vadd.f32 0.0, %v728
  %730 = vdwg.mxu0
  %731 = vmatprep.subr.bf16.mxu0 %v413
  %732 = vmatpush1.bf16.msra.mxu0 %v412
  %733 = vmatprep.subr.bf16.mxu0 %v437
  %734 = vmatpush1.bf16.msra.mxu0 %v436
  %735 = vmatprep.subr.bf16.mxu0 %v461
  %736 = vmatpush1.bf16.msra.mxu0 %v460
  %737 = vmatprep.subr.bf16.mxu0 %v485
  %738 = vmatpush1.bf16.msra.mxu0 %v484
  %739 = vmatprep.subr.bf16.mxu0 0
  %740 = vmatpush1.bf16.msra.mxu0 0
  %741 = vmatprep.subr.bf16.mxu0 0
  %742 = vmatpush1.bf16.msra.mxu0 0
  %743 = vmatprep.subr.bf16.mxu0 0
  %744 = vmatpush1.bf16.msra.mxu0 0
  %745 = vmatprep.subr.bf16.mxu0 0
  %746 = vmatpush1.bf16.msra.mxu0 0
  %747 = vmatprep.subr.bf16.mxu0 0
  %748 = vmatpush1.bf16.msra.mxu0 0
  %749 = vmatprep.subr.bf16.mxu0 0
  %750 = vmatpush1.bf16.msra.mxu0 0
  %751 = vmatprep.subr.bf16.mxu0 0
  %752 = vmatpush1.bf16.msra.mxu0 0
  %753 = vmatprep.subr.bf16.mxu0 0
  %754 = vmatpush1.bf16.msra.mxu0 0
  %755 = vmatprep.subr.bf16.mxu0 0
  %756 = vmatpush1.bf16.msra.mxu0 0
  %757 = vmatprep.subr.bf16.mxu0 0
  %758 = vmatpush1.bf16.msra.mxu0 0
  %759 = vmatprep.subr.bf16.mxu0 0
  %760 = vmatpush1.bf16.msra.mxu0 0
  %761 = vmatprep.subr.bf16.mxu0 0
  %762 = vmatpush1.bf16.msra.mxu0 0
  %763 = vmatprep.mubr.bf16.mxu0 0
  %764 = vmatmul.mubr.bf16.gmra.mrb[0].mxu0 %v600
  %v765 = vpop.f32.mrb[0].mxu0
  %v766 = vadd.f32 0.0, %v765
  %v767 = vpop.f32.mrb[0].mxu0
  %v768 = vadd.f32 0.0, %v767
  %v769 = vpop.f32.mrb[0].mxu0
  %v770 = vadd.f32 0.0, %v769
  %v771 = vpop.f32.mrb[0].mxu0
  %v772 = vadd.f32 0.0, %v771
  %773 = vdwg.mxu0
  %774 = vmatprep.subr.bf16.mxu0 %v415
  %775 = vmatpush1.bf16.msra.mxu0 %v414
  %776 = vmatprep.subr.bf16.mxu0 %v439
  %777 = vmatpush1.bf16.msra.mxu0 %v438
  %778 = vmatprep.subr.bf16.mxu0 %v463
  %779 = vmatpush1.bf16.msra.mxu0 %v462
  %780 = vmatprep.subr.bf16.mxu0 %v487
  %781 = vmatpush1.bf16.msra.mxu0 %v486
  %782 = vmatprep.subr.bf16.mxu0 0
  %783 = vmatpush1.bf16.msra.mxu0 0
  %784 = vmatprep.subr.bf16.mxu0 0
  %785 = vmatpush1.bf16.msra.mxu0 0
  %786 = vmatprep.subr.bf16.mxu0 0
  %787 = vmatpush1.bf16.msra.mxu0 0
  %788 = vmatprep.subr.bf16.mxu0 0
  %789 = vmatpush1.bf16.msra.mxu0 0
  %790 = vmatprep.subr.bf16.mxu0 0
  %791 = vmatpush1.bf16.msra.mxu0 0
  %792 = vmatprep.subr.bf16.mxu0 0
  %793 = vmatpush1.bf16.msra.mxu0 0
  %794 = vmatprep.subr.bf16.mxu0 0
  %795 = vmatpush1.bf16.msra.mxu0 0
  %796 = vmatprep.subr.bf16.mxu0 0
  %797 = vmatpush1.bf16.msra.mxu0 0
  %798 = vmatprep.subr.bf16.mxu0 0
  %799 = vmatpush1.bf16.msra.mxu0 0
  %800 = vmatprep.subr.bf16.mxu0 0
  %801 = vmatpush1.bf16.msra.mxu0 0
  %802 = vmatprep.subr.bf16.mxu0 0
  %803 = vmatpush1.bf16.msra.mxu0 0
  %804 = vmatprep.subr.bf16.mxu0 0
  %805 = vmatpush1.bf16.msra.mxu0 0
  %806 = vmatprep.mubr.bf16.mxu0 0
  %807 = vmatmul.mubr.bf16.gmra.mrb[0].mxu0 %v600
  %v808 = vpop.f32.mrb[0].mxu0
  %v809 = vadd.f32 0.0, %v808
  %v810 = vpop.f32.mrb[0].mxu0
  %v811 = vadd.f32 0.0, %v810
  %v812 = vpop.f32.mrb[0].mxu0
  %v813 = vadd.f32 0.0, %v812
  %v814 = vpop.f32.mrb[0].mxu0
  %v815 = vadd.f32 0.0, %v814
  %816 = vdwg.mxu0
  %817 = vmatprep.subr.bf16.mxu0 %v417
  %818 = vmatpush1.bf16.msra.mxu0 %v416
  %819 = vmatprep.subr.bf16.mxu0 %v441
  %820 = vmatpush1.bf16.msra.mxu0 %v440
  %821 = vmatprep.subr.bf16.mxu0 %v465
  %822 = vmatpush1.bf16.msra.mxu0 %v464
  %823 = vmatprep.subr.bf16.mxu0 %v489
  %824 = vmatpush1.bf16.msra.mxu0 %v488
  %825 = vmatprep.subr.bf16.mxu0 0
  %826 = vmatpush1.bf16.msra.mxu0 0
  %827 = vmatprep.subr.bf16.mxu0 0
  %828 = vmatpush1.bf16.msra.mxu0 0
  %829 = vmatprep.subr.bf16.mxu0 0
  %830 = vmatpush1.bf16.msra.mxu0 0
  %831 = vmatprep.subr.bf16.mxu0 0
  %832 = vmatpush1.bf16.msra.mxu0 0
  %833 = vmatprep.subr.bf16.mxu0 0
  %834 = vmatpush1.bf16.msra.mxu0 0
  %835 = vmatprep.subr.bf16.mxu0 0
  %836 = vmatpush1.bf16.msra.mxu0 0
  %837 = vmatprep.subr.bf16.mxu0 0
  %838 = vmatpush1.bf16.msra.mxu0 0
  %839 = vmatprep.subr.bf16.mxu0 0
  %840 = vmatpush1.bf16.msra.mxu0 0
  %841 = vmatprep.subr.bf16.mxu0 0
  %842 = vmatpush1.bf16.msra.mxu0 0
  %843 = vmatprep.subr.bf16.mxu0 0
  %844 = vmatpush1.bf16.msra.mxu0 0
  %845 = vmatprep.subr.bf16.mxu0 0
  %846 = vmatpush1.bf16.msra.mxu0 0
  %847 = vmatprep.subr.bf16.mxu0 0
  %848 = vmatpush1.bf16.msra.mxu0 0
  %849 = vmatprep.mubr.bf16.mxu0 0
  %850 = vmatmul.mubr.bf16.gmra.mrb[0].mxu0 %v600
  %v851 = vpop.f32.mrb[0].mxu0
  %v852 = vadd.f32 0.0, %v851
  %v853 = vpop.f32.mrb[0].mxu0
  %v854 = vadd.f32 0.0, %v853
  %v855 = vpop.f32.mrb[0].mxu0
  %v856 = vadd.f32 0.0, %v855
  %v857 = vpop.f32.mrb[0].mxu0
  %v858 = vadd.f32 0.0, %v857
  %859 = vdwg.mxu0
  %860 = vmatprep.subr.bf16.mxu0 %v419
  %861 = vmatpush1.bf16.msra.mxu0 %v418
  %862 = vmatprep.subr.bf16.mxu0 %v443
  %863 = vmatpush1.bf16.msra.mxu0 %v442
  %864 = vmatprep.subr.bf16.mxu0 %v467
  %865 = vmatpush1.bf16.msra.mxu0 %v466
  %866 = vmatprep.subr.bf16.mxu0 %v491
  %867 = vmatpush1.bf16.msra.mxu0 %v490
  %868 = vmatprep.subr.bf16.mxu0 0
  %869 = vmatpush1.bf16.msra.mxu0 0
  %870 = vmatprep.subr.bf16.mxu0 0
  %871 = vmatpush1.bf16.msra.mxu0 0
  %872 = vmatprep.subr.bf16.mxu0 0
  %873 = vmatpush1.bf16.msra.mxu0 0
  %874 = vmatprep.subr.bf16.mxu0 0
  %875 = vmatpush1.bf16.msra.mxu0 0
  %876 = vmatprep.subr.bf16.mxu0 0
  %877 = vmatpush1.bf16.msra.mxu0 0
  %878 = vmatprep.subr.bf16.mxu0 0
  %879 = vmatpush1.bf16.msra.mxu0 0
  %880 = vmatprep.subr.bf16.mxu0 0
  %881 = vmatpush1.bf16.msra.mxu0 0
  %882 = vmatprep.subr.bf16.mxu0 0
  %883 = vmatpush1.bf16.msra.mxu0 0
  %884 = vmatprep.subr.bf16.mxu0 0
  %885 = vmatpush1.bf16.msra.mxu0 0
  %886 = vmatprep.subr.bf16.mxu0 0
  %887 = vmatpush1.bf16.msra.mxu0 0
  %888 = vmatprep.subr.bf16.mxu0 0
  %889 = vmatpush1.bf16.msra.mxu0 0
  %890 = vmatprep.subr.bf16.mxu0 0
  %891 = vmatpush1.bf16.msra.mxu0 0
  %892 = vmatprep.mubr.bf16.mxu0 0
  %893 = vmatmul.mubr.bf16.gmra.mrb[0].mxu0 %v600
  %v894 = vpop.f32.mrb[0].mxu0
  %v895 = vadd.f32 0.0, %v894
  %v896 = vpop.f32.mrb[0].mxu0
  %v897 = vadd.f32 0.0, %v896
  %v898 = vpop.f32.mrb[0].mxu0
  %v899 = vadd.f32 0.0, %v898
  %v900 = vpop.f32.mrb[0].mxu0
  %v901 = vadd.f32 0.0, %v900
  %902 = vdwg.mxu0
  %903 = vmatprep.subr.bf16.mxu0 %v421
  %904 = vmatpush1.bf16.msra.mxu0 %v420
  %905 = vmatprep.subr.bf16.mxu0 %v445
  %906 = vmatpush1.bf16.msra.mxu0 %v444
  %907 = vmatprep.subr.bf16.mxu0 %v469
  %908 = vmatpush1.bf16.msra.mxu0 %v468
  %909 = vmatprep.subr.bf16.mxu0 %v493
  %910 = vmatpush1.bf16.msra.mxu0 %v492
  %911 = vmatprep.subr.bf16.mxu0 0
  %912 = vmatpush1.bf16.msra.mxu0 0
  %913 = vmatprep.subr.bf16.mxu0 0
  %914 = vmatpush1.bf16.msra.mxu0 0
  %915 = vmatprep.subr.bf16.mxu0 0
  %916 = vmatpush1.bf16.msra.mxu0 0
  %917 = vmatprep.subr.bf16.mxu0 0
  %918 = vmatpush1.bf16.msra.mxu0 0
  %919 = vmatprep.subr.bf16.mxu0 0
  %920 = vmatpush1.bf16.msra.mxu0 0
  %921 = vmatprep.subr.bf16.mxu0 0
  %922 = vmatpush1.bf16.msra.mxu0 0
  %923 = vmatprep.subr.bf16.mxu0 0
  %924 = vmatpush1.bf16.msra.mxu0 0
  %925 = vmatprep.subr.bf16.mxu0 0
  %926 = vmatpush1.bf16.msra.mxu0 0
  %927 = vmatprep.subr.bf16.mxu0 0
  %928 = vmatpush1.bf16.msra.mxu0 0
  %929 = vmatprep.subr.bf16.mxu0 0
  %930 = vmatpush1.bf16.msra.mxu0 0
  %931 = vmatprep.subr.bf16.mxu0 0
  %932 = vmatpush1.bf16.msra.mxu0 0
  %933 = vmatprep.subr.bf16.mxu0 0
  %934 = vmatpush1.bf16.msra.mxu0 0
  %935 = vmatprep.mubr.bf16.mxu0 0
  %936 = vmatmul.mubr.bf16.gmra.mrb[0].mxu0 %v600
  %v937 = vpop.f32.mrb[0].mxu0
  %v938 = vadd.f32 0.0, %v937
  %v939 = vpop.f32.mrb[0].mxu0
  %v940 = vadd.f32 0.0, %v939
  %v941 = vpop.f32.mrb[0].mxu0
  %v942 = vadd.f32 0.0, %v941
  %v943 = vpop.f32.mrb[0].mxu0
  %v944 = vadd.f32 0.0, %v943
  %945 = vdwg.mxu0
  %946 = vmatprep.subr.bf16.mxu0 %v423
  %947 = vmatpush1.bf16.msra.mxu0 %v422
  %948 = vmatprep.subr.bf16.mxu0 %v447
  %949 = vmatpush1.bf16.msra.mxu0 %v446
  %950 = vmatprep.subr.bf16.mxu0 %v471
  %951 = vmatpush1.bf16.msra.mxu0 %v470
  %952 = vmatprep.subr.bf16.mxu0 %v495
  %953 = vmatpush1.bf16.msra.mxu0 %v494
  %954 = vmatprep.subr.bf16.mxu0 0
  %955 = vmatpush1.bf16.msra.mxu0 0
  %956 = vmatprep.subr.bf16.mxu0 0
  %957 = vmatpush1.bf16.msra.mxu0 0
  %958 = vmatprep.subr.bf16.mxu0 0
  %959 = vmatpush1.bf16.msra.mxu0 0
  %960 = vmatprep.subr.bf16.mxu0 0
  %961 = vmatpush1.bf16.msra.mxu0 0
  %962 = vmatprep.subr.bf16.mxu0 0
  %963 = vmatpush1.bf16.msra.mxu0 0
  %964 = vmatprep.subr.bf16.mxu0 0
  %965 = vmatpush1.bf16.msra.mxu0 0
  %966 = vmatprep.subr.bf16.mxu0 0
  %967 = vmatpush1.bf16.msra.mxu0 0
  %968 = vmatprep.subr.bf16.mxu0 0
  %969 = vmatpush1.bf16.msra.mxu0 0
  %970 = vmatprep.subr.bf16.mxu0 0
  %971 = vmatpush1.bf16.msra.mxu0 0
  %972 = vmatprep.subr.bf16.mxu0 0
  %973 = vmatpush1.bf16.msra.mxu0 0
  %974 = vmatprep.subr.bf16.mxu0 0
  %975 = vmatpush1.bf16.msra.mxu0 0
  %976 = vmatprep.subr.bf16.mxu0 0
  %977 = vmatpush1.bf16.msra.mxu0 0
  %978 = vmatprep.mubr.bf16.mxu0 0
  %979 = vmatmul.mubr.bf16.gmra.mrb[0].mxu0 %v600
  %v980 = vpop.f32.mrb[0].mxu0
  %v981 = vadd.f32 0.0, %v980
  %v982 = vpop.f32.mrb[0].mxu0
  %v983 = vadd.f32 0.0, %v982
  %v984 = vpop.f32.mrb[0].mxu0
  %v985 = vadd.f32 0.0, %v984
  %v986 = vpop.f32.mrb[0].mxu0
  %v987 = vadd.f32 0.0, %v986
  %988 = vdwg.mxu0
  %989 = vmatprep.subr.bf16.mxu0 %v425
  %990 = vmatpush1.bf16.msra.mxu0 %v424
  %991 = vmatprep.subr.bf16.mxu0 %v449
  %992 = vmatpush1.bf16.msra.mxu0 %v448
  %993 = vmatprep.subr.bf16.mxu0 %v473
  %994 = vmatpush1.bf16.msra.mxu0 %v472
  %995 = vmatprep.subr.bf16.mxu0 %v497
  %996 = vmatpush1.bf16.msra.mxu0 %v496
  %997 = vmatprep.subr.bf16.mxu0 0
  %998 = vmatpush1.bf16.msra.mxu0 0
  %999 = vmatprep.subr.bf16.mxu0 0
  %1000 = vmatpush1.bf16.msra.mxu0 0
  %1001 = vmatprep.subr.bf16.mxu0 0
  %1002 = vmatpush1.bf16.msra.mxu0 0
  %1003 = vmatprep.subr.bf16.mxu0 0
  %1004 = vmatpush1.bf16.msra.mxu0 0
  %1005 = vmatprep.subr.bf16.mxu0 0
  %1006 = vmatpush1.bf16.msra.mxu0 0
  %1007 = vmatprep.subr.bf16.mxu0 0
  %1008 = vmatpush1.bf16.msra.mxu0 0
  %1009 = vmatprep.subr.bf16.mxu0 0
  %1010 = vmatpush1.bf16.msra.mxu0 0
  %1011 = vmatprep.subr.bf16.mxu0 0
  %1012 = vmatpush1.bf16.msra.mxu0 0
  %1013 = vmatprep.subr.bf16.mxu0 0
  %1014 = vmatpush1.bf16.msra.mxu0 0
  %1015 = vmatprep.subr.bf16.mxu0 0
  %1016 = vmatpush1.bf16.msra.mxu0 0
  %1017 = vmatprep.subr.bf16.mxu0 0
  %1018 = vmatpush1.bf16.msra.mxu0 0
  %1019 = vmatprep.subr.bf16.mxu0 0
  %1020 = vmatpush1.bf16.msra.mxu0 0
  %1021 = vmatprep.mubr.bf16.mxu0 0
  %1022 = vmatmul.mubr.bf16.gmra.mrb[0].mxu0 %v600
  %v1023 = vpop.f32.mrb[0].mxu0
  %v1024 = vadd.f32 0.0, %v1023
  %v1025 = vpop.f32.mrb[0].mxu0
  %v1026 = vadd.f32 0.0, %v1025
  %v1027 = vpop.f32.mrb[0].mxu0
  %v1028 = vadd.f32 0.0, %v1027
  %v1029 = vpop.f32.mrb[0].mxu0
  %v1030 = vadd.f32 0.0, %v1029
  %1031 = vdwg.mxu0
  %1032 = vmatprep.subr.bf16.mxu0 %v427
  %1033 = vmatpush1.bf16.msra.mxu0 %v426
  %1034 = vmatprep.subr.bf16.mxu0 %v451
  %1035 = vmatpush1.bf16.msra.mxu0 %v450
  %1036 = vmatprep.subr.bf16.mxu0 %v475
  %1037 = vmatpush1.bf16.msra.mxu0 %v474
  %1038 = vmatprep.subr.bf16.mxu0 %v499
  %1039 = vmatpush1.bf16.msra.mxu0 %v498
  %1040 = vmatprep.subr.bf16.mxu0 0
  %1041 = vmatpush1.bf16.msra.mxu0 0
  %1042 = vmatprep.subr.bf16.mxu0 0
  %1043 = vmatpush1.bf16.msra.mxu0 0
  %1044 = vmatprep.subr.bf16.mxu0 0
  %1045 = vmatpush1.bf16.msra.mxu0 0
  %1046 = vmatprep.subr.bf16.mxu0 0
  %1047 = vmatpush1.bf16.msra.mxu0 0
  %1048 = vmatprep.subr.bf16.mxu0 0
  %1049 = vmatpush1.bf16.msra.mxu0 0
  %1050 = vmatprep.subr.bf16.mxu0 0
  %1051 = vmatpush1.bf16.msra.mxu0 0
  %1052 = vmatprep.subr.bf16.mxu0 0
  %1053 = vmatpush1.bf16.msra.mxu0 0
  %1054 = vmatprep.subr.bf16.mxu0 0
  %1055 = vmatpush1.bf16.msra.mxu0 0
  %1056 = vmatprep.subr.bf16.mxu0 0
  %1057 = vmatpush1.bf16.msra.mxu0 0
  %1058 = vmatprep.subr.bf16.mxu0 0
  %1059 = vmatpush1.bf16.msra.mxu0 0
  %1060 = vmatprep.subr.bf16.mxu0 0
  %1061 = vmatpush1.bf16.msra.mxu0 0
  %1062 = vmatprep.subr.bf16.mxu0 0
  %1063 = vmatpush1.bf16.msra.mxu0 0
  %1064 = vmatprep.mubr.bf16.mxu0 0
  %1065 = vmatmul.mubr.bf16.gmra.mrb[0].mxu0 %v600
  %v1066 = vpop.f32.mrb[0].mxu0
  %v1067 = vadd.f32 0.0, %v1066
  %v1068 = vpop.f32.mrb[0].mxu0
  %v1069 = vadd.f32 0.0, %v1068
  %v1070 = vpop.f32.mrb[0].mxu0
  %v1071 = vadd.f32 0.0, %v1070
  %v1072 = vpop.f32.mrb[0].mxu0
  %v1073 = vadd.f32 0.0, %v1072
  %1074 = vdwg.mxu0
  %1075 = vmatprep.subr.bf16.mxu0 %v429
  %1076 = vmatpush1.bf16.msra.mxu0 %v428
  %1077 = vmatprep.subr.bf16.mxu0 %v453
  %1078 = vmatpush1.bf16.msra.mxu0 %v452
  %1079 = vmatprep.subr.bf16.mxu0 %v477
  %1080 = vmatpush1.bf16.msra.mxu0 %v476
  %1081 = vmatprep.subr.bf16.mxu0 %v501
  %1082 = vmatpush1.bf16.msra.mxu0 %v500
  %1083 = vmatprep.subr.bf16.mxu0 0
  %1084 = vmatpush1.bf16.msra.mxu0 0
  %1085 = vmatprep.subr.bf16.mxu0 0
  %1086 = vmatpush1.bf16.msra.mxu0 0
  %1087 = vmatprep.subr.bf16.mxu0 0
  %1088 = vmatpush1.bf16.msra.mxu0 0
  %1089 = vmatprep.subr.bf16.mxu0 0
  %1090 = vmatpush1.bf16.msra.mxu0 0
  %1091 = vmatprep.subr.bf16.mxu0 0
  %1092 = vmatpush1.bf16.msra.mxu0 0
  %1093 = vmatprep.subr.bf16.mxu0 0
  %1094 = vmatpush1.bf16.msra.mxu0 0
  %1095 = vmatprep.subr.bf16.mxu0 0
  %1096 = vmatpush1.bf16.msra.mxu0 0
  %1097 = vmatprep.subr.bf16.mxu0 0
  %1098 = vmatpush1.bf16.msra.mxu0 0
  %1099 = vmatprep.subr.bf16.mxu0 0
  %1100 = vmatpush1.bf16.msra.mxu0 0
  %1101 = vmatprep.subr.bf16.mxu0 0
  %1102 = vmatpush1.bf16.msra.mxu0 0
  %1103 = vmatprep.subr.bf16.mxu0 0
  %1104 = vmatpush1.bf16.msra.mxu0 0
  %1105 = vmatprep.subr.bf16.mxu0 0
  %1106 = vmatpush1.bf16.msra.mxu0 0
  %1107 = vmatprep.mubr.bf16.mxu0 0
  %1108 = vmatmul.mubr.bf16.gmra.mrb[0].mxu0 %v600
  %v1109 = vpop.f32.mrb[0].mxu0
  %v1110 = vadd.f32 0.0, %v1109
  %v1111 = vpop.f32.mrb[0].mxu0
  %v1112 = vadd.f32 0.0, %v1111
  %v1113 = vpop.f32.mrb[0].mxu0
  %v1114 = vadd.f32 0.0, %v1113
  %v1115 = vpop.f32.mrb[0].mxu0
  %v1116 = vadd.f32 0.0, %v1115
  %1117 = vdwg.mxu0
  %v1118 = vadd.f32 %v637, %v639
  %v1119 = vadd.f32 %v1118, %v680
  %v1120 = vadd.f32 %v1119, %v682
  %v1121 = vadd.f32 %v1120, %v723
  %v1122 = vadd.f32 %v1121, %v725
  %v1123 = vadd.f32 %v1122, %v766
  %v1124 = vadd.f32 %v1123, %v768
  %v1125 = vadd.f32 %v1124, %v809
  %v1126 = vadd.f32 %v1125, %v811
  %v1127 = vadd.f32 %v1126, %v852
  %v1128 = vadd.f32 %v1127, %v854
  %v1129 = vadd.f32 %v1128, %v895
  %v1130 = vadd.f32 %v1129, %v897
  %v1131 = vadd.f32 %v1130, %v938
  %v1132 = vadd.f32 %v1131, %v940
  %v1133 = vadd.f32 %v1132, %v981
  %v1134 = vadd.f32 %v1133, %v983
  %v1135 = vadd.f32 %v1134, %v1024
  %v1136 = vadd.f32 %v1135, %v1026
  %v1137 = vadd.f32 %v1136, %v1067
  %v1138 = vadd.f32 %v1137, %v1069
  %v1139 = vadd.f32 %v1138, %v1110
  %vm1140 = vcmask 457728
  %v1141 = vsel %vm1140, %v1112, 0.0
  %v1142 = vadd.f32 %v1139, %v1141
  %1143 = vadd.xlane.f32.xlu0 %v1142
  %v1144 = vpop.xlane.xlu0 %1143
  %v1145 = vadd.f32 %v641, %v643
  %v1146 = vadd.f32 %v1145, %v684
  %v1147 = vadd.f32 %v1146, %v686
  %v1148 = vadd.f32 %v1147, %v727
  %v1149 = vadd.f32 %v1148, %v729
  %v1150 = vadd.f32 %v1149, %v770
  %v1151 = vadd.f32 %v1150, %v772
  %v1152 = vadd.f32 %v1151, %v813
  %v1153 = vadd.f32 %v1152, %v815
  %v1154 = vadd.f32 %v1153, %v856
  %v1155 = vadd.f32 %v1154, %v858
  %v1156 = vadd.f32 %v1155, %v899
  %v1157 = vadd.f32 %v1156, %v901
  %v1158 = vadd.f32 %v1157, %v942
  %v1159 = vadd.f32 %v1158, %v944
  %v1160 = vadd.f32 %v1159, %v985
  %v1161 = vadd.f32 %v1160, %v987
  %v1162 = vadd.f32 %v1161, %v1028
  %v1163 = vadd.f32 %v1162, %v1030
  %v1164 = vadd.f32 %v1163, %v1071
  %v1165 = vadd.f32 %v1164, %v1073
  %v1166 = vadd.f32 %v1165, %v1114
  %v1167 = vsel %vm1140, %v1116, 0.0
  %v1168 = vadd.f32 %v1166, %v1167
  %1169 = vadd.xlane.f32.xlu0 %v1168
  %v1170 = vpop.xlane.xlu0 %1169
  %v1171 = vrcp.pop 3000.0
  %v1172 = vmul.f32 %v1144, %v1171
  %v1173 = vmul.f32 %v1170, %v1171
  %v1174 = vsub.f32 %v637, %v1172
  %v1175 = vsub.f32 %v639, %v1172
  %v1176 = vsub.f32 %v680, %v1172
  %v1177 = vsub.f32 %v682, %v1172
  %v1178 = vsub.f32 %v723, %v1172
  %v1179 = vsub.f32 %v725, %v1172
  %v1180 = vsub.f32 %v766, %v1172
  %v1181 = vsub.f32 %v768, %v1172
  %v1182 = vsub.f32 %v809, %v1172
  %v1183 = vsub.f32 %v811, %v1172
  %v1184 = vsub.f32 %v852, %v1172
  %v1185 = vsub.f32 %v854, %v1172
  %v1186 = vsub.f32 %v895, %v1172
  %v1187 = vsub.f32 %v897, %v1172
  %v1188 = vsub.f32 %v938, %v1172
  %v1189 = vsub.f32 %v940, %v1172
  %v1190 = vsub.f32 %v981, %v1172
  %v1191 = vsub.f32 %v983, %v1172
  %v1192 = vsub.f32 %v1024, %v1172
  %v1193 = vsub.f32 %v1026, %v1172
  %v1194 = vsub.f32 %v1067, %v1172
  %v1195 = vsub.f32 %v1069, %v1172
  %v1196 = vsub.f32 %v1110, %v1172
  %v1197 = vsub.f32 %v1112, %v1172
  %v1198 = vsub.f32 %v641, %v1173
  %v1199 = vsub.f32 %v643, %v1173
  %v1200 = vsub.f32 %v684, %v1173
  %v1201 = vsub.f32 %v686, %v1173
  %v1202 = vsub.f32 %v727, %v1173
  %v1203 = vsub.f32 %v729, %v1173
  %v1204 = vsub.f32 %v770, %v1173
  %v1205 = vsub.f32 %v772, %v1173
  %v1206 = vsub.f32 %v813, %v1173
  %v1207 = vsub.f32 %v815, %v1173
  %v1208 = vsub.f32 %v856, %v1173
  %v1209 = vsub.f32 %v858, %v1173
  %v1210 = vsub.f32 %v899, %v1173
  %v1211 = vsub.f32 %v901, %v1173
  %v1212 = vsub.f32 %v942, %v1173
  %v1213 = vsub.f32 %v944, %v1173
  %v1214 = vsub.f32 %v985, %v1173
  %v1215 = vsub.f32 %v987, %v1173
  %v1216 = vsub.f32 %v1028, %v1173
  %v1217 = vsub.f32 %v1030, %v1173
  %v1218 = vsub.f32 %v1071, %v1173
  %v1219 = vsub.f32 %v1073, %v1173
  %v1220 = vsub.f32 %v1114, %v1173
  %v1221 = vsub.f32 %v1116, %v1173
  %v1222 = vmul.f32 %v1174, %v1174
  %v1223 = vmul.f32 %v1175, %v1175
  %v1224 = vmul.f32 %v1176, %v1176
  %v1225 = vmul.f32 %v1177, %v1177
  %v1226 = vmul.f32 %v1178, %v1178
  %v1227 = vmul.f32 %v1179, %v1179
  %v1228 = vmul.f32 %v1180, %v1180
  %v1229 = vmul.f32 %v1181, %v1181
  %v1230 = vmul.f32 %v1182, %v1182
  %v1231 = vmul.f32 %v1183, %v1183
  %v1232 = vmul.f32 %v1184, %v1184
  %v1233 = vmul.f32 %v1185, %v1185
  %v1234 = vmul.f32 %v1186, %v1186
  %v1235 = vmul.f32 %v1187, %v1187
  %v1236 = vmul.f32 %v1188, %v1188
  %v1237 = vmul.f32 %v1189, %v1189
  %v1238 = vmul.f32 %v1190, %v1190
  %v1239 = vmul.f32 %v1191, %v1191
  %v1240 = vmul.f32 %v1192, %v1192
  %v1241 = vmul.f32 %v1193, %v1193
  %v1242 = vmul.f32 %v1194, %v1194
  %v1243 = vmul.f32 %v1195, %v1195
  %v1244 = vmul.f32 %v1196, %v1196
  %v1245 = vmul.f32 %v1197, %v1197
  %v1246 = vmul.f32 %v1198, %v1198
  %v1247 = vmul.f32 %v1199, %v1199
  %v1248 = vmul.f32 %v1200, %v1200
  %v1249 = vmul.f32 %v1201, %v1201
  %v1250 = vmul.f32 %v1202, %v1202
  %v1251 = vmul.f32 %v1203, %v1203
  %v1252 = vmul.f32 %v1204, %v1204
  %v1253 = vmul.f32 %v1205, %v1205
  %v1254 = vmul.f32 %v1206, %v1206
  %v1255 = vmul.f32 %v1207, %v1207
  %v1256 = vmul.f32 %v1208, %v1208
  %v1257 = vmul.f32 %v1209, %v1209
  %v1258 = vmul.f32 %v1210, %v1210
  %v1259 = vmul.f32 %v1211, %v1211
  %v1260 = vmul.f32 %v1212, %v1212
  %v1261 = vmul.f32 %v1213, %v1213
  %v1262 = vmul.f32 %v1214, %v1214
  %v1263 = vmul.f32 %v1215, %v1215
  %v1264 = vmul.f32 %v1216, %v1216
  %v1265 = vmul.f32 %v1217, %v1217
  %v1266 = vmul.f32 %v1218, %v1218
  %v1267 = vmul.f32 %v1219, %v1219
  %v1268 = vmul.f32 %v1220, %v1220
  %v1269 = vmul.f32 %v1221, %v1221
  %v1270 = vadd.f32 %v1222, %v1223
  %v1271 = vadd.f32 %v1270, %v1224
  %v1272 = vadd.f32 %v1271, %v1225
  %v1273 = vadd.f32 %v1272, %v1226
  %v1274 = vadd.f32 %v1273, %v1227
  %v1275 = vadd.f32 %v1274, %v1228
  %v1276 = vadd.f32 %v1275, %v1229
  %v1277 = vadd.f32 %v1276, %v1230
  %v1278 = vadd.f32 %v1277, %v1231
  %v1279 = vadd.f32 %v1278, %v1232
  %v1280 = vadd.f32 %v1279, %v1233
  %v1281 = vadd.f32 %v1280, %v1234
  %v1282 = vadd.f32 %v1281, %v1235
  %v1283 = vadd.f32 %v1282, %v1236
  %v1284 = vadd.f32 %v1283, %v1237
  %v1285 = vadd.f32 %v1284, %v1238
  %v1286 = vadd.f32 %v1285, %v1239
  %v1287 = vadd.f32 %v1286, %v1240
  %v1288 = vadd.f32 %v1287, %v1241
  %v1289 = vadd.f32 %v1288, %v1242
  %v1290 = vadd.f32 %v1289, %v1243
  %v1291 = vadd.f32 %v1290, %v1244
  %v1292 = vsel %vm1140, %v1245, 0.0
  %v1293 = vadd.f32 %v1291, %v1292
  %1294 = vadd.xlane.f32.xlu0 %v1293
  %v1295 = vpop.xlane.xlu0 %1294
  %v1296 = vadd.f32 %v1246, %v1247
  %v1297 = vadd.f32 %v1296, %v1248
  %v1298 = vadd.f32 %v1297, %v1249
  %v1299 = vadd.f32 %v1298, %v1250
  %v1300 = vadd.f32 %v1299, %v1251
  %v1301 = vadd.f32 %v1300, %v1252
  %v1302 = vadd.f32 %v1301, %v1253
  %v1303 = vadd.f32 %v1302, %v1254
  %v1304 = vadd.f32 %v1303, %v1255
  %v1305 = vadd.f32 %v1304, %v1256
  %v1306 = vadd.f32 %v1305, %v1257
  %v1307 = vadd.f32 %v1306, %v1258
  %v1308 = vadd.f32 %v1307, %v1259
  %v1309 = vadd.f32 %v1308, %v1260
  %v1310 = vadd.f32 %v1309, %v1261
  %v1311 = vadd.f32 %v1310, %v1262
  %v1312 = vadd.f32 %v1311, %v1263
  %v1313 = vadd.f32 %v1312, %v1264
  %v1314 = vadd.f32 %v1313, %v1265
  %v1315 = vadd.f32 %v1314, %v1266
  %v1316 = vadd.f32 %v1315, %v1267
  %v1317 = vadd.f32 %v1316, %v1268
  %v1318 = vsel %vm1140, %v1269, 0.0
  %v1319 = vadd.f32 %v1317, %v1318
  %1320 = vadd.xlane.f32.xlu0 %v1319
  %v1321 = vpop.xlane.xlu0 %1320
  %v1322 = vmul.f32 %v1295, %v1171
  %v1323 = vmul.f32 %v1321, %v1171
  %v1324 = vadd.f32 %v1322, 1e-05
  %v1325 = vadd.f32 %v1323, 1e-05
  %v1326 = vrsqrt.pop %v1324
  %v1327 = vrsqrt.pop %v1325
  %v1328 = vmul.f32 %v1174, %v1326
  %v1329 = vmul.f32 %v1175, %v1326
  %v1330 = vmul.f32 %v1176, %v1326
  %v1331 = vmul.f32 %v1177, %v1326
  %v1332 = vmul.f32 %v1178, %v1326
  %v1333 = vmul.f32 %v1179, %v1326
  %v1334 = vmul.f32 %v1180, %v1326
  %v1335 = vmul.f32 %v1181, %v1326
  %v1336 = vmul.f32 %v1182, %v1326
  %v1337 = vmul.f32 %v1183, %v1326
  %v1338 = vmul.f32 %v1184, %v1326
  %v1339 = vmul.f32 %v1185, %v1326
  %v1340 = vmul.f32 %v1186, %v1326
  %v1341 = vmul.f32 %v1187, %v1326
  %v1342 = vmul.f32 %v1188, %v1326
  %v1343 = vmul.f32 %v1189, %v1326
  %v1344 = vmul.f32 %v1190, %v1326
  %v1345 = vmul.f32 %v1191, %v1326
  %v1346 = vmul.f32 %v1192, %v1326
  %v1347 = vmul.f32 %v1193, %v1326
  %v1348 = vmul.f32 %v1194, %v1326
  %v1349 = vmul.f32 %v1195, %v1326
  %v1350 = vmul.f32 %v1196, %v1326
  %v1351 = vmul.f32 %v1197, %v1326
  %v1352 = vmul.f32 %v1198, %v1327
  %v1353 = vmul.f32 %v1199, %v1327
  %v1354 = vmul.f32 %v1200, %v1327
  %v1355 = vmul.f32 %v1201, %v1327
  %v1356 = vmul.f32 %v1202, %v1327
  %v1357 = vmul.f32 %v1203, %v1327
  %v1358 = vmul.f32 %v1204, %v1327
  %v1359 = vmul.f32 %v1205, %v1327
  %v1360 = vmul.f32 %v1206, %v1327
  %v1361 = vmul.f32 %v1207, %v1327
  %v1362 = vmul.f32 %v1208, %v1327
  %v1363 = vmul.f32 %v1209, %v1327
  %v1364 = vmul.f32 %v1210, %v1327
  %v1365 = vmul.f32 %v1211, %v1327
  %v1366 = vmul.f32 %v1212, %v1327
  %v1367 = vmul.f32 %v1213, %v1327
  %v1368 = vmul.f32 %v1214, %v1327
  %v1369 = vmul.f32 %v1215, %v1327
  %v1370 = vmul.f32 %v1216, %v1327
  %v1371 = vmul.f32 %v1217, %v1327
  %v1372 = vmul.f32 %v1218, %v1327
  %v1373 = vmul.f32 %v1219, %v1327
  %v1374 = vmul.f32 %v1220, %v1327
  %v1375 = vmul.f32 %v1221, %v1327
  %v1376 = vld [vmem:[%s2] sm:$0xff]
  %v1377 = vld [vmem:[%s2 + $0x8] sm:$0xff]
  %1379 = vset.pattern.permute.xlu0 0
  %1380 = vperm.xlu0 %1379, %v1376
  %v1381 = vpop.permute.xlu0 %1380
  %1384 = vset.pattern.permute.xlu0 0
  %1385 = vperm.xlu0 %1384, %v1377
  %v1386 = vpop.permute.xlu0 %1385
  %v1388 = vmul.f32 %v1328, %v1381
  %v1389 = vmul.f32 %v1329, %v1381
  %v1390 = vmul.f32 %v1330, %v1381
  %v1391 = vmul.f32 %v1331, %v1381
  %v1392 = vmul.f32 %v1332, %v1381
  %v1393 = vmul.f32 %v1333, %v1381
  %v1394 = vmul.f32 %v1334, %v1381
  %v1395 = vmul.f32 %v1335, %v1381
  %v1396 = vmul.f32 %v1336, %v1381
  %v1397 = vmul.f32 %v1337, %v1381
  %v1398 = vmul.f32 %v1338, %v1381
  %v1399 = vmul.f32 %v1339, %v1381
  %v1400 = vmul.f32 %v1340, %v1381
  %v1401 = vmul.f32 %v1341, %v1381
  %v1402 = vmul.f32 %v1342, %v1381
  %v1403 = vmul.f32 %v1343, %v1381
  %v1404 = vmul.f32 %v1344, %v1381
  %v1405 = vmul.f32 %v1345, %v1381
  %v1406 = vmul.f32 %v1346, %v1381
  %v1407 = vmul.f32 %v1347, %v1381
  %v1408 = vmul.f32 %v1348, %v1381
  %v1409 = vmul.f32 %v1349, %v1381
  %v1410 = vmul.f32 %v1350, %v1381
  %v1411 = vmul.f32 %v1351, %v1381
  %v1412 = vmul.f32 %v1352, %v1386
  %v1413 = vmul.f32 %v1353, %v1386
  %v1414 = vmul.f32 %v1354, %v1386
  %v1415 = vmul.f32 %v1355, %v1386
  %v1416 = vmul.f32 %v1356, %v1386
  %v1417 = vmul.f32 %v1357, %v1386
  %v1418 = vmul.f32 %v1358, %v1386
  %v1419 = vmul.f32 %v1359, %v1386
  %v1420 = vmul.f32 %v1360, %v1386
  %v1421 = vmul.f32 %v1361, %v1386
  %v1422 = vmul.f32 %v1362, %v1386
  %v1423 = vmul.f32 %v1363, %v1386
  %v1424 = vmul.f32 %v1364, %v1386
  %v1425 = vmul.f32 %v1365, %v1386
  %v1426 = vmul.f32 %v1366, %v1386
  %v1427 = vmul.f32 %v1367, %v1386
  %v1428 = vmul.f32 %v1368, %v1386
  %v1429 = vmul.f32 %v1369, %v1386
  %v1430 = vmul.f32 %v1370, %v1386
  %v1431 = vmul.f32 %v1371, %v1386
  %v1432 = vmul.f32 %v1372, %v1386
  %v1433 = vmul.f32 %v1373, %v1386
  %v1434 = vmul.f32 %v1374, %v1386
  %v1435 = vmul.f32 %v1375, %v1386
  %1436 = vset.pattern.permute.xlu0 1
  %1437 = vperm.xlu0 %1436, %v1376
  %v1438 = vpop.permute.xlu0 %1437
  %1440 = vset.pattern.permute.xlu0 1
  %1441 = vperm.xlu0 %1440, %v1377
  %v1442 = vpop.permute.xlu0 %1441
  %v1444 = vadd.f32 %v1388, %v1438
  %v1445 = vadd.f32 %v1389, %v1438
  %v1446 = vadd.f32 %v1390, %v1438
  %v1447 = vadd.f32 %v1391, %v1438
  %v1448 = vadd.f32 %v1392, %v1438
  %v1449 = vadd.f32 %v1393, %v1438
  %v1450 = vadd.f32 %v1394, %v1438
  %v1451 = vadd.f32 %v1395, %v1438
  %v1452 = vadd.f32 %v1396, %v1438
  %v1453 = vadd.f32 %v1397, %v1438
  %v1454 = vadd.f32 %v1398, %v1438
  %v1455 = vadd.f32 %v1399, %v1438
  %v1456 = vadd.f32 %v1400, %v1438
  %v1457 = vadd.f32 %v1401, %v1438
  %v1458 = vadd.f32 %v1402, %v1438
  %v1459 = vadd.f32 %v1403, %v1438
  %v1460 = vadd.f32 %v1404, %v1438
  %v1461 = vadd.f32 %v1405, %v1438
  %v1462 = vadd.f32 %v1406, %v1438
  %v1463 = vadd.f32 %v1407, %v1438
  %v1464 = vadd.f32 %v1408, %v1438
  %v1465 = vadd.f32 %v1409, %v1438
  %v1466 = vadd.f32 %v1410, %v1438
  %v1467 = vadd.f32 %v1411, %v1438
  %v1468 = vadd.f32 %v1412, %v1442
  %v1469 = vadd.f32 %v1413, %v1442
  %v1470 = vadd.f32 %v1414, %v1442
  %v1471 = vadd.f32 %v1415, %v1442
  %v1472 = vadd.f32 %v1416, %v1442
  %v1473 = vadd.f32 %v1417, %v1442
  %v1474 = vadd.f32 %v1418, %v1442
  %v1475 = vadd.f32 %v1419, %v1442
  %v1476 = vadd.f32 %v1420, %v1442
  %v1477 = vadd.f32 %v1421, %v1442
  %v1478 = vadd.f32 %v1422, %v1442
  %v1479 = vadd.f32 %v1423, %v1442
  %v1480 = vadd.f32 %v1424, %v1442
  %v1481 = vadd.f32 %v1425, %v1442
  %v1482 = vadd.f32 %v1426, %v1442
  %v1483 = vadd.f32 %v1427, %v1442
  %v1484 = vadd.f32 %v1428, %v1442
  %v1485 = vadd.f32 %v1429, %v1442
  %v1486 = vadd.f32 %v1430, %v1442
  %v1487 = vadd.f32 %v1431, %v1442
  %v1488 = vadd.f32 %v1432, %v1442
  %v1489 = vadd.f32 %v1433, %v1442
  %v1490 = vadd.f32 %v1434, %v1442
  %v1491 = vadd.f32 %v1435, %v1442
  %v1492 = vmax.f32 %v1444, 0.0
  %v1493 = vmax.f32 %v1445, 0.0
  %v1494 = vmax.f32 %v1446, 0.0
  %v1495 = vmax.f32 %v1447, 0.0
  %v1496 = vmax.f32 %v1448, 0.0
  %v1497 = vmax.f32 %v1449, 0.0
  %v1498 = vmax.f32 %v1450, 0.0
  %v1499 = vmax.f32 %v1451, 0.0
  %v1500 = vmax.f32 %v1452, 0.0
  %v1501 = vmax.f32 %v1453, 0.0
  %v1502 = vmax.f32 %v1454, 0.0
  %v1503 = vmax.f32 %v1455, 0.0
  %v1504 = vmax.f32 %v1456, 0.0
  %v1505 = vmax.f32 %v1457, 0.0
  %v1506 = vmax.f32 %v1458, 0.0
  %v1507 = vmax.f32 %v1459, 0.0
  %v1508 = vmax.f32 %v1460, 0.0
  %v1509 = vmax.f32 %v1461, 0.0
  %v1510 = vmax.f32 %v1462, 0.0
  %v1511 = vmax.f32 %v1463, 0.0
  %v1512 = vmax.f32 %v1464, 0.0
  %v1513 = vmax.f32 %v1465, 0.0
  %v1514 = vmax.f32 %v1466, 0.0
  %v1515 = vmax.f32 %v1467, 0.0
  %v1516 = vmax.f32 %v1468, 0.0
  %v1517 = vmax.f32 %v1469, 0.0
  %v1518 = vmax.f32 %v1470, 0.0
  %v1519 = vmax.f32 %v1471, 0.0
  %v1520 = vmax.f32 %v1472, 0.0
  %v1521 = vmax.f32 %v1473, 0.0
  %v1522 = vmax.f32 %v1474, 0.0
  %v1523 = vmax.f32 %v1475, 0.0
  %v1524 = vmax.f32 %v1476, 0.0
  %v1525 = vmax.f32 %v1477, 0.0
  %v1526 = vmax.f32 %v1478, 0.0
  %v1527 = vmax.f32 %v1479, 0.0
  %v1528 = vmax.f32 %v1480, 0.0
  %v1529 = vmax.f32 %v1481, 0.0
  %v1530 = vmax.f32 %v1482, 0.0
  %v1531 = vmax.f32 %v1483, 0.0
  %v1532 = vmax.f32 %v1484, 0.0
  %v1533 = vmax.f32 %v1485, 0.0
  %v1534 = vmax.f32 %v1486, 0.0
  %v1535 = vmax.f32 %v1487, 0.0
  %v1536 = vmax.f32 %v1488, 0.0
  %v1537 = vmax.f32 %v1489, 0.0
  %v1538 = vmax.f32 %v1490, 0.0
  %v1539 = vmax.f32 %v1491, 0.0
  %v1540 = vpack.c.bf16 %v1516, %v1492
  %v1541 = vpack.c.bf16 %v1517, %v1493
  %v1542 = vpack.c.bf16 %v1518, %v1494
  %v1543 = vpack.c.bf16 %v1519, %v1495
  %v1544 = vpack.c.bf16 %v1520, %v1496
  %v1545 = vpack.c.bf16 %v1521, %v1497
  %v1546 = vpack.c.bf16 %v1522, %v1498
  %v1547 = vpack.c.bf16 %v1523, %v1499
  %v1548 = vpack.c.bf16 %v1524, %v1500
  %v1549 = vpack.c.bf16 %v1525, %v1501
  %v1550 = vpack.c.bf16 %v1526, %v1502
  %v1551 = vpack.c.bf16 %v1527, %v1503
  %v1552 = vpack.c.bf16 %v1528, %v1504
  %v1553 = vpack.c.bf16 %v1529, %v1505
  %v1554 = vpack.c.bf16 %v1530, %v1506
  %v1555 = vpack.c.bf16 %v1531, %v1507
  %v1556 = vpack.c.bf16 %v1532, %v1508
  %v1557 = vpack.c.bf16 %v1533, %v1509
  %v1558 = vpack.c.bf16 %v1534, %v1510
  %v1559 = vpack.c.bf16 %v1535, %v1511
  %v1560 = vpack.c.bf16 %v1536, %v1512
  %v1561 = vpack.c.bf16 %v1537, %v1513
  %v1562 = vpack.c.bf16 %v1538, %v1514
  %v1563 = vpack.c.bf16 %v1539, %v1515
  %v1588 = vunpack.c.l.b16 %v1540
  %v1589 = vunpack.c.l.b16 %v1541
  %v1590 = vunpack.c.l.b16 %v1542
  %v1591 = vunpack.c.l.b16 %v1543
  %v1592 = vunpack.c.l.b16 %v1544
  %v1593 = vunpack.c.l.b16 %v1545
  %v1594 = vunpack.c.l.b16 %v1546
  %v1595 = vunpack.c.l.b16 %v1547
  %v1596 = vunpack.c.l.b16 %v1548
  %v1597 = vunpack.c.l.b16 %v1549
  %v1598 = vunpack.c.l.b16 %v1550
  %v1599 = vunpack.c.l.b16 %v1551
  %v1600 = vunpack.c.l.b16 %v1552
  %v1601 = vunpack.c.l.b16 %v1553
  %v1602 = vunpack.c.l.b16 %v1554
  %v1603 = vunpack.c.l.b16 %v1555
  %v1604 = vunpack.c.l.b16 %v1556
  %v1605 = vunpack.c.l.b16 %v1557
  %v1606 = vunpack.c.l.b16 %v1558
  %v1607 = vunpack.c.l.b16 %v1559
  %v1608 = vunpack.c.l.b16 %v1560
  %v1609 = vunpack.c.l.b16 %v1561
  %v1610 = vunpack.c.l.b16 %v1562
  %v1611 = vunpack.c.l.b16 %v1563
  %v1612 = vunpack.c.h.b16 %v1540
  %v1613 = vunpack.c.h.b16 %v1541
  %v1614 = vunpack.c.h.b16 %v1542
  %v1615 = vunpack.c.h.b16 %v1543
  %v1616 = vunpack.c.h.b16 %v1544
  %v1617 = vunpack.c.h.b16 %v1545
  %v1618 = vunpack.c.h.b16 %v1546
  %v1619 = vunpack.c.h.b16 %v1547
  %v1620 = vunpack.c.h.b16 %v1548
  %v1621 = vunpack.c.h.b16 %v1549
  %v1622 = vunpack.c.h.b16 %v1550
  %v1623 = vunpack.c.h.b16 %v1551
  %v1624 = vunpack.c.h.b16 %v1552
  %v1625 = vunpack.c.h.b16 %v1553
  %v1626 = vunpack.c.h.b16 %v1554
  %v1627 = vunpack.c.h.b16 %v1555
  %v1628 = vunpack.c.h.b16 %v1556
  %v1629 = vunpack.c.h.b16 %v1557
  %v1630 = vunpack.c.h.b16 %v1558
  %v1631 = vunpack.c.h.b16 %v1559
  %v1632 = vunpack.c.h.b16 %v1560
  %v1633 = vunpack.c.h.b16 %v1561
  %v1634 = vunpack.c.h.b16 %v1562
  %v1635 = vunpack.c.h.b16 %v1563
  %v1636 = vpack.c.b16 %v1589, %v1588
  %v1637 = vpack.c.b16 %v1591, %v1590
  %v1638 = vpack.c.b16 %v1593, %v1592
  %v1639 = vpack.c.b16 %v1595, %v1594
  %v1640 = vpack.c.b16 %v1597, %v1596
  %v1641 = vpack.c.b16 %v1599, %v1598
  %v1642 = vpack.c.b16 %v1601, %v1600
  %v1643 = vpack.c.b16 %v1603, %v1602
  %v1644 = vpack.c.b16 %v1605, %v1604
  %v1645 = vpack.c.b16 %v1607, %v1606
  %v1646 = vpack.c.b16 %v1609, %v1608
  %v1647 = vpack.c.b16 %v1611, %v1610
  %v1648 = vpack.c.b16 %v1613, %v1612
  %v1649 = vpack.c.b16 %v1615, %v1614
  %v1650 = vpack.c.b16 %v1617, %v1616
  %v1651 = vpack.c.b16 %v1619, %v1618
  %v1652 = vpack.c.b16 %v1621, %v1620
  %v1653 = vpack.c.b16 %v1623, %v1622
  %v1654 = vpack.c.b16 %v1625, %v1624
  %v1655 = vpack.c.b16 %v1627, %v1626
  %v1656 = vpack.c.b16 %v1629, %v1628
  %v1657 = vpack.c.b16 %v1631, %v1630
  %v1658 = vpack.c.b16 %v1633, %v1632
  %v1659 = vpack.c.b16 %v1635, %v1634
  %1684 = vst [vmem:[%s3] sm:$0xff] %v1636
  %1685 = vst [vmem:[%s3 + $0x8] sm:$0xff] %v1637
  %1686 = vst [vmem:[%s3 + $0x10] sm:$0xff] %v1638
  %1687 = vst [vmem:[%s3 + $0x18] sm:$0xff] %v1639
  %1688 = vst [vmem:[%s3 + $0x20] sm:$0xff] %v1640
  %1689 = vst [vmem:[%s3 + $0x28] sm:$0xff] %v1641
  %1690 = vst [vmem:[%s3 + $0x30] sm:$0xff] %v1642
  %1691 = vst [vmem:[%s3 + $0x38] sm:$0xff] %v1643
  %1692 = vst [vmem:[%s3 + $0x40] sm:$0xff] %v1644
  %1693 = vst [vmem:[%s3 + $0x48] sm:$0xff] %v1645
  %1694 = vst [vmem:[%s3 + $0x50] sm:$0xff] %v1646
  %vm1695 = vcmask 1043456
  %vm1696 = vcmask 457732
  %vm1697 = vmor %vm1696, %vm1695
  %1698 = vst.msk [vmem:[%s3 + $0x58] sm:$0xff] %vm1697, %v1647
  %1699 = vst [vmem:[%s3 + $0x60] sm:$0xff] %v1648
  %1700 = vst [vmem:[%s3 + $0x68] sm:$0xff] %v1649
  %1701 = vst [vmem:[%s3 + $0x70] sm:$0xff] %v1650
  %1702 = vst [vmem:[%s3 + $0x78] sm:$0xff] %v1651
  %1703 = vst [vmem:[%s3 + $0x80] sm:$0xff] %v1652
  %1704 = vst [vmem:[%s3 + $0x88] sm:$0xff] %v1653
  %1705 = vst [vmem:[%s3 + $0x90] sm:$0xff] %v1654
  %1706 = vst [vmem:[%s3 + $0x98] sm:$0xff] %v1655
  %1707 = vst [vmem:[%s3 + $0xa0] sm:$0xff] %v1656
  %1708 = vst [vmem:[%s3 + $0xa8] sm:$0xff] %v1657
  %1709 = vst [vmem:[%s3 + $0xb0] sm:$0xff] %v1658
  %1710 = vst.msk [vmem:[%s3 + $0xb8] sm:$0xff] %vm1697, %v1659
  // Predicated region
  $region14: #{_lambda_.3} parent=0 // pred_check
    _
  $region15: #{_lambda_.3} parent=0 // pred_check_branch
    %1712 = sbr.rel (0) target = $region17
  $region16: #{_lambda_.3} parent=0 // pred_region
    _
  $region17: #{_lambda_.3} parent=0 // pred_fallthru
    _
  // Predicated region
  $region18: #{_lambda_.3} parent=0 // pred_check
    _
  $region19: #{_lambda_.3} parent=0 // pred_check_branch
    %1714 = sbr.rel (0) target = $region21
  $region20: #{_lambda_.3} parent=0 // pred_region
    _
  $region21: #{_lambda_.3} parent=0 // pred_fallthru
    _

// kernel: _lambda_.4
$region0: #{_lambda_.4}
  #allocation0 [shape = 'u32[]', space=smem, size = 0x4, offset = 0x4, fixed_abs, tag = 'smem constant byte address 0x4 - core index']
  #allocation1 [shape = 'u32[144,128]{1,0:T(1,128)}', space=vmem, size = 0x12000, scoped, tag = 'internal scratch']
  %s0 = inlined_call_operand.vmem [shape: bf16[256,750], index: 0, kind: input, shape index: {}]
  %s1 = inlined_call_operand.vmem [shape: bf16[16,256], index: 1, kind: input, shape index: {}]
  %s2 = inlined_call_operand.vmem [shape: f32[16,2], index: 2, kind: input, shape index: {}]
  %s3 = inlined_call_operand.vmem [shape: bf16[16,750], index: 3, kind: output, shape index: {}]
  %s4 = sld [smem:[#allocation0]]
  $region22: #{_lambda_.4} parent=0
    _
  %s6 = ssub.s32 1, %s4
  %s7 = scalar_select 0, %s6, %s4
  // Predicated region
  $region2: #{_lambda_.4} parent=0 // pred_check
    _
  $region3: #{_lambda_.4} parent=0 // pred_check_branch
    %9 = sbr.rel (0) target = $region5
  $region4: #{_lambda_.4} parent=0 // pred_region
    _
  $region5: #{_lambda_.4} parent=0 // pred_fallthru
    _
  // Predicated region
  $region6: #{_lambda_.4} parent=0 // pred_check
    _
  $region7: #{_lambda_.4} parent=0 // pred_check_branch
    %11 = sbr.rel (0) target = $region9
  $region8: #{_lambda_.4} parent=0 // pred_region
    _
  $region9: #{_lambda_.4} parent=0 // pred_fallthru
    _
  // Predicated region
  $region10: #{_lambda_.4} parent=0 // pred_check
    _
  $region11: #{_lambda_.4} parent=0 // pred_check_branch
    %13 = sbr.rel (0) target = $region13
  $region12: #{_lambda_.4} parent=0 // pred_region
    _
  $region13: #{_lambda_.4} parent=0 // pred_fallthru
    _
  %v14 = vld [vmem:[%s1] sm:$0xff]
  %v15 = vld [vmem:[%s1 + $0x8] sm:$0xff]
  %v16 = vld [vmem:[%s0] sm:$0xff]
  %v17 = vld [vmem:[%s0 + $0x8] sm:$0xff]
  %v18 = vld [vmem:[%s0 + $0x10] sm:$0xff]
  %v19 = vld [vmem:[%s0 + $0x18] sm:$0xff]
  %v20 = vld [vmem:[%s0 + $0x20] sm:$0xff]
  %v21 = vld [vmem:[%s0 + $0x28] sm:$0xff]
  %v22 = vld [vmem:[%s0 + $0x30] sm:$0xff]
  %v23 = vld [vmem:[%s0 + $0x38] sm:$0xff]
  %v24 = vld [vmem:[%s0 + $0x40] sm:$0xff]
  %v25 = vld [vmem:[%s0 + $0x48] sm:$0xff]
  %v26 = vld [vmem:[%s0 + $0x50] sm:$0xff]
  %v27 = vld [vmem:[%s0 + $0x58] sm:$0xff]
  %v28 = vld [vmem:[%s0 + $0x60] sm:$0xff]
  %v29 = vld [vmem:[%s0 + $0x68] sm:$0xff]
  %v30 = vld [vmem:[%s0 + $0x70] sm:$0xff]
  %v31 = vld [vmem:[%s0 + $0x78] sm:$0xff]
  %v32 = vld [vmem:[%s0 + $0x80] sm:$0xff]
  %v33 = vld [vmem:[%s0 + $0x88] sm:$0xff]
  %v34 = vld [vmem:[%s0 + $0x90] sm:$0xff]
  %v35 = vld [vmem:[%s0 + $0x98] sm:$0xff]
  %v36 = vld [vmem:[%s0 + $0xa0] sm:$0xff]
  %v37 = vld [vmem:[%s0 + $0xa8] sm:$0xff]
  %v38 = vld [vmem:[%s0 + $0xb0] sm:$0xff]
  %v39 = vld [vmem:[%s0 + $0xb8] sm:$0xff]
  %v40 = vld [vmem:[%s0 + $0xc0] sm:$0xff]
  %v41 = vld [vmem:[%s0 + $0xc8] sm:$0xff]
  %v42 = vld [vmem:[%s0 + $0xd0] sm:$0xff]
  %v43 = vld [vmem:[%s0 + $0xd8] sm:$0xff]
  %v44 = vld [vmem:[%s0 + $0xe0] sm:$0xff]
  %v45 = vld [vmem:[%s0 + $0xe8] sm:$0xff]
  %v46 = vld [vmem:[%s0 + $0xf0] sm:$0xff]
  %v47 = vld [vmem:[%s0 + $0xf8] sm:$0xff]
  %v48 = vld [vmem:[%s0 + $0x100] sm:$0xff]
  %v49 = vld [vmem:[%s0 + $0x108] sm:$0xff]
  %v50 = vld [vmem:[%s0 + $0x110] sm:$0xff]
  %v51 = vld [vmem:[%s0 + $0x118] sm:$0xff]
  %v52 = vld [vmem:[%s0 + $0x120] sm:$0xff]
  %v53 = vld [vmem:[%s0 + $0x128] sm:$0xff]
  %v54 = vld [vmem:[%s0 + $0x130] sm:$0xff]
  %v55 = vld [vmem:[%s0 + $0x138] sm:$0xff]
  %v56 = vld [vmem:[%s0 + $0x140] sm:$0xff]
  %v57 = vld [vmem:[%s0 + $0x148] sm:$0xff]
  %v58 = vld [vmem:[%s0 + $0x150] sm:$0xff]
  %v59 = vld [vmem:[%s0 + $0x158] sm:$0xff]
  %v60 = vld [vmem:[%s0 + $0x160] sm:$0xff]
  %v61 = vld [vmem:[%s0 + $0x168] sm:$0xff]
  %v62 = vld [vmem:[%s0 + $0x170] sm:$0xff]
  %v63 = vld [vmem:[%s0 + $0x178] sm:$0xff]
  %v64 = vld [vmem:[%s0 + $0x180] sm:$0xff]
  %v65 = vld [vmem:[%s0 + $0x188] sm:$0xff]
  %v66 = vld [vmem:[%s0 + $0x190] sm:$0xff]
  %v67 = vld [vmem:[%s0 + $0x198] sm:$0xff]
  %v68 = vld [vmem:[%s0 + $0x1a0] sm:$0xff]
  %v69 = vld [vmem:[%s0 + $0x1a8] sm:$0xff]
  %v70 = vld [vmem:[%s0 + $0x1b0] sm:$0xff]
  %v71 = vld [vmem:[%s0 + $0x1b8] sm:$0xff]
  %v72 = vld [vmem:[%s0 + $0x1c0] sm:$0xff]
  %v73 = vld [vmem:[%s0 + $0x1c8] sm:$0xff]
  %v74 = vld [vmem:[%s0 + $0x1d0] sm:$0xff]
  %v75 = vld [vmem:[%s0 + $0x1d8] sm:$0xff]
  %v76 = vld [vmem:[%s0 + $0x1e0] sm:$0xff]
  %v77 = vld [vmem:[%s0 + $0x1e8] sm:$0xff]
  %v78 = vld [vmem:[%s0 + $0x1f0] sm:$0xff]
  %v79 = vld [vmem:[%s0 + $0x1f8] sm:$0xff]
  %v80 = vld [vmem:[%s0 + $0x200] sm:$0xff]
  %v81 = vld [vmem:[%s0 + $0x208] sm:$0xff]
  %v82 = vld [vmem:[%s0 + $0x210] sm:$0xff]
  %v83 = vld [vmem:[%s0 + $0x218] sm:$0xff]
  %v84 = vld [vmem:[%s0 + $0x220] sm:$0xff]
  %v85 = vld [vmem:[%s0 + $0x228] sm:$0xff]
  %v86 = vld [vmem:[%s0 + $0x230] sm:$0xff]
  %v87 = vld [vmem:[%s0 + $0x238] sm:$0xff]
  %v88 = vld [vmem:[%s0 + $0x240] sm:$0xff]
  %v89 = vld [vmem:[%s0 + $0x248] sm:$0xff]
  %v90 = vld [vmem:[%s0 + $0x250] sm:$0xff]
  %v91 = vld [vmem:[%s0 + $0x258] sm:$0xff]
  %v92 = vld [vmem:[%s0 + $0x260] sm:$0xff]
  %v93 = vld [vmem:[%s0 + $0x268] sm:$0xff]
  %v94 = vld [vmem:[%s0 + $0x270] sm:$0xff]
  %v95 = vld [vmem:[%s0 + $0x278] sm:$0xff]
  %v96 = vld [vmem:[%s0 + $0x280] sm:$0xff]
  %v97 = vld [vmem:[%s0 + $0x288] sm:$0xff]
  %v98 = vld [vmem:[%s0 + $0x290] sm:$0xff]
  %v99 = vld [vmem:[%s0 + $0x298] sm:$0xff]
  %v100 = vld [vmem:[%s0 + $0x2a0] sm:$0xff]
  %v101 = vld [vmem:[%s0 + $0x2a8] sm:$0xff]
  %v102 = vld [vmem:[%s0 + $0x2b0] sm:$0xff]
  %v103 = vld [vmem:[%s0 + $0x2b8] sm:$0xff]
  %v104 = vld [vmem:[%s0 + $0x2c0] sm:$0xff]
  %v105 = vld [vmem:[%s0 + $0x2c8] sm:$0xff]
  %v106 = vld [vmem:[%s0 + $0x2d0] sm:$0xff]
  %v107 = vld [vmem:[%s0 + $0x2d8] sm:$0xff]
  %v108 = vld [vmem:[%s0 + $0x2e0] sm:$0xff]
  %v109 = vld [vmem:[%s0 + $0x2e8] sm:$0xff]
  %v110 = vld [vmem:[%s0 + $0x2f0] sm:$0xff]
  %v111 = vld [vmem:[%s0 + $0x2f8] sm:$0xff]
  %v114 = vunpack.c.l.b16 %v14
  %v115 = vunpack.c.h.b16 %v14
  %v116 = vunpack.c.l.b16 %v15
  %v117 = vunpack.c.h.b16 %v15
  %v118 = vpack.c.b16 %v116, %v114
  %v119 = vpack.c.b16 %v117, %v115
  %v218 = vunpack.c.l.b16 %v16
  %v219 = vunpack.c.h.b16 %v16
  %v220 = vunpack.c.l.b16 %v17
  %v221 = vunpack.c.h.b16 %v17
  %v222 = vunpack.c.l.b16 %v18
  %v223 = vunpack.c.h.b16 %v18
  %v224 = vunpack.c.l.b16 %v19
  %v225 = vunpack.c.h.b16 %v19
  %v226 = vunpack.c.l.b16 %v20
  %v227 = vunpack.c.h.b16 %v20
  %v228 = vunpack.c.l.b16 %v21
  %v229 = vunpack.c.h.b16 %v21
  %v230 = vunpack.c.l.b16 %v22
  %v231 = vunpack.c.h.b16 %v22
  %v232 = vunpack.c.l.b16 %v23
  %v233 = vunpack.c.h.b16 %v23
  %v234 = vunpack.c.l.b16 %v24
  %v235 = vunpack.c.h.b16 %v24
  %v236 = vunpack.c.l.b16 %v25
  %v237 = vunpack.c.h.b16 %v25
  %v238 = vunpack.c.l.b16 %v26
  %v239 = vunpack.c.h.b16 %v26
  %v240 = vunpack.c.l.b16 %v27
  %v241 = vunpack.c.h.b16 %v27
  %v242 = vunpack.c.l.b16 %v28
  %v243 = vunpack.c.h.b16 %v28
  %v244 = vunpack.c.l.b16 %v29
  %v245 = vunpack.c.h.b16 %v29
  %v246 = vunpack.c.l.b16 %v30
  %v247 = vunpack.c.h.b16 %v30
  %v248 = vunpack.c.l.b16 %v31
  %v249 = vunpack.c.h.b16 %v31
  %v250 = vunpack.c.l.b16 %v32
  %v251 = vunpack.c.h.b16 %v32
  %v252 = vunpack.c.l.b16 %v33
  %v253 = vunpack.c.h.b16 %v33
  %v254 = vunpack.c.l.b16 %v34
  %v255 = vunpack.c.h.b16 %v34
  %v256 = vunpack.c.l.b16 %v35
  %v257 = vunpack.c.h.b16 %v35
  %v258 = vunpack.c.l.b16 %v36
  %v259 = vunpack.c.h.b16 %v36
  %v260 = vunpack.c.l.b16 %v37
  %v261 = vunpack.c.h.b16 %v37
  %v262 = vunpack.c.l.b16 %v38
  %v263 = vunpack.c.h.b16 %v38
  %v264 = vunpack.c.l.b16 %v39
  %v265 = vunpack.c.h.b16 %v39
  %v266 = vunpack.c.l.b16 %v40
  %v267 = vunpack.c.h.b16 %v40
  %v268 = vunpack.c.l.b16 %v41
  %v269 = vunpack.c.h.b16 %v41
  %v270 = vunpack.c.l.b16 %v42
  %v271 = vunpack.c.h.b16 %v42
  %v272 = vunpack.c.l.b16 %v43
  %v273 = vunpack.c.h.b16 %v43
  %v274 = vunpack.c.l.b16 %v44
  %v275 = vunpack.c.h.b16 %v44
  %v276 = vunpack.c.l.b16 %v45
  %v277 = vunpack.c.h.b16 %v45
  %v278 = vunpack.c.l.b16 %v46
  %v279 = vunpack.c.h.b16 %v46
  %v280 = vunpack.c.l.b16 %v47
  %v281 = vunpack.c.h.b16 %v47
  %v282 = vunpack.c.l.b16 %v48
  %v283 = vunpack.c.h.b16 %v48
  %v284 = vunpack.c.l.b16 %v49
  %v285 = vunpack.c.h.b16 %v49
  %v286 = vunpack.c.l.b16 %v50
  %v287 = vunpack.c.h.b16 %v50
  %v288 = vunpack.c.l.b16 %v51
  %v289 = vunpack.c.h.b16 %v51
  %v290 = vunpack.c.l.b16 %v52
  %v291 = vunpack.c.h.b16 %v52
  %v292 = vunpack.c.l.b16 %v53
  %v293 = vunpack.c.h.b16 %v53
  %v294 = vunpack.c.l.b16 %v54
  %v295 = vunpack.c.h.b16 %v54
  %v296 = vunpack.c.l.b16 %v55
  %v297 = vunpack.c.h.b16 %v55
  %v298 = vunpack.c.l.b16 %v56
  %v299 = vunpack.c.h.b16 %v56
  %v300 = vunpack.c.l.b16 %v57
  %v301 = vunpack.c.h.b16 %v57
  %v302 = vunpack.c.l.b16 %v58
  %v303 = vunpack.c.h.b16 %v58
  %v304 = vunpack.c.l.b16 %v59
  %v305 = vunpack.c.h.b16 %v59
  %v306 = vunpack.c.l.b16 %v60
  %v307 = vunpack.c.h.b16 %v60
  %v308 = vunpack.c.l.b16 %v61
  %v309 = vunpack.c.h.b16 %v61
  %v310 = vunpack.c.l.b16 %v62
  %v311 = vunpack.c.h.b16 %v62
  %v312 = vunpack.c.l.b16 %v63
  %v313 = vunpack.c.h.b16 %v63
  %v314 = vunpack.c.l.b16 %v64
  %v315 = vunpack.c.h.b16 %v64
  %v316 = vunpack.c.l.b16 %v65
  %v317 = vunpack.c.h.b16 %v65
  %v318 = vunpack.c.l.b16 %v66
  %v319 = vunpack.c.h.b16 %v66
  %v320 = vunpack.c.l.b16 %v67
  %v321 = vunpack.c.h.b16 %v67
  %v322 = vunpack.c.l.b16 %v68
  %v323 = vunpack.c.h.b16 %v68
  %v324 = vunpack.c.l.b16 %v69
  %v325 = vunpack.c.h.b16 %v69
  %v326 = vunpack.c.l.b16 %v70
  %v327 = vunpack.c.h.b16 %v70
  %v328 = vunpack.c.l.b16 %v71
  %v329 = vunpack.c.h.b16 %v71
  %v330 = vunpack.c.l.b16 %v72
  %v331 = vunpack.c.h.b16 %v72
  %v332 = vunpack.c.l.b16 %v73
  %v333 = vunpack.c.h.b16 %v73
  %v334 = vunpack.c.l.b16 %v74
  %v335 = vunpack.c.h.b16 %v74
  %v336 = vunpack.c.l.b16 %v75
  %v337 = vunpack.c.h.b16 %v75
  %v338 = vunpack.c.l.b16 %v76
  %v339 = vunpack.c.h.b16 %v76
  %v340 = vunpack.c.l.b16 %v77
  %v341 = vunpack.c.h.b16 %v77
  %v342 = vunpack.c.l.b16 %v78
  %v343 = vunpack.c.h.b16 %v78
  %v344 = vunpack.c.l.b16 %v79
  %v345 = vunpack.c.h.b16 %v79
  %v346 = vunpack.c.l.b16 %v80
  %v347 = vunpack.c.h.b16 %v80
  %v348 = vunpack.c.l.b16 %v81
  %v349 = vunpack.c.h.b16 %v81
  %v350 = vunpack.c.l.b16 %v82
  %v351 = vunpack.c.h.b16 %v82
  %v352 = vunpack.c.l.b16 %v83
  %v353 = vunpack.c.h.b16 %v83
  %v354 = vunpack.c.l.b16 %v84
  %v355 = vunpack.c.h.b16 %v84
  %v356 = vunpack.c.l.b16 %v85
  %v357 = vunpack.c.h.b16 %v85
  %v358 = vunpack.c.l.b16 %v86
  %v359 = vunpack.c.h.b16 %v86
  %v360 = vunpack.c.l.b16 %v87
  %v361 = vunpack.c.h.b16 %v87
  %v362 = vunpack.c.l.b16 %v88
  %v363 = vunpack.c.h.b16 %v88
  %v364 = vunpack.c.l.b16 %v89
  %v365 = vunpack.c.h.b16 %v89
  %v366 = vunpack.c.l.b16 %v90
  %v367 = vunpack.c.h.b16 %v90
  %v368 = vunpack.c.l.b16 %v91
  %v369 = vunpack.c.h.b16 %v91
  %v370 = vunpack.c.l.b16 %v92
  %v371 = vunpack.c.h.b16 %v92
  %v372 = vunpack.c.l.b16 %v93
  %v373 = vunpack.c.h.b16 %v93
  %v374 = vunpack.c.l.b16 %v94
  %v375 = vunpack.c.h.b16 %v94
  %v376 = vunpack.c.l.b16 %v95
  %v377 = vunpack.c.h.b16 %v95
  %v378 = vunpack.c.l.b16 %v96
  %v379 = vunpack.c.h.b16 %v96
  %v380 = vunpack.c.l.b16 %v97
  %v381 = vunpack.c.h.b16 %v97
  %v382 = vunpack.c.l.b16 %v98
  %v383 = vunpack.c.h.b16 %v98
  %v384 = vunpack.c.l.b16 %v99
  %v385 = vunpack.c.h.b16 %v99
  %v386 = vunpack.c.l.b16 %v100
  %v387 = vunpack.c.h.b16 %v100
  %v388 = vunpack.c.l.b16 %v101
  %v389 = vunpack.c.h.b16 %v101
  %v390 = vunpack.c.l.b16 %v102
  %v391 = vunpack.c.h.b16 %v102
  %v392 = vunpack.c.l.b16 %v103
  %v393 = vunpack.c.h.b16 %v103
  %v394 = vunpack.c.l.b16 %v104
  %v395 = vunpack.c.h.b16 %v104
  %v396 = vunpack.c.l.b16 %v105
  %v397 = vunpack.c.h.b16 %v105
  %v398 = vunpack.c.l.b16 %v106
  %v399 = vunpack.c.h.b16 %v106
  %v400 = vunpack.c.l.b16 %v107
  %v401 = vunpack.c.h.b16 %v107
  %v402 = vunpack.c.l.b16 %v108
  %v403 = vunpack.c.h.b16 %v108
  %v404 = vunpack.c.l.b16 %v109
  %v405 = vunpack.c.h.b16 %v109
  %v406 = vunpack.c.l.b16 %v110
  %v407 = vunpack.c.h.b16 %v110
  %v408 = vunpack.c.l.b16 %v111
  %v409 = vunpack.c.h.b16 %v111
  %v410 = vpack.c.b16 %v224, %v218
  %v411 = vpack.c.b16 %v225, %v219
  %v412 = vpack.c.b16 %v226, %v220
  %v413 = vpack.c.b16 %v227, %v221
  %v414 = vpack.c.b16 %v228, %v222
  %v415 = vpack.c.b16 %v229, %v223
  %v416 = vpack.c.b16 %v236, %v230
  %v417 = vpack.c.b16 %v237, %v231
  %v418 = vpack.c.b16 %v238, %v232
  %v419 = vpack.c.b16 %v239, %v233
  %v420 = vpack.c.b16 %v240, %v234
  %v421 = vpack.c.b16 %v241, %v235
  %v422 = vpack.c.b16 %v248, %v242
  %v423 = vpack.c.b16 %v249, %v243
  %v424 = vpack.c.b16 %v250, %v244
  %v425 = vpack.c.b16 %v251, %v245
  %v426 = vpack.c.b16 %v252, %v246
  %v427 = vpack.c.b16 %v253, %v247
  %v428 = vpack.c.b16 %v260, %v254
  %v429 = vpack.c.b16 %v261, %v255
  %v430 = vpack.c.b16 %v262, %v256
  %v431 = vpack.c.b16 %v263, %v257
  %v432 = vpack.c.b16 %v264, %v258
  %v433 = vpack.c.b16 %v265, %v259
  %v434 = vpack.c.b16 %v272, %v266
  %v435 = vpack.c.b16 %v273, %v267
  %v436 = vpack.c.b16 %v274, %v268
  %v437 = vpack.c.b16 %v275, %v269
  %v438 = vpack.c.b16 %v276, %v270
  %v439 = vpack.c.b16 %v277, %v271
  %v440 = vpack.c.b16 %v284, %v278
  %v441 = vpack.c.b16 %v285, %v279
  %v442 = vpack.c.b16 %v286, %v280
  %v443 = vpack.c.b16 %v287, %v281
  %v444 = vpack.c.b16 %v288, %v282
  %v445 = vpack.c.b16 %v289, %v283
  %v446 = vpack.c.b16 %v296, %v290
  %v447 = vpack.c.b16 %v297, %v291
  %v448 = vpack.c.b16 %v298, %v292
  %v449 = vpack.c.b16 %v299, %v293
  %v450 = vpack.c.b16 %v300, %v294
  %v451 = vpack.c.b16 %v301, %v295
  %v452 = vpack.c.b16 %v308, %v302
  %v453 = vpack.c.b16 %v309, %v303
  %v454 = vpack.c.b16 %v310, %v304
  %v455 = vpack.c.b16 %v311, %v305
  %v456 = vpack.c.b16 %v312, %v306
  %v457 = vpack.c.b16 %v313, %v307
  %v458 = vpack.c.b16 %v320, %v314
  %v459 = vpack.c.b16 %v321, %v315
  %v460 = vpack.c.b16 %v322, %v316
  %v461 = vpack.c.b16 %v323, %v317
  %v462 = vpack.c.b16 %v324, %v318
  %v463 = vpack.c.b16 %v325, %v319
  %v464 = vpack.c.b16 %v332, %v326
  %v465 = vpack.c.b16 %v333, %v327
  %v466 = vpack.c.b16 %v334, %v328
  %v467 = vpack.c.b16 %v335, %v329
  %v468 = vpack.c.b16 %v336, %v330
  %v469 = vpack.c.b16 %v337, %v331
  %v470 = vpack.c.b16 %v344, %v338
  %v471 = vpack.c.b16 %v345, %v339
  %v472 = vpack.c.b16 %v346, %v340
  %v473 = vpack.c.b16 %v347, %v341
  %v474 = vpack.c.b16 %v348, %v342
  %v475 = vpack.c.b16 %v349, %v343
  %v476 = vpack.c.b16 %v356, %v350
  %v477 = vpack.c.b16 %v357, %v351
  %v478 = vpack.c.b16 %v358, %v352
  %v479 = vpack.c.b16 %v359, %v353
  %v480 = vpack.c.b16 %v360, %v354
  %v481 = vpack.c.b16 %v361, %v355
  %v482 = vpack.c.b16 %v368, %v362
  %v483 = vpack.c.b16 %v369, %v363
  %v484 = vpack.c.b16 %v370, %v364
  %v485 = vpack.c.b16 %v371, %v365
  %v486 = vpack.c.b16 %v372, %v366
  %v487 = vpack.c.b16 %v373, %v367
  %v488 = vpack.c.b16 %v380, %v374
  %v489 = vpack.c.b16 %v381, %v375
  %v490 = vpack.c.b16 %v382, %v376
  %v491 = vpack.c.b16 %v383, %v377
  %v492 = vpack.c.b16 %v384, %v378
  %v493 = vpack.c.b16 %v385, %v379
  %v494 = vpack.c.b16 %v392, %v386
  %v495 = vpack.c.b16 %v393, %v387
  %v496 = vpack.c.b16 %v394, %v388
  %v497 = vpack.c.b16 %v395, %v389
  %v498 = vpack.c.b16 %v396, %v390
  %v499 = vpack.c.b16 %v397, %v391
  %v500 = vpack.c.b16 %v404, %v398
  %v501 = vpack.c.b16 %v405, %v399
  %v502 = vpack.c.b16 %v406, %v400
  %v503 = vpack.c.b16 %v407, %v401
  %v504 = vpack.c.b16 %v408, %v402
  %v505 = vpack.c.b16 %v409, %v403
  %602 = vmatprep.subr.bf16.mxu0 %v411
  %603 = vmatpush1.bf16.msra.mxu0 %v410
  %604 = vmatprep.subr.bf16.mxu0 %v417
  %605 = vmatpush1.bf16.msra.mxu0 %v416
  %606 = vmatprep.subr.bf16.mxu0 %v423
  %607 = vmatpush1.bf16.msra.mxu0 %v422
  %608 = vmatprep.subr.bf16.mxu0 %v429
  %609 = vmatpush1.bf16.msra.mxu0 %v428
  %610 = vmatprep.subr.bf16.mxu0 %v435
  %611 = vmatpush1.bf16.msra.mxu0 %v434
  %612 = vmatprep.subr.bf16.mxu0 %v441
  %613 = vmatpush1.bf16.msra.mxu0 %v440
  %614 = vmatprep.subr.bf16.mxu0 %v447
  %615 = vmatpush1.bf16.msra.mxu0 %v446
  %616 = vmatprep.subr.bf16.mxu0 %v453
  %617 = vmatpush1.bf16.msra.mxu0 %v452
  %618 = vmatprep.subr.bf16.mxu0 %v459
  %619 = vmatpush1.bf16.msra.mxu0 %v458
  %620 = vmatprep.subr.bf16.mxu0 %v465
  %621 = vmatpush1.bf16.msra.mxu0 %v464
  %622 = vmatprep.subr.bf16.mxu0 %v471
  %623 = vmatpush1.bf16.msra.mxu0 %v470
  %624 = vmatprep.subr.bf16.mxu0 %v477
  %625 = vmatpush1.bf16.msra.mxu0 %v476
  %626 = vmatprep.subr.bf16.mxu0 %v483
  %627 = vmatpush1.bf16.msra.mxu0 %v482
  %628 = vmatprep.subr.bf16.mxu0 %v489
  %629 = vmatpush1.bf16.msra.mxu0 %v488
  %630 = vmatprep.subr.bf16.mxu0 %v495
  %631 = vmatpush1.bf16.msra.mxu0 %v494
  %632 = vmatprep.subr.bf16.mxu0 %v501
  %633 = vmatpush1.bf16.msra.mxu0 %v500
  %634 = vmatprep.mubr.bf16.mxu0 %v119
  %635 = vmatmul.mubr.bf16.gmra.mrb[0].mxu0 %v118
  %v636 = vpop.f32.mrb[0].mxu0
  %v637 = vadd.f32 0.0, %v636
  %v638 = vpop.f32.mrb[0].mxu0
  %v639 = vadd.f32 0.0, %v638
  %v640 = vpop.f32.mrb[0].mxu0
  %v641 = vadd.f32 0.0, %v640
  %v642 = vpop.f32.mrb[0].mxu0
  %v643 = vadd.f32 0.0, %v642
  %644 = vdwg.mxu0
  %645 = vmatprep.subr.bf16.mxu0 %v413
  %646 = vmatpush1.bf16.msra.mxu0 %v412
  %647 = vmatprep.subr.bf16.mxu0 %v419
  %648 = vmatpush1.bf16.msra.mxu0 %v418
  %649 = vmatprep.subr.bf16.mxu0 %v425
  %650 = vmatpush1.bf16.msra.mxu0 %v424
  %651 = vmatprep.subr.bf16.mxu0 %v431
  %652 = vmatpush1.bf16.msra.mxu0 %v430
  %653 = vmatprep.subr.bf16.mxu0 %v437
  %654 = vmatpush1.bf16.msra.mxu0 %v436
  %655 = vmatprep.subr.bf16.mxu0 %v443
  %656 = vmatpush1.bf16.msra.mxu0 %v442
  %657 = vmatprep.subr.bf16.mxu0 %v449
  %658 = vmatpush1.bf16.msra.mxu0 %v448
  %659 = vmatprep.subr.bf16.mxu0 %v455
  %660 = vmatpush1.bf16.msra.mxu0 %v454
  %661 = vmatprep.subr.bf16.mxu0 %v461
  %662 = vmatpush1.bf16.msra.mxu0 %v460
  %663 = vmatprep.subr.bf16.mxu0 %v467
  %664 = vmatpush1.bf16.msra.mxu0 %v466
  %665 = vmatprep.subr.bf16.mxu0 %v473
  %666 = vmatpush1.bf16.msra.mxu0 %v472
  %667 = vmatprep.subr.bf16.mxu0 %v479
  %668 = vmatpush1.bf16.msra.mxu0 %v478
  %669 = vmatprep.subr.bf16.mxu0 %v485
  %670 = vmatpush1.bf16.msra.mxu0 %v484
  %671 = vmatprep.subr.bf16.mxu0 %v491
  %672 = vmatpush1.bf16.msra.mxu0 %v490
  %673 = vmatprep.subr.bf16.mxu0 %v497
  %674 = vmatpush1.bf16.msra.mxu0 %v496
  %675 = vmatprep.subr.bf16.mxu0 %v503
  %676 = vmatpush1.bf16.msra.mxu0 %v502
  %677 = vmatprep.mubr.bf16.mxu0 %v119
  %678 = vmatmul.mubr.bf16.gmra.mrb[0].mxu0 %v118
  %v679 = vpop.f32.mrb[0].mxu0
  %v680 = vadd.f32 0.0, %v679
  %v681 = vpop.f32.mrb[0].mxu0
  %v682 = vadd.f32 0.0, %v681
  %v683 = vpop.f32.mrb[0].mxu0
  %v684 = vadd.f32 0.0, %v683
  %v685 = vpop.f32.mrb[0].mxu0
  %v686 = vadd.f32 0.0, %v685
  %687 = vdwg.mxu0
  %688 = vmatprep.subr.bf16.mxu0 %v415
  %689 = vmatpush1.bf16.msra.mxu0 %v414
  %690 = vmatprep.subr.bf16.mxu0 %v421
  %691 = vmatpush1.bf16.msra.mxu0 %v420
  %692 = vmatprep.subr.bf16.mxu0 %v427
  %693 = vmatpush1.bf16.msra.mxu0 %v426
  %694 = vmatprep.subr.bf16.mxu0 %v433
  %695 = vmatpush1.bf16.msra.mxu0 %v432
  %696 = vmatprep.subr.bf16.mxu0 %v439
  %697 = vmatpush1.bf16.msra.mxu0 %v438
  %698 = vmatprep.subr.bf16.mxu0 %v445
  %699 = vmatpush1.bf16.msra.mxu0 %v444
  %700 = vmatprep.subr.bf16.mxu0 %v451
  %701 = vmatpush1.bf16.msra.mxu0 %v450
  %702 = vmatprep.subr.bf16.mxu0 %v457
  %703 = vmatpush1.bf16.msra.mxu0 %v456
  %704 = vmatprep.subr.bf16.mxu0 %v463
  %705 = vmatpush1.bf16.msra.mxu0 %v462
  %706 = vmatprep.subr.bf16.mxu0 %v469
  %707 = vmatpush1.bf16.msra.mxu0 %v468
  %708 = vmatprep.subr.bf16.mxu0 %v475
  %709 = vmatpush1.bf16.msra.mxu0 %v474
  %710 = vmatprep.subr.bf16.mxu0 %v481
  %711 = vmatpush1.bf16.msra.mxu0 %v480
  %712 = vmatprep.subr.bf16.mxu0 %v487
  %713 = vmatpush1.bf16.msra.mxu0 %v486
  %714 = vmatprep.subr.bf16.mxu0 %v493
  %715 = vmatpush1.bf16.msra.mxu0 %v492
  %716 = vmatprep.subr.bf16.mxu0 %v499
  %717 = vmatpush1.bf16.msra.mxu0 %v498
  %718 = vmatprep.subr.bf16.mxu0 %v505
  %719 = vmatpush1.bf16.msra.mxu0 %v504
  %720 = vmatprep.mubr.bf16.mxu0 %v119
  %721 = vmatmul.mubr.bf16.gmra.mrb[0].mxu0 %v118
  %v722 = vpop.f32.mrb[0].mxu0
  %v723 = vadd.f32 0.0, %v722
  %v724 = vpop.f32.mrb[0].mxu0
  %v725 = vadd.f32 0.0, %v724
  %v726 = vpop.f32.mrb[0].mxu0
  %v727 = vadd.f32 0.0, %v726
  %v728 = vpop.f32.mrb[0].mxu0
  %v729 = vadd.f32 0.0, %v728
  %730 = vdwg.mxu0
  %v731 = vadd.f32 %v637, %v639
  %v732 = vadd.f32 %v731, %v680
  %v733 = vadd.f32 %v732, %v682
  %v734 = vadd.f32 %v733, %v723
  %vm735 = vcmask 900096
  %v736 = vsel %vm735, %v725, 0.0
  %v737 = vadd.f32 %v734, %v736
  %738 = vadd.xlane.f32.xlu0 %v737
  %v739 = vpop.xlane.xlu0 %738
  %v740 = vadd.f32 %v641, %v643
  %v741 = vadd.f32 %v740, %v684
  %v742 = vadd.f32 %v741, %v686
  %v743 = vadd.f32 %v742, %v727
  %v744 = vsel %vm735, %v729, 0.0
  %v745 = vadd.f32 %v743, %v744
  %746 = vadd.xlane.f32.xlu0 %v745
  %v747 = vpop.xlane.xlu0 %746
  %v748 = vrcp.pop 750.0
  %v749 = vmul.f32 %v739, %v748
  %v750 = vmul.f32 %v747, %v748
  %v751 = vsub.f32 %v637, %v749
  %v752 = vsub.f32 %v639, %v749
  %v753 = vsub.f32 %v680, %v749
  %v754 = vsub.f32 %v682, %v749
  %v755 = vsub.f32 %v723, %v749
  %v756 = vsub.f32 %v725, %v749
  %v757 = vsub.f32 %v641, %v750
  %v758 = vsub.f32 %v643, %v750
  %v759 = vsub.f32 %v684, %v750
  %v760 = vsub.f32 %v686, %v750
  %v761 = vsub.f32 %v727, %v750
  %v762 = vsub.f32 %v729, %v750
  %v763 = vmul.f32 %v751, %v751
  %v764 = vmul.f32 %v752, %v752
  %v765 = vmul.f32 %v753, %v753
  %v766 = vmul.f32 %v754, %v754
  %v767 = vmul.f32 %v755, %v755
  %v768 = vmul.f32 %v756, %v756
  %v769 = vmul.f32 %v757, %v757
  %v770 = vmul.f32 %v758, %v758
  %v771 = vmul.f32 %v759, %v759
  %v772 = vmul.f32 %v760, %v760
  %v773 = vmul.f32 %v761, %v761
  %v774 = vmul.f32 %v762, %v762
  %v775 = vadd.f32 %v763, %v764
  %v776 = vadd.f32 %v775, %v765
  %v777 = vadd.f32 %v776, %v766
  %v778 = vadd.f32 %v777, %v767
  %v779 = vsel %vm735, %v768, 0.0
  %v780 = vadd.f32 %v778, %v779
  %781 = vadd.xlane.f32.xlu0 %v780
  %v782 = vpop.xlane.xlu0 %781
  %v783 = vadd.f32 %v769, %v770
  %v784 = vadd.f32 %v783, %v771
  %v785 = vadd.f32 %v784, %v772
  %v786 = vadd.f32 %v785, %v773
  %v787 = vsel %vm735, %v774, 0.0
  %v788 = vadd.f32 %v786, %v787
  %789 = vadd.xlane.f32.xlu0 %v788
  %v790 = vpop.xlane.xlu0 %789
  %v791 = vmul.f32 %v782, %v748
  %v792 = vmul.f32 %v790, %v748
  %v793 = vadd.f32 %v791, 1e-05
  %v794 = vadd.f32 %v792, 1e-05
  %v795 = vrsqrt.pop %v793
  %v796 = vrsqrt.pop %v794
  %v797 = vmul.f32 %v751, %v795
  %v798 = vmul.f32 %v752, %v795
  %v799 = vmul.f32 %v753, %v795
  %v800 = vmul.f32 %v754, %v795
  %v801 = vmul.f32 %v755, %v795
  %v802 = vmul.f32 %v756, %v795
  %v803 = vmul.f32 %v757, %v796
  %v804 = vmul.f32 %v758, %v796
  %v805 = vmul.f32 %v759, %v796
  %v806 = vmul.f32 %v760, %v796
  %v807 = vmul.f32 %v761, %v796
  %v808 = vmul.f32 %v762, %v796
  %v809 = vld [vmem:[%s2] sm:$0xff]
  %v810 = vld [vmem:[%s2 + $0x8] sm:$0xff]
  %812 = vset.pattern.permute.xlu0 0
  %813 = vperm.xlu0 %812, %v809
  %v814 = vpop.permute.xlu0 %813
  %817 = vset.pattern.permute.xlu0 0
  %818 = vperm.xlu0 %817, %v810
  %v819 = vpop.permute.xlu0 %818
  %v821 = vmul.f32 %v797, %v814
  %v822 = vmul.f32 %v798, %v814
  %v823 = vmul.f32 %v799, %v814
  %v824 = vmul.f32 %v800, %v814
  %v825 = vmul.f32 %v801, %v814
  %v826 = vmul.f32 %v802, %v814
  %v827 = vmul.f32 %v803, %v819
  %v828 = vmul.f32 %v804, %v819
  %v829 = vmul.f32 %v805, %v819
  %v830 = vmul.f32 %v806, %v819
  %v831 = vmul.f32 %v807, %v819
  %v832 = vmul.f32 %v808, %v819
  %833 = vset.pattern.permute.xlu0 1
  %834 = vperm.xlu0 %833, %v809
  %v835 = vpop.permute.xlu0 %834
  %837 = vset.pattern.permute.xlu0 1
  %838 = vperm.xlu0 %837, %v810
  %v839 = vpop.permute.xlu0 %838
  %v841 = vadd.f32 %v821, %v835
  %v842 = vadd.f32 %v822, %v835
  %v843 = vadd.f32 %v823, %v835
  %v844 = vadd.f32 %v824, %v835
  %v845 = vadd.f32 %v825, %v835
  %v846 = vadd.f32 %v826, %v835
  %v847 = vadd.f32 %v827, %v839
  %v848 = vadd.f32 %v828, %v839
  %v849 = vadd.f32 %v829, %v839
  %v850 = vadd.f32 %v830, %v839
  %v851 = vadd.f32 %v831, %v839
  %v852 = vadd.f32 %v832, %v839
  %v853 = vmax.f32 %v841, 0.0
  %v854 = vmax.f32 %v842, 0.0
  %v855 = vmax.f32 %v843, 0.0
  %v856 = vmax.f32 %v844, 0.0
  %v857 = vmax.f32 %v845, 0.0
  %v858 = vmax.f32 %v846, 0.0
  %v859 = vmax.f32 %v847, 0.0
  %v860 = vmax.f32 %v848, 0.0
  %v861 = vmax.f32 %v849, 0.0
  %v862 = vmax.f32 %v850, 0.0
  %v863 = vmax.f32 %v851, 0.0
  %v864 = vmax.f32 %v852, 0.0
  %v865 = vpack.c.bf16 %v859, %v853
  %v866 = vpack.c.bf16 %v860, %v854
  %v867 = vpack.c.bf16 %v861, %v855
  %v868 = vpack.c.bf16 %v862, %v856
  %v869 = vpack.c.bf16 %v863, %v857
  %v870 = vpack.c.bf16 %v864, %v858
  %v877 = vunpack.c.l.b16 %v865
  %v878 = vunpack.c.l.b16 %v866
  %v879 = vunpack.c.l.b16 %v867
  %v880 = vunpack.c.l.b16 %v868
  %v881 = vunpack.c.l.b16 %v869
  %v882 = vunpack.c.l.b16 %v870
  %v883 = vunpack.c.h.b16 %v865
  %v884 = vunpack.c.h.b16 %v866
  %v885 = vunpack.c.h.b16 %v867
  %v886 = vunpack.c.h.b16 %v868
  %v887 = vunpack.c.h.b16 %v869
  %v888 = vunpack.c.h.b16 %v870
  %v889 = vpack.c.b16 %v878, %v877
  %v890 = vpack.c.b16 %v880, %v879
  %v891 = vpack.c.b16 %v882, %v881
  %v892 = vpack.c.b16 %v884, %v883
  %v893 = vpack.c.b16 %v886, %v885
  %v894 = vpack.c.b16 %v888, %v887
  %901 = vst [vmem:[%s3] sm:$0xff] %v889
  %902 = vst [vmem:[%s3 + $0x8] sm:$0xff] %v890
  %vm903 = vcmask 1043456
  %vm904 = vcmask 900100
  %vm905 = vmor %vm904, %vm903
  %906 = vst.msk [vmem:[%s3 + $0x10] sm:$0xff] %vm905, %v891
  %907 = vst [vmem:[%s3 + $0x18] sm:$0xff] %v892
  %908 = vst [vmem:[%s3 + $0x20] sm:$0xff] %v893
  %909 = vst.msk [vmem:[%s3 + $0x28] sm:$0xff] %vm905, %v894
  // Predicated region
  $region14: #{_lambda_.4} parent=0 // pred_check
    _
  $region15: #{_lambda_.4} parent=0 // pred_check_branch
    %911 = sbr.rel (0) target = $region17
  $region16: #{_lambda_.4} parent=0 // pred_region
    _
  $region17: #{_lambda_.4} parent=0 // pred_fallthru
    _
  // Predicated region
  $region18: #{_lambda_.4} parent=0 // pred_check
    _
  $region19: #{_lambda_.4} parent=0 // pred_check_branch
    %913 = sbr.rel (0) target = $region21
  $region20: #{_lambda_.4} parent=0 // pred_region
    _
  $region21: #{_lambda_.4} parent=0 // pred_fallthru
    _

// kernel: _lambda_.5
$region0: #{_lambda_.5}
  #allocation0 [shape = 'u32[]', space=smem, size = 0x4, offset = 0x4, fixed_abs, tag = 'smem constant byte address 0x4 - core index']
  #allocation1 [shape = 'u32[144,128]{1,0:T(1,128)}', space=vmem, size = 0x12000, scoped, tag = 'internal scratch']
  %s0 = inlined_call_operand.vmem [shape: bf16[144,168], index: 0, kind: input, shape index: {}]
  %s1 = inlined_call_operand.vmem [shape: bf16[16,144], index: 1, kind: input, shape index: {}]
  %s2 = inlined_call_operand.vmem [shape: f32[16,2], index: 2, kind: input, shape index: {}]
  %s3 = inlined_call_operand.vmem [shape: f32[8,16,84], index: 3, kind: input, shape index: {}]
  %s4 = inlined_call_operand.vmem [shape: f32[1,8], index: 4, kind: input, shape index: {}]
  %s5 = inlined_call_operand.hbm [shape: f32[2,8], index: 5, kind: output, shape index: {}]
  %s6 = sld [smem:[#allocation0]]
  $region30: #{_lambda_.5} parent=0
    _
  %s8 = ssub.s32 1, %s6
  %s9 = scalar_select 0, %s8, %s6
  $region1: #{_lambda_.5} parent=0
    #allocation2 [shape = 'u8[1024]{0}', space=vmem, size = 0x400, scoped, tag = 'output window, operand 0, single buffered']
    #allocation3 [shape = 's32[1]{0}', space=sflag, size = 0x4, scoped, tag = 'scoped memory for _lambda_.5']
    %10 = vsyncpa [#allocation3], 0
    // Predicated region
    $region2: #{_lambda_.5} parent=1 // pred_check
      _
    $region3: #{_lambda_.5} parent=1 // pred_check_branch
      %12 = sbr.rel (0) target = $region5
    $region4: #{_lambda_.5} parent=1 // pred_region
      _
    $region5: #{_lambda_.5} parent=1 // pred_fallthru
      _
    // Predicated region
    $region6: #{_lambda_.5} parent=1 // pred_check
      _
    $region7: #{_lambda_.5} parent=1 // pred_check_branch
      %14 = sbr.rel (0) target = $region9
    $region8: #{_lambda_.5} parent=1 // pred_region
      _
    $region9: #{_lambda_.5} parent=1 // pred_fallthru
      _
    // Predicated region
    $region10: #{_lambda_.5} parent=1 // pred_check
      _
    $region11: #{_lambda_.5} parent=1 // pred_check_branch
      %16 = sbr.rel (0) target = $region13
    $region12: #{_lambda_.5} parent=1 // pred_region
      _
    $region13: #{_lambda_.5} parent=1 // pred_fallthru
      _
    // Predicated region
    $region14: #{_lambda_.5} parent=1 // pred_check
      _
    $region15: #{_lambda_.5} parent=1 // pred_check_branch
      %18 = sbr.rel (0) target = $region17
    $region16: #{_lambda_.5} parent=1 // pred_region
      _
    $region17: #{_lambda_.5} parent=1 // pred_fallthru
      _
    // Predicated region
    $region18: #{_lambda_.5} parent=1 // pred_check
      _
    $region19: #{_lambda_.5} parent=1 // pred_check_branch
      %20 = sbr.rel (0) target = $region21
    $region20: #{_lambda_.5} parent=1 // pred_region
      _
    $region21: #{_lambda_.5} parent=1 // pred_fallthru
      _
    %v22 = vld [vmem:[%s1] sm:$0xff]
    %v23 = vld [vmem:[%s1 + $0x8] sm:$0xff]
    %v24 = vld [vmem:[%s0] sm:$0xff]
    %v25 = vld [vmem:[%s0 + $0x8] sm:$0xff]
    %v26 = vld [vmem:[%s0 + $0x10] sm:$0xff]
    %v27 = vld [vmem:[%s0 + $0x18] sm:$0xff]
    %v28 = vld [vmem:[%s0 + $0x20] sm:$0xff]
    %v29 = vld [vmem:[%s0 + $0x28] sm:$0xff]
    %v30 = vld [vmem:[%s0 + $0x30] sm:$0xff]
    %v31 = vld [vmem:[%s0 + $0x38] sm:$0xff]
    %v32 = vld [vmem:[%s0 + $0x40] sm:$0xff]
    %v33 = vld [vmem:[%s0 + $0x48] sm:$0xff]
    %v34 = vld [vmem:[%s0 + $0x50] sm:$0xff]
    %v35 = vld [vmem:[%s0 + $0x58] sm:$0xff]
    %v36 = vld [vmem:[%s0 + $0x60] sm:$0xff]
    %v37 = vld [vmem:[%s0 + $0x68] sm:$0xff]
    %v38 = vld [vmem:[%s0 + $0x70] sm:$0xff]
    %v39 = vld [vmem:[%s0 + $0x78] sm:$0xff]
    %v40 = vld [vmem:[%s0 + $0x80] sm:$0xff]
    %v41 = vld [vmem:[%s0 + $0x88] sm:$0xff]
    %v44 = vunpack.c.l.b16 %v22
    %v45 = vunpack.c.h.b16 %v22
    %v46 = vunpack.c.l.b16 %v23
    %v47 = vunpack.c.h.b16 %v23
    %v48 = vpack.c.b16 %v46, %v44
    %v49 = vpack.c.b16 %v47, %v45
    %v69 = vunpack.c.l.b16 %v24
    %v70 = vunpack.c.h.b16 %v24
    %v71 = vunpack.c.l.b16 %v25
    %v72 = vunpack.c.h.b16 %v25
    %v73 = vunpack.c.l.b16 %v26
    %v74 = vunpack.c.h.b16 %v26
    %v75 = vunpack.c.l.b16 %v27
    %v76 = vunpack.c.h.b16 %v27
    %v77 = vunpack.c.l.b16 %v28
    %v78 = vunpack.c.h.b16 %v28
    %v79 = vunpack.c.l.b16 %v29
    %v80 = vunpack.c.h.b16 %v29
    %v81 = vunpack.c.l.b16 %v30
    %v82 = vunpack.c.h.b16 %v30
    %v83 = vunpack.c.l.b16 %v31
    %v84 = vunpack.c.h.b16 %v31
    %v85 = vunpack.c.l.b16 %v32
    %v86 = vunpack.c.h.b16 %v32
    %v87 = vunpack.c.l.b16 %v33
    %v88 = vunpack.c.h.b16 %v33
    %v89 = vunpack.c.l.b16 %v34
    %v90 = vunpack.c.h.b16 %v34
    %v91 = vunpack.c.l.b16 %v35
    %v92 = vunpack.c.h.b16 %v35
    %v93 = vunpack.c.l.b16 %v36
    %v94 = vunpack.c.h.b16 %v36
    %v95 = vunpack.c.l.b16 %v37
    %v96 = vunpack.c.h.b16 %v37
    %v97 = vunpack.c.l.b16 %v38
    %v98 = vunpack.c.h.b16 %v38
    %v99 = vunpack.c.l.b16 %v39
    %v100 = vunpack.c.h.b16 %v39
    %v101 = vunpack.c.l.b16 %v40
    %v102 = vunpack.c.h.b16 %v40
    %v103 = vunpack.c.l.b16 %v41
    %v104 = vunpack.c.h.b16 %v41
    %v105 = vpack.c.b16 %v71, %v69
    %v106 = vpack.c.b16 %v72, %v70
    %v107 = vpack.c.b16 %v75, %v73
    %v108 = vpack.c.b16 %v76, %v74
    %v109 = vpack.c.b16 %v79, %v77
    %v110 = vpack.c.b16 %v80, %v78
    %v111 = vpack.c.b16 %v83, %v81
    %v112 = vpack.c.b16 %v84, %v82
    %v113 = vpack.c.b16 %v87, %v85
    %v114 = vpack.c.b16 %v88, %v86
    %v115 = vpack.c.b16 %v91, %v89
    %v116 = vpack.c.b16 %v92, %v90
    %v117 = vpack.c.b16 %v95, %v93
    %v118 = vpack.c.b16 %v96, %v94
    %v119 = vpack.c.b16 %v99, %v97
    %v120 = vpack.c.b16 %v100, %v98
    %v121 = vpack.c.b16 %v103, %v101
    %v122 = vpack.c.b16 %v104, %v102
    %vm141 = vcmask 130048
    %v143 = vsel %vm141, %v49, 0
    %145 = vmatprep.subr.bf16.mxu0 %v106
    %146 = vmatpush1.bf16.msra.mxu0 %v105
    %147 = vmatprep.subr.bf16.mxu0 %v108
    %148 = vmatpush1.bf16.msra.mxu0 %v107
    %149 = vmatprep.subr.bf16.mxu0 %v110
    %150 = vmatpush1.bf16.msra.mxu0 %v109
    %151 = vmatprep.subr.bf16.mxu0 %v112
    %152 = vmatpush1.bf16.msra.mxu0 %v111
    %153 = vmatprep.subr.bf16.mxu0 %v114
    %154 = vmatpush1.bf16.msra.mxu0 %v113
    %155 = vmatprep.subr.bf16.mxu0 %v116
    %156 = vmatpush1.bf16.msra.mxu0 %v115
    %157 = vmatprep.subr.bf16.mxu0 %v118
    %158 = vmatpush1.bf16.msra.mxu0 %v117
    %159 = vmatprep.subr.bf16.mxu0 %v120
    %160 = vmatpush1.bf16.msra.mxu0 %v119
    %161 = vmatprep.subr.bf16.mxu0 %v122
    %162 = vmatpush1.bf16.msra.mxu0 %v121
    %163 = vmatprep.subr.bf16.mxu0 0
    %164 = vmatpush1.bf16.msra.mxu0 0
    %165 = vmatprep.subr.bf16.mxu0 0
    %166 = vmatpush1.bf16.msra.mxu0 0
    %167 = vmatprep.subr.bf16.mxu0 0
    %168 = vmatpush1.bf16.msra.mxu0 0
    %169 = vmatprep.subr.bf16.mxu0 0
    %170 = vmatpush1.bf16.msra.mxu0 0
    %171 = vmatprep.subr.bf16.mxu0 0
    %172 = vmatpush1.bf16.msra.mxu0 0
    %173 = vmatprep.subr.bf16.mxu0 0
    %174 = vmatpush1.bf16.msra.mxu0 0
    %175 = vmatprep.subr.bf16.mxu0 0
    %176 = vmatpush1.bf16.msra.mxu0 0
    %177 = vmatprep.mubr.bf16.mxu0 %v143
    %178 = vmatmul.mubr.bf16.gmra.mrb[0].mxu0 %v48
    %v179 = vpop.f32.mrb[0].mxu0
    %v180 = vadd.f32 0.0, %v179
    %v181 = vpop.f32.mrb[0].mxu0
    %v182 = vadd.f32 0.0, %v181
    %v183 = vpop.f32.mrb[0].mxu0
    %v184 = vadd.f32 0.0, %v183
    %v185 = vpop.f32.mrb[0].mxu0
    %v186 = vadd.f32 0.0, %v185
    %187 = vdwg.mxu0
    %vm188 = vcmask 326656
    %v189 = vsel %vm188, %v182, 0.0
    %v190 = vadd.f32 %v180, %v189
    %191 = vadd.xlane.f32.xlu0 %v190
    %v192 = vpop.xlane.xlu0 %191
    %v193 = vsel %vm188, %v186, 0.0
    %v194 = vadd.f32 %v184, %v193
    %195 = vadd.xlane.f32.xlu0 %v194
    %v196 = vpop.xlane.xlu0 %195
    %v197 = vrcp.pop 168.0
    %v198 = vmul.f32 %v192, %v197
    %v199 = vmul.f32 %v196, %v197
    %v200 = vsub.f32 %v180, %v198
    %v201 = vsub.f32 %v182, %v198
    %v202 = vsub.f32 %v184, %v199
    %v203 = vsub.f32 %v186, %v199
    %v204 = vmul.f32 %v200, %v200
    %v205 = vmul.f32 %v201, %v201
    %v206 = vmul.f32 %v202, %v202
    %v207 = vmul.f32 %v203, %v203
    %v208 = vsel %vm188, %v205, 0.0
    %v209 = vadd.f32 %v204, %v208
    %210 = vadd.xlane.f32.xlu0 %v209
    %v211 = vpop.xlane.xlu0 %210
    %v212 = vsel %vm188, %v207, 0.0
    %v213 = vadd.f32 %v206, %v212
    %214 = vadd.xlane.f32.xlu0 %v213
    %v215 = vpop.xlane.xlu0 %214
    %v216 = vmul.f32 %v211, %v197
    %v217 = vmul.f32 %v215, %v197
    %v218 = vadd.f32 %v216, 1e-05
    %v219 = vadd.f32 %v217, 1e-05
    %v220 = vrsqrt.pop %v218
    %v221 = vrsqrt.pop %v219
    %v222 = vmul.f32 %v200, %v220
    %v223 = vmul.f32 %v201, %v220
    %v224 = vmul.f32 %v202, %v221
    %v225 = vmul.f32 %v203, %v221
    %v226 = vld [vmem:[%s2] sm:$0xff]
    %v227 = vld [vmem:[%s2 + $0x8] sm:$0xff]
    %229 = vset.pattern.permute.xlu0 0
    %230 = vperm.xlu0 %229, %v226
    %v231 = vpop.permute.xlu0 %230
    %234 = vset.pattern.permute.xlu0 0
    %235 = vperm.xlu0 %234, %v227
    %v236 = vpop.permute.xlu0 %235
    %v238 = vmul.f32 %v222, %v231
    %v239 = vmul.f32 %v223, %v231
    %v240 = vmul.f32 %v224, %v236
    %v241 = vmul.f32 %v225, %v236
    %242 = vset.pattern.permute.xlu0 1
    %243 = vperm.xlu0 %242, %v226
    %v244 = vpop.permute.xlu0 %243
    %246 = vset.pattern.permute.xlu0 1
    %247 = vperm.xlu0 %246, %v227
    %v248 = vpop.permute.xlu0 %247
    %v250 = vadd.f32 %v238, %v244
    %v251 = vadd.f32 %v239, %v244
    %v252 = vadd.f32 %v240, %v248
    %v253 = vadd.f32 %v241, %v248
    %v254 = vmax.f32 %v250, 0.0
    %v255 = vmax.f32 %v251, 0.0
    %v256 = vmax.f32 %v252, 0.0
    %v257 = vmax.f32 %v253, 0.0
    %v258 = vld [vmem:[%s3] sm:$0xff]
    %v259 = vld [vmem:[%s3 + $0x8] sm:$0xff]
    %v260 = vld [vmem:[%s3 + $0x10] sm:$0xff]
    %v261 = vld [vmem:[%s3 + $0x18] sm:$0xff]
    %v262 = vld [vmem:[%s3 + $0x20] sm:$0xff]
    %v263 = vld [vmem:[%s3 + $0x28] sm:$0xff]
    %v264 = vld [vmem:[%s3 + $0x30] sm:$0xff]
    %v265 = vld [vmem:[%s3 + $0x38] sm:$0xff]
    %v266 = vld [vmem:[%s3 + $0x40] sm:$0xff]
    %v267 = vld [vmem:[%s3 + $0x48] sm:$0xff]
    %v268 = vld [vmem:[%s3 + $0x50] sm:$0xff]
    %v269 = vld [vmem:[%s3 + $0x58] sm:$0xff]
    %v270 = vld [vmem:[%s3 + $0x60] sm:$0xff]
    %v271 = vld [vmem:[%s3 + $0x68] sm:$0xff]
    %v272 = vld [vmem:[%s3 + $0x70] sm:$0xff]
    %v273 = vld [vmem:[%s3 + $0x78] sm:$0xff]
    %v274 = vmul.f32 %v258, %v254
    %v275 = vmul.f32 %v259, %v256
    %v276 = vmul.f32 %v260, %v254
    %v277 = vmul.f32 %v261, %v256
    %v278 = vmul.f32 %v262, %v254
    %v279 = vmul.f32 %v263, %v256
    %v280 = vmul.f32 %v264, %v254
    %v281 = vmul.f32 %v265, %v256
    %v282 = vmul.f32 %v266, %v254
    %v283 = vmul.f32 %v267, %v256
    %v284 = vmul.f32 %v268, %v254
    %v285 = vmul.f32 %v269, %v256
    %v286 = vmul.f32 %v270, %v254
    %v287 = vmul.f32 %v271, %v256
    %v288 = vmul.f32 %v272, %v254
    %v289 = vmul.f32 %v273, %v256
    %vm290 = vcmask 687104
    %v291 = vsel %vm290, %v274, 0.0
    %292 = vadd.xlane.f32.xlu0 %v291
    %v293 = vpop.xlane.xlu0 %292
    %v294 = vsel %vm290, %v275, 0.0
    %295 = vadd.xlane.f32.xlu0 %v294
    %v296 = vpop.xlane.xlu0 %295
    %v297 = vsel %vm290, %v276, 0.0
    %298 = vadd.xlane.f32.xlu0 %v297
    %v299 = vpop.xlane.xlu0 %298
    %v300 = vsel %vm290, %v277, 0.0
    %301 = vadd.xlane.f32.xlu0 %v300
    %v302 = vpop.xlane.xlu0 %301
    %v303 = vsel %vm290, %v278, 0.0
    %304 = vadd.xlane.f32.xlu0 %v303
    %v305 = vpop.xlane.xlu0 %304
    %v306 = vsel %vm290, %v279, 0.0
    %307 = vadd.xlane.f32.xlu0 %v306
    %v308 = vpop.xlane.xlu0 %307
    %v309 = vsel %vm290, %v280, 0.0
    %310 = vadd.xlane.f32.xlu0 %v309
    %v311 = vpop.xlane.xlu0 %310
    %v312 = vsel %vm290, %v281, 0.0
    %313 = vadd.xlane.f32.xlu0 %v312
    %v314 = vpop.xlane.xlu0 %313
    %v315 = vsel %vm290, %v282, 0.0
    %316 = vadd.xlane.f32.xlu0 %v315
    %v317 = vpop.xlane.xlu0 %316
    %v318 = vsel %vm290, %v283, 0.0
    %319 = vadd.xlane.f32.xlu0 %v318
    %v320 = vpop.xlane.xlu0 %319
    %v321 = vsel %vm290, %v284, 0.0
    %322 = vadd.xlane.f32.xlu0 %v321
    %v323 = vpop.xlane.xlu0 %322
    %v324 = vsel %vm290, %v285, 0.0
    %325 = vadd.xlane.f32.xlu0 %v324
    %v326 = vpop.xlane.xlu0 %325
    %v327 = vsel %vm290, %v286, 0.0
    %328 = vadd.xlane.f32.xlu0 %v327
    %v329 = vpop.xlane.xlu0 %328
    %v330 = vsel %vm290, %v287, 0.0
    %331 = vadd.xlane.f32.xlu0 %v330
    %v332 = vpop.xlane.xlu0 %331
    %v333 = vsel %vm290, %v288, 0.0
    %334 = vadd.xlane.f32.xlu0 %v333
    %v335 = vpop.xlane.xlu0 %334
    %v336 = vsel %vm290, %v289, 0.0
    %337 = vadd.xlane.f32.xlu0 %v336
    %v338 = vpop.xlane.xlu0 %337
    %v355 = vlaneseq
    %v356 = vand.u32 %v355, 127
    %v357 = vlaneseq
    %v358 = vshrl.u32 %v357, 7
    %v359 = vsub.s32 %v356, %v358
    %v360 = vrot.slane %v293, %v359
    %v361 = vadd.s32 %v356, 4294967288
    %v362 = vlaneseq
    %v363 = vshrl.u32 %v362, 7
    %v364 = vsub.s32 %v361, %v363
    %v365 = vrot.slane %v296, %v364
    %vm366 = vcmask 130112
    %v367 = vsel %vm366, %v365, %v360
    %v368 = vlaneseq
    %v369 = vshrl.u32 %v368, 7
    %v370 = vsub.s32 %v356, %v369
    %v371 = vrot.slane %v299, %v370
    %v372 = vlaneseq
    %v373 = vshrl.u32 %v372, 7
    %v374 = vsub.s32 %v361, %v373
    %v375 = vrot.slane %v302, %v374
    %v376 = vsel %vm366, %v375, %v371
    %v377 = vlaneseq
    %v378 = vshrl.u32 %v377, 7
    %v379 = vsub.s32 %v356, %v378
    %v380 = vrot.slane %v305, %v379
    %v381 = vlaneseq
    %v382 = vshrl.u32 %v381, 7
    %v383 = vsub.s32 %v361, %v382
    %v384 = vrot.slane %v308, %v383
    %v385 = vsel %vm366, %v384, %v380
    %v386 = vlaneseq
    %v387 = vshrl.u32 %v386, 7
    %v388 = vsub.s32 %v356, %v387
    %v389 = vrot.slane %v311, %v388
    %v390 = vlaneseq
    %v391 = vshrl.u32 %v390, 7
    %v392 = vsub.s32 %v361, %v391
    %v393 = vrot.slane %v314, %v392
    %v394 = vsel %vm366, %v393, %v389
    %v395 = vlaneseq
    %v396 = vshrl.u32 %v395, 7
    %v397 = vsub.s32 %v356, %v396
    %v398 = vrot.slane %v317, %v397
    %v399 = vlaneseq
    %v400 = vshrl.u32 %v399, 7
    %v401 = vsub.s32 %v361, %v400
    %v402 = vrot.slane %v320, %v401
    %v403 = vsel %vm366, %v402, %v398
    %v404 = vlaneseq
    %v405 = vshrl.u32 %v404, 7
    %v406 = vsub.s32 %v356, %v405
    %v407 = vrot.slane %v323, %v406
    %v408 = vlaneseq
    %v409 = vshrl.u32 %v408, 7
    %v410 = vsub.s32 %v361, %v409
    %v411 = vrot.slane %v326, %v410
    %v412 = vsel %vm366, %v411, %v407
    %v413 = vlaneseq
    %v414 = vshrl.u32 %v413, 7
    %v415 = vsub.s32 %v356, %v414
    %v416 = vrot.slane %v329, %v415
    %v417 = vlaneseq
    %v418 = vshrl.u32 %v417, 7
    %v419 = vsub.s32 %v361, %v418
    %v420 = vrot.slane %v332, %v419
    %v421 = vsel %vm366, %v420, %v416
    %v422 = vlaneseq
    %v423 = vshrl.u32 %v422, 7
    %v424 = vsub.s32 %v356, %v423
    %v425 = vrot.slane %v335, %v424
    %v426 = vlaneseq
    %v427 = vshrl.u32 %v426, 7
    %v428 = vsub.s32 %v361, %v427
    %v429 = vrot.slane %v338, %v428
    %v430 = vsel %vm366, %v429, %v425
    %vm431 = vcmask 1041409
    %v432 = vsel %vm431, %v376, %v367
    %vm433 = vcmask 1042434
    %v434 = vsel %vm433, %v385, %v432
    %vm435 = vcmask 1043459
    %v436 = vsel %vm435, %v394, %v434
    %vm437 = vcmask 1044484
    %v438 = vsel %vm437, %v403, %v436
    %vm439 = vcmask 1045509
    %v440 = vsel %vm439, %v412, %v438
    %vm441 = vcmask 1046534
    %v442 = vsel %vm441, %v421, %v440
    %vm443 = vcmask 1047559
    %v444 = vsel %vm443, %v430, %v442
    %v446 = vsel %vm141, %v444, 0.0
    %447 = vadd.xlane.f32.xlu0 %v446
    %v448 = vpop.xlane.xlu0 %447
    %449 = vxpose.xlu0.b32.start [1/16] %v448, 128
    %450 = vxpose.xlu0.b32.cont [2/16] 0.0, 128
    %451 = vxpose.xlu0.b32.cont [3/16] 0.0, 128
    %452 = vxpose.xlu0.b32.cont [4/16] 0.0, 128
    %453 = vxpose.xlu0.b32.cont [5/16] 0.0, 128
    %454 = vxpose.xlu0.b32.cont [6/16] 0.0, 128
    %455 = vxpose.xlu0.b32.cont [7/16] 0.0, 128
    %456 = vxpose.xlu0.b32.cont [8/16] 0.0, 128
    %457 = vxpose.xlu0.b32.cont [9/16] 0.0, 128
    %458 = vxpose.xlu0.b32.cont [10/16] 0.0, 128
    %459 = vxpose.xlu0.b32.cont [11/16] 0.0, 128
    %460 = vxpose.xlu0.b32.cont [12/16] 0.0, 128
    %461 = vxpose.xlu0.b32.cont [13/16] 0.0, 128
    %462 = vxpose.xlu0.b32.cont [14/16] 0.0, 128
    %463 = vxpose.xlu0.b32.cont [15/16] 0.0, 128
    %464 = vxpose.xlu0.b32.end [16/16] 0.0, 128
    %v465 = vpop.trf.xlu0
    %v466 = vpop.trf.xlu0
    %v467 = vpop.trf.xlu0
    %v468 = vpop.trf.xlu0
    %v469 = vpop.trf.xlu0
    %v470 = vpop.trf.xlu0
    %v471 = vpop.trf.xlu0
    %v472 = vpop.trf.xlu0
    %v473 = vpop.trf.xlu0
    %v474 = vpop.trf.xlu0
    %v475 = vpop.trf.xlu0
    %v476 = vpop.trf.xlu0
    %v477 = vpop.trf.xlu0
    %v478 = vpop.trf.xlu0
    %v479 = vpop.trf.xlu0
    %v480 = vpop.trf.xlu0
    %v481 = vld [vmem:[%s4] sm:$0x1]
    %v482 = vadd.f32 %v465, %v481
    %vm483 = vcmask 57344
    %v484 = vsel %vm483, %v482, -inf
    %485 = vmax.xlane.f32.xlu0 %v484
    %v486 = vpop.xlane.xlu0 %485
    %v487 = vsub.f32 %v482, %v486
    %v488 = vmul.f32 %v487, 1.442695
    %v489 = vpow.pop %v488
    %v490 = vsel %vm483, %v489, 0.0
    %491 = vadd.xlane.f32.xlu0 %v490
    %v492 = vpop.xlane.xlu0 %491
    %v493 = vrcp.pop %v492
    %v494 = vmul.f32 %v489, %v493
    %495 = vst.msk [vmem:[#allocation2] sm:$0x1] %vm483, %v494
    %500 = vrot.lane.b32.xlu0 %v254, 44
    %v501 = vpop.permute.xlu0 %500
    %502 = vrot.lane.b32.xlu0 %v255, 44
    %v503 = vpop.permute.xlu0 %502
    %504 = vrot.lane.b32.xlu0 %v256, 44
    %v505 = vpop.permute.xlu0 %504
    %506 = vrot.lane.b32.xlu0 %v257, 44
    %v507 = vpop.permute.xlu0 %506
    %vm508 = vcmask 359424
    %v509 = vsel %vm508, %v501, %v503
    %v510 = vsel %vm508, %v505, %v507
    %v513 = vmul.f32 %v258, %v509
    %v514 = vmul.f32 %v259, %v510
    %v515 = vmul.f32 %v260, %v509
    %v516 = vmul.f32 %v261, %v510
    %v517 = vmul.f32 %v262, %v509
    %v518 = vmul.f32 %v263, %v510
    %v519 = vmul.f32 %v264, %v509
    %v520 = vmul.f32 %v265, %v510
    %v521 = vmul.f32 %v266, %v509
    %v522 = vmul.f32 %v267, %v510
    %v523 = vmul.f32 %v268, %v509
    %v524 = vmul.f32 %v269, %v510
    %v525 = vmul.f32 %v270, %v509
    %v526 = vmul.f32 %v271, %v510
    %v527 = vmul.f32 %v272, %v509
    %v528 = vmul.f32 %v273, %v510
    %v529 = vsel %vm290, %v513, 0.0
    %530 = vadd.xlane.f32.xlu0 %v529
    %v531 = vpop.xlane.xlu0 %530
    %v532 = vsel %vm290, %v514, 0.0
    %533 = vadd.xlane.f32.xlu0 %v532
    %v534 = vpop.xlane.xlu0 %533
    %v535 = vsel %vm290, %v515, 0.0
    %536 = vadd.xlane.f32.xlu0 %v535
    %v537 = vpop.xlane.xlu0 %536
    %v538 = vsel %vm290, %v516, 0.0
    %539 = vadd.xlane.f32.xlu0 %v538
    %v540 = vpop.xlane.xlu0 %539
    %v541 = vsel %vm290, %v517, 0.0
    %542 = vadd.xlane.f32.xlu0 %v541
    %v543 = vpop.xlane.xlu0 %542
    %v544 = vsel %vm290, %v518, 0.0
    %545 = vadd.xlane.f32.xlu0 %v544
    %v546 = vpop.xlane.xlu0 %545
    %v547 = vsel %vm290, %v519, 0.0
    %548 = vadd.xlane.f32.xlu0 %v547
    %v549 = vpop.xlane.xlu0 %548
    %v550 = vsel %vm290, %v520, 0.0
    %551 = vadd.xlane.f32.xlu0 %v550
    %v552 = vpop.xlane.xlu0 %551
    %v553 = vsel %vm290, %v521, 0.0
    %554 = vadd.xlane.f32.xlu0 %v553
    %v555 = vpop.xlane.xlu0 %554
    %v556 = vsel %vm290, %v522, 0.0
    %557 = vadd.xlane.f32.xlu0 %v556
    %v558 = vpop.xlane.xlu0 %557
    %v559 = vsel %vm290, %v523, 0.0
    %560 = vadd.xlane.f32.xlu0 %v559
    %v561 = vpop.xlane.xlu0 %560
    %v562 = vsel %vm290, %v524, 0.0
    %563 = vadd.xlane.f32.xlu0 %v562
    %v564 = vpop.xlane.xlu0 %563
    %v565 = vsel %vm290, %v525, 0.0
    %566 = vadd.xlane.f32.xlu0 %v565
    %v567 = vpop.xlane.xlu0 %566
    %v568 = vsel %vm290, %v526, 0.0
    %569 = vadd.xlane.f32.xlu0 %v568
    %v570 = vpop.xlane.xlu0 %569
    %v571 = vsel %vm290, %v527, 0.0
    %572 = vadd.xlane.f32.xlu0 %v571
    %v573 = vpop.xlane.xlu0 %572
    %v574 = vsel %vm290, %v528, 0.0
    %575 = vadd.xlane.f32.xlu0 %v574
    %v576 = vpop.xlane.xlu0 %575
    %v593 = vlaneseq
    %v594 = vshrl.u32 %v593, 7
    %v595 = vsub.s32 %v356, %v594
    %v596 = vrot.slane %v531, %v595
    %v597 = vlaneseq
    %v598 = vshrl.u32 %v597, 7
    %v599 = vsub.s32 %v361, %v598
    %v600 = vrot.slane %v534, %v599
    %v601 = vsel %vm366, %v600, %v596
    %v602 = vlaneseq
    %v603 = vshrl.u32 %v602, 7
    %v604 = vsub.s32 %v356, %v603
    %v605 = vrot.slane %v537, %v604
    %v606 = vlaneseq
    %v607 = vshrl.u32 %v606, 7
    %v608 = vsub.s32 %v361, %v607
    %v609 = vrot.slane %v540, %v608
    %v610 = vsel %vm366, %v609, %v605
    %v611 = vlaneseq
    %v612 = vshrl.u32 %v611, 7
    %v613 = vsub.s32 %v356, %v612
    %v614 = vrot.slane %v543, %v613
    %v615 = vlaneseq
    %v616 = vshrl.u32 %v615, 7
    %v617 = vsub.s32 %v361, %v616
    %v618 = vrot.slane %v546, %v617
    %v619 = vsel %vm366, %v618, %v614
    %v620 = vlaneseq
    %v621 = vshrl.u32 %v620, 7
    %v622 = vsub.s32 %v356, %v621
    %v623 = vrot.slane %v549, %v622
    %v624 = vlaneseq
    %v625 = vshrl.u32 %v624, 7
    %v626 = vsub.s32 %v361, %v625
    %v627 = vrot.slane %v552, %v626
    %v628 = vsel %vm366, %v627, %v623
    %v629 = vlaneseq
    %v630 = vshrl.u32 %v629, 7
    %v631 = vsub.s32 %v356, %v630
    %v632 = vrot.slane %v555, %v631
    %v633 = vlaneseq
    %v634 = vshrl.u32 %v633, 7
    %v635 = vsub.s32 %v361, %v634
    %v636 = vrot.slane %v558, %v635
    %v637 = vsel %vm366, %v636, %v632
    %v638 = vlaneseq
    %v639 = vshrl.u32 %v638, 7
    %v640 = vsub.s32 %v356, %v639
    %v641 = vrot.slane %v561, %v640
    %v642 = vlaneseq
    %v643 = vshrl.u32 %v642, 7
    %v644 = vsub.s32 %v361, %v643
    %v645 = vrot.slane %v564, %v644
    %v646 = vsel %vm366, %v645, %v641
    %v647 = vlaneseq
    %v648 = vshrl.u32 %v647, 7
    %v649 = vsub.s32 %v356, %v648
    %v650 = vrot.slane %v567, %v649
    %v651 = vlaneseq
    %v652 = vshrl.u32 %v651, 7
    %v653 = vsub.s32 %v361, %v652
    %v654 = vrot.slane %v570, %v653
    %v655 = vsel %vm366, %v654, %v650
    %v656 = vlaneseq
    %v657 = vshrl.u32 %v656, 7
    %v658 = vsub.s32 %v356, %v657
    %v659 = vrot.slane %v573, %v658
    %v660 = vlaneseq
    %v661 = vshrl.u32 %v660, 7
    %v662 = vsub.s32 %v361, %v661
    %v663 = vrot.slane %v576, %v662
    %v664 = vsel %vm366, %v663, %v659
    %v665 = vsel %vm431, %v610, %v601
    %v666 = vsel %vm433, %v619, %v665
    %v667 = vsel %vm435, %v628, %v666
    %v668 = vsel %vm437, %v637, %v667
    %v669 = vsel %vm439, %v646, %v668
    %v670 = vsel %vm441, %v655, %v669
    %v671 = vsel %vm443, %v664, %v670
    %v673 = vsel %vm141, %v671, 0.0
    %674 = vadd.xlane.f32.xlu0 %v673
    %v675 = vpop.xlane.xlu0 %674
    %676 = vxpose.xlu0.b32.start [1/16] %v675, 128
    %677 = vxpose.xlu0.b32.cont [2/16] 0.0, 128
    %678 = vxpose.xlu0.b32.cont [3/16] 0.0, 128
    %679 = vxpose.xlu0.b32.cont [4/16] 0.0, 128
    %680 = vxpose.xlu0.b32.cont [5/16] 0.0, 128
    %681 = vxpose.xlu0.b32.cont [6/16] 0.0, 128
    %682 = vxpose.xlu0.b32.cont [7/16] 0.0, 128
    %683 = vxpose.xlu0.b32.cont [8/16] 0.0, 128
    %684 = vxpose.xlu0.b32.cont [9/16] 0.0, 128
    %685 = vxpose.xlu0.b32.cont [10/16] 0.0, 128
    %686 = vxpose.xlu0.b32.cont [11/16] 0.0, 128
    %687 = vxpose.xlu0.b32.cont [12/16] 0.0, 128
    %688 = vxpose.xlu0.b32.cont [13/16] 0.0, 128
    %689 = vxpose.xlu0.b32.cont [14/16] 0.0, 128
    %690 = vxpose.xlu0.b32.cont [15/16] 0.0, 128
    %691 = vxpose.xlu0.b32.end [16/16] 0.0, 128
    %v692 = vpop.trf.xlu0
    %v693 = vpop.trf.xlu0
    %v694 = vpop.trf.xlu0
    %v695 = vpop.trf.xlu0
    %v696 = vpop.trf.xlu0
    %v697 = vpop.trf.xlu0
    %v698 = vpop.trf.xlu0
    %v699 = vpop.trf.xlu0
    %v700 = vpop.trf.xlu0
    %v701 = vpop.trf.xlu0
    %v702 = vpop.trf.xlu0
    %v703 = vpop.trf.xlu0
    %v704 = vpop.trf.xlu0
    %v705 = vpop.trf.xlu0
    %v706 = vpop.trf.xlu0
    %v707 = vpop.trf.xlu0
    %v708 = vld [vmem:[%s4] sm:$0x1]
    %v709 = vadd.f32 %v692, %v708
    %v710 = vsel %vm483, %v709, -inf
    %711 = vmax.xlane.f32.xlu0 %v710
    %v712 = vpop.xlane.xlu0 %711
    %v713 = vsub.f32 %v709, %v712
    %v714 = vmul.f32 %v713, 1.442695
    %v715 = vpow.pop %v714
    %v716 = vsel %vm483, %v715, 0.0
    %717 = vadd.xlane.f32.xlu0 %v716
    %v718 = vpop.xlane.xlu0 %717
    %v719 = vrcp.pop %v718
    %v720 = vmul.f32 %v715, %v719
    %721 = vst.msk [vmem:[#allocation2 + $0x1] sm:$0x1] %vm483, %v720
    // Predicated region
    $region22: #{_lambda_.5} parent=1 // pred_check
      _
    $region23: #{_lambda_.5} parent=1 // pred_check_branch
      %723 = sbr.rel (0) target = $region25
    $region24: #{_lambda_.5} parent=1 // pred_region
      %s725 = ssub.s32 32, 32
      %726 = vsyncadd [#allocation3], %s725
      %s728 = sshll.u32 [#allocation2], 4
      %s729 = int_to_ptr.vmem [resolvable:$true] %s728
      %731 = dma.vmem_to_hbm [thread:$0]  %s729, 32, %s5, [#allocation3]
    $region25: #{_lambda_.5} parent=1 // pred_fallthru
      _
    // Predicated region
    $region26: #{_lambda_.5} parent=1 // pred_check
      _
    $region27: #{_lambda_.5} parent=1 // pred_check_branch
      %733 = sbr.rel (0) target = $region29
    $region28: #{_lambda_.5} parent=1 // pred_region
      %734 = dma.done [#allocation3], 32
    $region29: #{_lambda_.5} parent=1 // pred_fallthru
      _
    %735 = vsyncpa [#allocation3], 1

</llo_original>
